<compile_context>
chip_gen: v7x
topology: tpu7x:2x2x1
jax: 0.10.0
libtpu: 0.0.40
codegen_flags: <defaults>
</compile_context>

<pallas_src>
import functools

import numpy as np
import jax
import jax.numpy as jnp
from jax.experimental import pallas as pl
from jax.experimental.pallas import tpu as pltpu  # noqa: F401  (TPU backend import)

# ---- small synthetic model dims ----
BATCH = 2
SEQ = 8                      # power of two (block-diagonal batch-mask trick)
HIDDEN = 32
NUM_HEADS = 2
HEAD_DIM = HIDDEN // NUM_HEADS
NUM_LAYERS = 2
INTERMEDIATE = 64
VOCAB = 100
VOCAB_PAD = 128              # padded to a full 128-lane one-hot contraction
TYPE_VOCAB = 2
MAX_POS = 64
INNER_LABELS = 19            # fixed by the module: classifier = Linear(in_features=19, ...)
OUTPUT_SIZE = 8              # outer num_labels
LANES = 128
LN_EPS = 1e-12
IGNORE_INDEX = -100          # nn.CrossEntropyLoss default
NEG_INF = -1e9
M_TOKENS = BATCH * SEQ
MM_DTYPE = jnp.bfloat16      # matmul operand dtype; accumulation stays f32

assert SEQ & (SEQ - 1) == 0, "SEQ must be a power of two for the batch-mask trick"

# ------------------------- packed parameter slab layout -------------------------
# One f32 [TOTAL_ROWS, 128] array, lane-0 aligned blocks, built once at init.
OFF_WORD = 0                                   # [128, 32]  word embedding (rows >= VOCAB are zero)
OFF_STATIC = OFF_WORD + VOCAB_PAD              # [16, 32]   pos(row mod SEQ) + type_emb[0], precomputed
OFF_VEC = OFF_STATIC + M_TOKENS                # vector rows (one bias/gamma/beta per row)
V_EMB_LN_G, V_EMB_LN_B, V_TOK_DELTA, V_B_FUSED = 0, 1, 2, 3
VB_Q, VB_K, VB_V, VB_BO = 0, 2, 4, 6           # per-layer vector offsets (+h for Q/K/V)
VB_LN1G, VB_LN1B, VB_B1, VB_B2, VB_LN2G, VB_LN2B = 7, 8, 9, 10, 11, 12
VEC_PER_LAYER = 13
N_VEC = 4 + NUM_LAYERS * VEC_PER_LAYER
VEC_ROWS = (N_VEC + 7) // 8 * 8
OFF_W = OFF_VEC + VEC_ROWS                     # per-layer weight blocks
W_Q, W_K, W_V, W_O, W_FF1, W_FF2 = 0, 64, 128, 192, 224, 256   # row offsets within a layer block
LAYER_W_ROWS = 320
OFF_HEAD = OFF_W + NUM_LAYERS * LAYER_W_ROWS   # [32, 128] fused (inner head @ classifier), lane-padded
TOTAL_ROWS = OFF_HEAD + HIDDEN                 # 848 (multiple of 8)


def _layer_vec(l):
    return 4 + l * VEC_PER_LAYER


def _layer_w(l):
    return OFF_W + l * LAYER_W_ROWS


# ------------------------- fused forward kernel -------------------------

def _fused_forward_kernel(ints_ref, mask_ref, p_ref, out_ref, *, compute_loss):
    f32 = jnp.float32

    def mm(a, b):
        # bf16 operands, f32 accumulation (single-pass MXU on v6e/v7x, safe on v5e).
        return jnp.dot(a.astype(MM_DTYPE), b.astype(MM_DTYPE),
                       preferred_element_type=f32)

    def vrow(idx, width=HIDDEN):
        r = OFF_VEC + idx
        return p_ref[r:r + 1, 0:width]                       # [1, width], lane-0 aligned

    def layer_norm(x, g, b):
        # Independent sum / sum-of-squares reductions; var clamped at 0 (review item).
        inv_n = 1.0 / x.shape[-1]
        s1 = jnp.sum(x, axis=-1, keepdims=True)
        s2 = jnp.sum(x * x, axis=-1, keepdims=True)
        mu = s1 * inv_n
        var = jnp.maximum(s2 * inv_n - mu * mu, 0.0)
        return (x - mu) * jax.lax.rsqrt(var + LN_EPS) * g + b

    ids = ints_ref[:, 0:1]                                   # [M, 1] int32
    ttypes = ints_ref[:, 1:2]                                # [M, 1] int32
    mask = mask_ref[...]                                     # [1, M] f32 (1 = valid key)

    # ---- embeddings: one-hot word gather (128-lane MXU pass) + precomputed static rows ----
    onehot = (jax.lax.broadcasted_iota(jnp.int32, (M_TOKENS, VOCAB_PAD), 1) == ids)
    word = mm(onehot.astype(f32), p_ref[OFF_WORD:OFF_WORD + VOCAB_PAD, 0:HIDDEN])
    static_emb = p_ref[OFF_STATIC:OFF_STATIC + M_TOKENS, 0:HIDDEN]     # pos + type0 base
    emb = word + static_emb + ttypes.astype(f32) * vrow(V_TOK_DELTA)
    x = layer_norm(emb, vrow(V_EMB_LN_G), vrow(V_EMB_LN_B))            # dropout identity at eval

    # ---- block-diagonal attention bias: same batch AND key not padded ----
    row_m = jax.lax.broadcasted_iota(jnp.int32, (M_TOKENS, M_TOKENS), 0)
    col_m = jax.lax.broadcasted_iota(jnp.int32, (M_TOKENS, M_TOKENS), 1)
    same_batch = (row_m & (-SEQ)) == (col_m & (-SEQ))
    key_valid = mask > 0.5
    bias = jnp.where(jnp.logical_and(same_batch, key_valid), 0.0, NEG_INF).astype(f32)

    contract_last = (((1,), (1,)), ((), ()))                 # q @ k^T without explicit transpose
    for l in range(NUM_LAYERS):
        wb = _layer_w(l)
        vb = _layer_vec(l)
        attn = jnp.zeros((M_TOKENS, HIDDEN), f32)
        for h in range(NUM_HEADS):
            r0 = wb + W_Q + h * HIDDEN
            wq_h = p_ref[r0:r0 + HIDDEN, 0:HEAD_DIM]         # pre-scaled by 1/sqrt(Dh)
            r0 = wb + W_K + h * HIDDEN
            wk_h = p_ref[r0:r0 + HIDDEN, 0:HEAD_DIM]
            r0 = wb + W_V + h * HIDDEN
            wv_h = p_ref[r0:r0 + HIDDEN, 0:HEAD_DIM]
            r0 = wb + W_O + h * HEAD_DIM
            wo_h = p_ref[r0:r0 + HEAD_DIM, 0:HIDDEN]

            q_h = mm(x, wq_h) + vrow(vb + VB_Q + h, HEAD_DIM)
            k_h = mm(x, wk_h) + vrow(vb + VB_K + h, HEAD_DIM)
            v_h = mm(x, wv_h) + vrow(vb + VB_V + h, HEAD_DIM)

            s = jax.lax.dot_general(q_h.astype(MM_DTYPE), k_h.astype(MM_DTYPE),
                                    contract_last, preferred_element_type=f32) + bias
            s = s - jnp.max(s, axis=-1, keepdims=True)
            p_att = jnp.exp(s)
            p_att = p_att * pl.reciprocal(jnp.sum(p_att, axis=-1, keepdims=True),
                                          approx=True)
            ctx = mm(p_att, v_h)                             # [M, Dh]
            attn = attn + mm(ctx, wo_h)                      # heads merged algebraically
        attn = attn + vrow(vb + VB_BO)
        x = layer_norm(x + attn, vrow(vb + VB_LN1G), vrow(vb + VB_LN1B))

        ff = mm(x, p_ref[wb + W_FF1:wb + W_FF1 + HIDDEN, 0:INTERMEDIATE]) \
            + vrow(vb + VB_B1, INTERMEDIATE)
        # TODO(synk): HF BERT default is exact erf GELU; tanh approximation used here.
        ff = jax.nn.gelu(ff, approximate=True)
        ff = mm(ff, p_ref[wb + W_FF2:wb + W_FF2 + INTERMEDIATE, 0:HIDDEN]) + vrow(vb + VB_B2)
        x = layer_norm(x + ff, vrow(vb + VB_LN2G), vrow(vb + VB_LN2B))

    # fused inner head (32->19), dropout (identity at eval) and classifier (19->out),
    # lane-padded to 128: padding lanes get -1e9 via b_fused so the LSE ignores them.
    logits = mm(x, p_ref[OFF_HEAD:OFF_HEAD + HIDDEN, 0:LANES]) + vrow(V_B_FUSED, LANES)
    out_ref[0:M_TOKENS, :] = logits                          # lane-dense store

    if compute_loss:
        labels = ints_ref[:, 2:3]                            # [M, 1] int32
        mmax = jnp.max(logits, axis=-1, keepdims=True)
        lse = jnp.log(jnp.sum(jnp.exp(logits - mmax), axis=-1, keepdims=True)) + mmax
        col = jax.lax.broadcasted_iota(jnp.int32, (M_TOKENS, LANES), 1)
        picked = jnp.sum(jnp.where(col == labels, logits, 0.0), axis=-1, keepdims=True)
        valid = (labels != IGNORE_INDEX).astype(f32)         # ignore_index = -100
        nll = (lse - picked) * valid
        denom = jnp.maximum(jnp.sum(valid), 1.0)             # guard all-ignored case
        loss_val = jnp.sum(nll) / denom
        out_ref[M_TOKENS:M_TOKENS + 1, :] = jnp.full((1, LANES), loss_val, f32)


# ------------------------- parameters -------------------------

def init_params(key):
    keys = iter(jax.random.split(key, 16))

    def dense(shape, scale=0.02):
        return jax.random.normal(next(keys), shape, jnp.float32) * scale

    L, H, I = NUM_LAYERS, HIDDEN, INTERMEDIATE
    return dict(
        word_emb=dense((VOCAB, H)),
        pos_emb=dense((MAX_POS, H)),
        type_emb=dense((TYPE_VOCAB, H)),
        emb_ln_g=jnp.ones((H,), jnp.float32), emb_ln_b=jnp.zeros((H,), jnp.float32),
        wq=dense((L, H, H)), bq=jnp.zeros((L, H), jnp.float32),
        wk=dense((L, H, H)), bk=jnp.zeros((L, H), jnp.float32),
        wv=dense((L, H, H)), bv=jnp.zeros((L, H), jnp.float32),
        wo=dense((L, H, H)), bo=jnp.zeros((L, H), jnp.float32),
        ln1_g=jnp.ones((L, H), jnp.float32), ln1_b=jnp.zeros((L, H), jnp.float32),
        w1=dense((L, H, I)), b1=jnp.zeros((L, I), jnp.float32),
        w2=dense((L, I, H)), b2=jnp.zeros((L, H), jnp.float32),
        ln2_g=jnp.ones((L, H), jnp.float32), ln2_b=jnp.zeros((L, H), jnp.float32),
        w_inner=dense((H, INNER_LABELS)), b_inner=jnp.zeros((INNER_LABELS,), jnp.float32),
        w_cls=dense((INNER_LABELS, OUTPUT_SIZE)), b_cls=jnp.zeros((OUTPUT_SIZE,), jnp.float32),
    )


def pack_params(params):
    """Build the single lane-aligned parameter slab once at init (one input DMA)."""
    p = {k: np.asarray(v, np.float32) for k, v in params.items()}
    slab = np.zeros((TOTAL_ROWS, LANES), np.float32)

    def put(row, arr):
        a = np.asarray(arr, np.float32)
        if a.ndim == 1:
            a = a[None, :]
        slab[row:row + a.shape[0], :a.shape[1]] = a

    put(OFF_WORD, p["word_emb"])                                      # rows >= VOCAB stay zero
    pos_tiled = np.tile(p["pos_emb"][:SEQ], (BATCH, 1))               # position = token_row mod SEQ
    put(OFF_STATIC, pos_tiled + p["type_emb"][0][None, :])            # + type-0 base, precomputed

    put(OFF_VEC + V_EMB_LN_G, p["emb_ln_g"])
    put(OFF_VEC + V_EMB_LN_B, p["emb_ln_b"])
    put(OFF_VEC + V_TOK_DELTA, p["type_emb"][1] - p["type_emb"][0])
    b_fused = np.full((LANES,), NEG_INF, np.float32)                  # padding lanes never win LSE
    b_fused[:OUTPUT_SIZE] = p["b_inner"] @ p["w_cls"] + p["b_cls"]
    put(OFF_VEC + V_B_FUSED, b_fused)

    scale = 1.0 / float(HEAD_DIM) ** 0.5
    for l in range(NUM_LAYERS):
        vb = OFF_VEC + _layer_vec(l)
        wb = _layer_w(l)
        for h in range(NUM_HEADS):
            sl = slice(h * HEAD_DIM, (h + 1) * HEAD_DIM)
            put(vb + VB_Q + h, p["bq"][l][sl] * scale)                # Q scale folded in
            put(vb + VB_K + h, p["bk"][l][sl])
            put(vb + VB_V + h, p["bv"][l][sl])
            put(wb + W_Q + h * HIDDEN, p["wq"][l][:, sl] * scale)
            put(wb + W_K + h * HIDDEN, p["wk"][l][:, sl])
            put(wb + W_V + h * HIDDEN, p["wv"][l][:, sl])
            put(wb + W_O + h * HEAD_DIM, p["wo"][l][sl, :])
        put(vb + VB_BO, p["bo"][l])
        put(vb + VB_LN1G, p["ln1_g"][l])
        put(vb + VB_LN1B, p["ln1_b"][l])
        put(vb + VB_B1, p["b1"][l])
        put(vb + VB_B2, p["b2"][l])
        put(vb + VB_LN2G, p["ln2_g"][l])
        put(vb + VB_LN2B, p["ln2_b"][l])
        put(wb + W_FF1, p["w1"][l])
        put(wb + W_FF2, p["w2"][l])

    put(OFF_HEAD, p["w_inner"] @ p["w_cls"])                          # fused head, lanes 8..127 = 0
    return jnp.asarray(slab)


# ------------------------- forward pass -------------------------

def bert_token_classifier_double(param_slab, input_ids, token_type_ids, attention_mask,
                                 labels=None):
    B, S = input_ids.shape
    m = B * S
    assert m == M_TOKENS, "kernel is specialized to BATCH*SEQ tokens"
    compute_loss = labels is not None

    labels_flat = (labels.reshape(m).astype(jnp.int32) if compute_loss
                   else jnp.zeros((m,), jnp.int32))
    ints = jnp.stack([input_ids.reshape(m).astype(jnp.int32),
                      token_type_ids.reshape(m).astype(jnp.int32),
                      labels_flat], axis=1)                           # [M, 3] int32 (1 DMA)
    mask = attention_mask.reshape(1, m).astype(jnp.float32)           # [1, M] f32   (1 DMA)

    out_rows = m + 1 if compute_loss else m                           # loss appended as extra row
    out = pl.pallas_call(
        functools.partial(_fused_forward_kernel, compute_loss=compute_loss),
        out_shape=jax.ShapeDtypeStruct((out_rows, LANES), jnp.float32),
    )(ints, mask, param_slab)

    logits = out[:m, :OUTPUT_SIZE].reshape(B, S, OUTPUT_SIZE)
    loss = out[m, 0] if compute_loss else None
    return loss, logits


# ------------------------- driver -------------------------

if __name__ == "__main__":
    key = jax.random.PRNGKey(0)
    k_params, k_ids, k_labels = jax.random.split(key, 3)

    params = init_params(k_params)
    param_slab = pack_params(params)                                  # built once, reused per call

    input_ids = jax.random.randint(k_ids, (BATCH, SEQ), 0, VOCAB, dtype=jnp.int32)
    token_type_ids = jnp.zeros((BATCH, SEQ), jnp.int32)
    attention_mask = jnp.ones((BATCH, SEQ), jnp.int32).at[1, SEQ - 2:].set(0)
    labels = jax.random.randint(k_labels, (BATCH, SEQ), 0, OUTPUT_SIZE, dtype=jnp.int32)
    labels = jnp.where(attention_mask == 1, labels, IGNORE_INDEX)     # padded tokens ignored

    fwd = jax.jit(bert_token_classifier_double)
    loss, logits = fwd(param_slab, input_ids, token_type_ids, attention_mask, labels)
    jax.block_until_ready((loss, logits))

    assert logits.shape == (BATCH, SEQ, OUTPUT_SIZE)
    assert logits.dtype == jnp.float32
    assert loss.shape == () and bool(jnp.isfinite(loss))

    # labels=None path (loss is None, logits identical)
    loss_none, logits2 = bert_token_classifier_double(
        param_slab, input_ids, token_type_ids, attention_mask)
    jax.block_until_ready(logits2)
    assert loss_none is None
    assert jnp.allclose(logits, logits2, atol=1e-5)

    print("KERNEL_OK")
</pallas_src>

<mosaic_0001>
module attributes {stable_mosaic.version = 11 : i64} {
  func.func @_fused_forward_kernel(%arg0: memref<16x3xi32, #tpu.memory_space<vmem>>, %arg1: memref<1x16xf32, #tpu.memory_space<vmem>>, %arg2: memref<848x128xf32, #tpu.memory_space<vmem>>, %arg3: memref<17x128xf32, #tpu.memory_space<vmem>>) attributes {dimension_semantics = [], scalar_prefetch = 0 : i64, scratch_operands = 0 : i64, tpu.core_type = #tpu.core_type<tc>} {
    %c0 = arith.constant 0 : index
    %c0_0 = arith.constant 0 : index
    %0 = vector.load %arg0[%c0, %c0_0] : memref<16x3xi32, #tpu.memory_space<vmem>>, vector<16x1xi32>
    %c0_1 = arith.constant 0 : index
    %c1 = arith.constant 1 : index
    %1 = vector.load %arg0[%c0_1, %c1] : memref<16x3xi32, #tpu.memory_space<vmem>>, vector<16x1xi32>
    %c0_2 = arith.constant 0 : index
    %c0_3 = arith.constant 0 : index
    %2 = vector.load %arg1[%c0_2, %c0_3] : memref<1x16xf32, #tpu.memory_space<vmem>>, vector<1x16xf32>
    %3 = tpu.iota {dimensions = array<i32: 1>} : vector<16x128xi32>
    %4 = vector.broadcast %0 : vector<16x1xi32> to vector<16x128xi32>
    %5 = arith.cmpi eq, %3, %4 : vector<16x128xi32>
    %6 = arith.extui %5 : vector<16x128xi1> to vector<16x128xi32>
    %7 = arith.sitofp %6 : vector<16x128xi32> to vector<16x128xf32>
    %c0_4 = arith.constant 0 : index
    %c0_5 = arith.constant 0 : index
    %8 = vector.load %arg2[%c0_4, %c0_5] : memref<848x128xf32, #tpu.memory_space<vmem>>, vector<128x32xf32>
    %9 = arith.truncf %7 : vector<16x128xf32> to vector<16x128xbf16>
    %10 = arith.truncf %8 : vector<128x32xf32> to vector<128x32xbf16>
    %cst = arith.constant dense<0.000000e+00> : vector<16x32xf32>
    %11 = tpu.matmul %9, %10, %cst {dimension_numbers = #tpu.dot_dimension_numbers<[1], [0], [0], [1], [0, 0, 1, 1], [], []>} : vector<16x128xbf16>, vector<128x32xbf16>, vector<16x32xf32> -> vector<16x32xf32>
    %c128 = arith.constant 128 : index
    %c0_6 = arith.constant 0 : index
    %12 = vector.load %arg2[%c128, %c0_6] : memref<848x128xf32, #tpu.memory_space<vmem>>, vector<16x32xf32>
    %13 = arith.addf %11, %12 : vector<16x32xf32>
    %14 = arith.sitofp %1 : vector<16x1xi32> to vector<16x1xf32>
    %c146 = arith.constant 146 : index
    %c0_7 = arith.constant 0 : index
    %15 = vector.load %arg2[%c146, %c0_7] : memref<848x128xf32, #tpu.memory_space<vmem>>, vector<1x32xf32>
    %16 = vector.broadcast %14 : vector<16x1xf32> to vector<16x32xf32>
    %17 = vector.broadcast %15 : vector<1x32xf32> to vector<16x32xf32>
    %18 = arith.mulf %16, %17 : vector<16x32xf32>
    %19 = arith.addf %13, %18 : vector<16x32xf32>
    %c144 = arith.constant 144 : index
    %c0_8 = arith.constant 0 : index
    %20 = vector.load %arg2[%c144, %c0_8] : memref<848x128xf32, #tpu.memory_space<vmem>>, vector<1x32xf32>
    %c145 = arith.constant 145 : index
    %c0_9 = arith.constant 0 : index
    %21 = vector.load %arg2[%c145, %c0_9] : memref<848x128xf32, #tpu.memory_space<vmem>>, vector<1x32xf32>
    %cst_10 = arith.constant dense<0.000000e+00> : vector<16xf32>
    %22 = vector.multi_reduction <add>, %19, %cst_10 [1] : vector<16x32xf32> to vector<16xf32>
    %23 = vector.shape_cast %22 : vector<16xf32> to vector<16x1xf32>
    %24 = arith.mulf %19, %19 : vector<16x32xf32>
    %cst_11 = arith.constant dense<0.000000e+00> : vector<16xf32>
    %25 = vector.multi_reduction <add>, %24, %cst_11 [1] : vector<16x32xf32> to vector<16xf32>
    %26 = vector.shape_cast %25 : vector<16xf32> to vector<16x1xf32>
    %cst_12 = arith.constant 3.125000e-02 : f32
    %27 = vector.broadcast %cst_12 : f32 to vector<16x1xf32>
    %28 = arith.mulf %23, %27 : vector<16x1xf32>
    %cst_13 = arith.constant 3.125000e-02 : f32
    %29 = vector.broadcast %cst_13 : f32 to vector<16x1xf32>
    %30 = arith.mulf %26, %29 : vector<16x1xf32>
    %31 = arith.mulf %28, %28 : vector<16x1xf32>
    %32 = arith.subf %30, %31 : vector<16x1xf32>
    %cst_14 = arith.constant 0.000000e+00 : f32
    %33 = vector.broadcast %cst_14 : f32 to vector<16x1xf32>
    %34 = arith.maximumf %32, %33 : vector<16x1xf32>
    %35 = vector.broadcast %28 : vector<16x1xf32> to vector<16x32xf32>
    %36 = arith.subf %19, %35 : vector<16x32xf32>
    %cst_15 = arith.constant 9.99999996E-13 : f32
    %37 = vector.broadcast %cst_15 : f32 to vector<16x1xf32>
    %38 = arith.addf %34, %37 : vector<16x1xf32>
    %39 = math.rsqrt %38 : vector<16x1xf32>
    %40 = vector.broadcast %39 : vector<16x1xf32> to vector<16x32xf32>
    %41 = arith.mulf %36, %40 : vector<16x32xf32>
    %42 = vector.broadcast %20 : vector<1x32xf32> to vector<16x32xf32>
    %43 = arith.mulf %41, %42 : vector<16x32xf32>
    %44 = vector.broadcast %21 : vector<1x32xf32> to vector<16x32xf32>
    %45 = arith.addf %43, %44 : vector<16x32xf32>
    %46 = tpu.iota {dimensions = array<i32: 0>} : vector<16x16xi32>
    %47 = tpu.iota {dimensions = array<i32: 1>} : vector<16x16xi32>
    %c-8_i32 = arith.constant -8 : i32
    %48 = vector.broadcast %c-8_i32 : i32 to vector<16x16xi32>
    %49 = arith.andi %46, %48 : vector<16x16xi32>
    %c-8_i32_16 = arith.constant -8 : i32
    %50 = vector.broadcast %c-8_i32_16 : i32 to vector<16x16xi32>
    %51 = arith.andi %47, %50 : vector<16x16xi32>
    %52 = arith.cmpi eq, %49, %51 : vector<16x16xi32>
    %cst_17 = arith.constant 5.000000e-01 : f32
    %53 = vector.broadcast %cst_17 : f32 to vector<1x16xf32>
    %54 = arith.cmpf ogt, %2, %53 : vector<1x16xf32>
    %55 = vector.broadcast %54 : vector<1x16xi1> to vector<16x16xi1>
    %56 = arith.andi %52, %55 : vector<16x16xi1>
    %cst_18 = arith.constant 0.000000e+00 : f32
    %cst_19 = arith.constant -1.000000e+09 : f32
    %57 = vector.broadcast %cst_18 : f32 to vector<16x16xf32>
    %58 = vector.broadcast %cst_19 : f32 to vector<16x16xf32>
    %59 = arith.select %56, %57, %58 : vector<16x16xi1>, vector<16x16xf32>
    %cst_20 = arith.constant 0.000000e+00 : f32
    %60 = vector.broadcast %cst_20 : f32 to vector<16x32xf32>
    %c176 = arith.constant 176 : index
    %c0_21 = arith.constant 0 : index
    %61 = vector.load %arg2[%c176, %c0_21] : memref<848x128xf32, #tpu.memory_space<vmem>>, vector<32x16xf32>
    %c240 = arith.constant 240 : index
    %c0_22 = arith.constant 0 : index
    %62 = vector.load %arg2[%c240, %c0_22] : memref<848x128xf32, #tpu.memory_space<vmem>>, vector<32x16xf32>
    %c304 = arith.constant 304 : index
    %c0_23 = arith.constant 0 : index
    %63 = vector.load %arg2[%c304, %c0_23] : memref<848x128xf32, #tpu.memory_space<vmem>>, vector<32x16xf32>
    %c368 = arith.constant 368 : index
    %c0_24 = arith.constant 0 : index
    %64 = vector.load %arg2[%c368, %c0_24] : memref<848x128xf32, #tpu.memory_space<vmem>>, vector<16x32xf32>
    %65 = arith.truncf %45 : vector<16x32xf32> to vector<16x32xbf16>
    %66 = arith.truncf %61 : vector<32x16xf32> to vector<32x16xbf16>
    %cst_25 = arith.constant dense<0.000000e+00> : vector<16x16xf32>
    %67 = tpu.matmul %65, %66, %cst_25 {dimension_numbers = #tpu.dot_dimension_numbers<[1], [0], [0], [1], [0, 0, 1, 1], [], []>} : vector<16x32xbf16>, vector<32x16xbf16>, vector<16x16xf32> -> vector<16x16xf32>
    %c148 = arith.constant 148 : index
    %c0_26 = arith.constant 0 : index
    %68 = vector.load %arg2[%c148, %c0_26] : memref<848x128xf32, #tpu.memory_space<vmem>>, vector<1x16xf32>
    %69 = vector.broadcast %68 : vector<1x16xf32> to vector<16x16xf32>
    %70 = arith.addf %67, %69 : vector<16x16xf32>
    %71 = arith.truncf %45 : vector<16x32xf32> to vector<16x32xbf16>
    %72 = arith.truncf %62 : vector<32x16xf32> to vector<32x16xbf16>
    %cst_27 = arith.constant dense<0.000000e+00> : vector<16x16xf32>
    %73 = tpu.matmul %71, %72, %cst_27 {dimension_numbers = #tpu.dot_dimension_numbers<[1], [0], [0], [1], [0, 0, 1, 1], [], []>} : vector<16x32xbf16>, vector<32x16xbf16>, vector<16x16xf32> -> vector<16x16xf32>
    %c150 = arith.constant 150 : index
    %c0_28 = arith.constant 0 : index
    %74 = vector.load %arg2[%c150, %c0_28] : memref<848x128xf32, #tpu.memory_space<vmem>>, vector<1x16xf32>
    %75 = vector.broadcast %74 : vector<1x16xf32> to vector<16x16xf32>
    %76 = arith.addf %73, %75 : vector<16x16xf32>
    %77 = arith.truncf %45 : vector<16x32xf32> to vector<16x32xbf16>
    %78 = arith.truncf %63 : vector<32x16xf32> to vector<32x16xbf16>
    %cst_29 = arith.constant dense<0.000000e+00> : vector<16x16xf32>
    %79 = tpu.matmul %77, %78, %cst_29 {dimension_numbers = #tpu.dot_dimension_numbers<[1], [0], [0], [1], [0, 0, 1, 1], [], []>} : vector<16x32xbf16>, vector<32x16xbf16>, vector<16x16xf32> -> vector<16x16xf32>
    %c152 = arith.constant 152 : index
    %c0_30 = arith.constant 0 : index
    %80 = vector.load %arg2[%c152, %c0_30] : memref<848x128xf32, #tpu.memory_space<vmem>>, vector<1x16xf32>
    %81 = vector.broadcast %80 : vector<1x16xf32> to vector<16x16xf32>
    %82 = arith.addf %79, %81 : vector<16x16xf32>
    %83 = arith.truncf %70 : vector<16x16xf32> to vector<16x16xbf16>
    %84 = arith.truncf %76 : vector<16x16xf32> to vector<16x16xbf16>
    %cst_31 = arith.constant dense<0.000000e+00> : vector<16x16xf32>
    %85 = tpu.matmul %83, %84, %cst_31 {dimension_numbers = #tpu.dot_dimension_numbers<[1], [1], [0], [0], [0, 0, 1, 0], [], []>} : vector<16x16xbf16>, vector<16x16xbf16>, vector<16x16xf32> -> vector<16x16xf32>
    %86 = arith.addf %85, %59 : vector<16x16xf32>
    %cst_32 = arith.constant dense<0xFF800000> : vector<16xf32>
    %87 = vector.multi_reduction <maximumf>, %86, %cst_32 [1] : vector<16x16xf32> to vector<16xf32>
    %88 = vector.shape_cast %87 : vector<16xf32> to vector<16x1xf32>
    %89 = vector.broadcast %88 : vector<16x1xf32> to vector<16x16xf32>
    %90 = arith.subf %86, %89 : vector<16x16xf32>
    %91 = math.exp %90 : vector<16x16xf32>
    %cst_33 = arith.constant dense<0.000000e+00> : vector<16xf32>
    %92 = vector.multi_reduction <add>, %91, %cst_33 [1] : vector<16x16xf32> to vector<16xf32>
    %93 = vector.shape_cast %92 : vector<16xf32> to vector<16x1xf32>
    %94 = tpu.reciprocal %93 {approx = true} : vector<16x1xf32> -> vector<16x1xf32>
    %95 = vector.broadcast %94 : vector<16x1xf32> to vector<16x16xf32>
    %96 = arith.mulf %91, %95 : vector<16x16xf32>
    %97 = arith.truncf %96 : vector<16x16xf32> to vector<16x16xbf16>
    %98 = arith.truncf %82 : vector<16x16xf32> to vector<16x16xbf16>
    %cst_34 = arith.constant dense<0.000000e+00> : vector<16x16xf32>
    %99 = tpu.matmul %97, %98, %cst_34 {dimension_numbers = #tpu.dot_dimension_numbers<[1], [0], [0], [1], [0, 0, 1, 1], [], []>} : vector<16x16xbf16>, vector<16x16xbf16>, vector<16x16xf32> -> vector<16x16xf32>
    %100 = arith.truncf %99 : vector<16x16xf32> to vector<16x16xbf16>
    %101 = arith.truncf %64 : vector<16x32xf32> to vector<16x32xbf16>
    %cst_35 = arith.constant dense<0.000000e+00> : vector<16x32xf32>
    %102 = tpu.matmul %100, %101, %cst_35 {dimension_numbers = #tpu.dot_dimension_numbers<[1], [0], [0], [1], [0, 0, 1, 1], [], []>} : vector<16x16xbf16>, vector<16x32xbf16>, vector<16x32xf32> -> vector<16x32xf32>
    %103 = arith.addf %60, %102 : vector<16x32xf32>
    %c208 = arith.constant 208 : index
    %c0_36 = arith.constant 0 : index
    %104 = vector.load %arg2[%c208, %c0_36] : memref<848x128xf32, #tpu.memory_space<vmem>>, vector<32x16xf32>
    %c272 = arith.constant 272 : index
    %c0_37 = arith.constant 0 : index
    %105 = vector.load %arg2[%c272, %c0_37] : memref<848x128xf32, #tpu.memory_space<vmem>>, vector<32x16xf32>
    %c336 = arith.constant 336 : index
    %c0_38 = arith.constant 0 : index
    %106 = vector.load %arg2[%c336, %c0_38] : memref<848x128xf32, #tpu.memory_space<vmem>>, vector<32x16xf32>
    %c384 = arith.constant 384 : index
    %c0_39 = arith.constant 0 : index
    %107 = vector.load %arg2[%c384, %c0_39] : memref<848x128xf32, #tpu.memory_space<vmem>>, vector<16x32xf32>
    %108 = arith.truncf %45 : vector<16x32xf32> to vector<16x32xbf16>
    %109 = arith.truncf %104 : vector<32x16xf32> to vector<32x16xbf16>
    %cst_40 = arith.constant dense<0.000000e+00> : vector<16x16xf32>
    %110 = tpu.matmul %108, %109, %cst_40 {dimension_numbers = #tpu.dot_dimension_numbers<[1], [0], [0], [1], [0, 0, 1, 1], [], []>} : vector<16x32xbf16>, vector<32x16xbf16>, vector<16x16xf32> -> vector<16x16xf32>
    %c149 = arith.constant 149 : index
    %c0_41 = arith.constant 0 : index
    %111 = vector.load %arg2[%c149, %c0_41] : memref<848x128xf32, #tpu.memory_space<vmem>>, vector<1x16xf32>
    %112 = vector.broadcast %111 : vector<1x16xf32> to vector<16x16xf32>
    %113 = arith.addf %110, %112 : vector<16x16xf32>
    %114 = arith.truncf %45 : vector<16x32xf32> to vector<16x32xbf16>
    %115 = arith.truncf %105 : vector<32x16xf32> to vector<32x16xbf16>
    %cst_42 = arith.constant dense<0.000000e+00> : vector<16x16xf32>
    %116 = tpu.matmul %114, %115, %cst_42 {dimension_numbers = #tpu.dot_dimension_numbers<[1], [0], [0], [1], [0, 0, 1, 1], [], []>} : vector<16x32xbf16>, vector<32x16xbf16>, vector<16x16xf32> -> vector<16x16xf32>
    %c151 = arith.constant 151 : index
    %c0_43 = arith.constant 0 : index
    %117 = vector.load %arg2[%c151, %c0_43] : memref<848x128xf32, #tpu.memory_space<vmem>>, vector<1x16xf32>
    %118 = vector.broadcast %117 : vector<1x16xf32> to vector<16x16xf32>
    %119 = arith.addf %116, %118 : vector<16x16xf32>
    %120 = arith.truncf %45 : vector<16x32xf32> to vector<16x32xbf16>
    %121 = arith.truncf %106 : vector<32x16xf32> to vector<32x16xbf16>
    %cst_44 = arith.constant dense<0.000000e+00> : vector<16x16xf32>
    %122 = tpu.matmul %120, %121, %cst_44 {dimension_numbers = #tpu.dot_dimension_numbers<[1], [0], [0], [1], [0, 0, 1, 1], [], []>} : vector<16x32xbf16>, vector<32x16xbf16>, vector<16x16xf32> -> vector<16x16xf32>
    %c153 = arith.constant 153 : index
    %c0_45 = arith.constant 0 : index
    %123 = vector.load %arg2[%c153, %c0_45] : memref<848x128xf32, #tpu.memory_space<vmem>>, vector<1x16xf32>
    %124 = vector.broadcast %123 : vector<1x16xf32> to vector<16x16xf32>
    %125 = arith.addf %122, %124 : vector<16x16xf32>
    %126 = arith.truncf %113 : vector<16x16xf32> to vector<16x16xbf16>
    %127 = arith.truncf %119 : vector<16x16xf32> to vector<16x16xbf16>
    %cst_46 = arith.constant dense<0.000000e+00> : vector<16x16xf32>
    %128 = tpu.matmul %126, %127, %cst_46 {dimension_numbers = #tpu.dot_dimension_numbers<[1], [1], [0], [0], [0, 0, 1, 0], [], []>} : vector<16x16xbf16>, vector<16x16xbf16>, vector<16x16xf32> -> vector<16x16xf32>
    %129 = arith.addf %128, %59 : vector<16x16xf32>
    %cst_47 = arith.constant dense<0xFF800000> : vector<16xf32>
    %130 = vector.multi_reduction <maximumf>, %129, %cst_47 [1] : vector<16x16xf32> to vector<16xf32>
    %131 = vector.shape_cast %130 : vector<16xf32> to vector<16x1xf32>
    %132 = vector.broadcast %131 : vector<16x1xf32> to vector<16x16xf32>
    %133 = arith.subf %129, %132 : vector<16x16xf32>
    %134 = math.exp %133 : vector<16x16xf32>
    %cst_48 = arith.constant dense<0.000000e+00> : vector<16xf32>
    %135 = vector.multi_reduction <add>, %134, %cst_48 [1] : vector<16x16xf32> to vector<16xf32>
    %136 = vector.shape_cast %135 : vector<16xf32> to vector<16x1xf32>
    %137 = tpu.reciprocal %136 {approx = true} : vector<16x1xf32> -> vector<16x1xf32>
    %138 = vector.broadcast %137 : vector<16x1xf32> to vector<16x16xf32>
    %139 = arith.mulf %134, %138 : vector<16x16xf32>
    %140 = arith.truncf %139 : vector<16x16xf32> to vector<16x16xbf16>
    %141 = arith.truncf %125 : vector<16x16xf32> to vector<16x16xbf16>
    %cst_49 = arith.constant dense<0.000000e+00> : vector<16x16xf32>
    %142 = tpu.matmul %140, %141, %cst_49 {dimension_numbers = #tpu.dot_dimension_numbers<[1], [0], [0], [1], [0, 0, 1, 1], [], []>} : vector<16x16xbf16>, vector<16x16xbf16>, vector<16x16xf32> -> vector<16x16xf32>
    %143 = arith.truncf %142 : vector<16x16xf32> to vector<16x16xbf16>
    %144 = arith.truncf %107 : vector<16x32xf32> to vector<16x32xbf16>
    %cst_50 = arith.constant dense<0.000000e+00> : vector<16x32xf32>
    %145 = tpu.matmul %143, %144, %cst_50 {dimension_numbers = #tpu.dot_dimension_numbers<[1], [0], [0], [1], [0, 0, 1, 1], [], []>} : vector<16x16xbf16>, vector<16x32xbf16>, vector<16x32xf32> -> vector<16x32xf32>
    %146 = arith.addf %103, %145 : vector<16x32xf32>
    %c154 = arith.constant 154 : index
    %c0_51 = arith.constant 0 : index
    %147 = vector.load %arg2[%c154, %c0_51] : memref<848x128xf32, #tpu.memory_space<vmem>>, vector<1x32xf32>
    %148 = vector.broadcast %147 : vector<1x32xf32> to vector<16x32xf32>
    %149 = arith.addf %146, %148 : vector<16x32xf32>
    %150 = arith.addf %45, %149 : vector<16x32xf32>
    %c155 = arith.constant 155 : index
    %c0_52 = arith.constant 0 : index
    %151 = vector.load %arg2[%c155, %c0_52] : memref<848x128xf32, #tpu.memory_space<vmem>>, vector<1x32xf32>
    %c156 = arith.constant 156 : index
    %c0_53 = arith.constant 0 : index
    %152 = vector.load %arg2[%c156, %c0_53] : memref<848x128xf32, #tpu.memory_space<vmem>>, vector<1x32xf32>
    %cst_54 = arith.constant dense<0.000000e+00> : vector<16xf32>
    %153 = vector.multi_reduction <add>, %150, %cst_54 [1] : vector<16x32xf32> to vector<16xf32>
    %154 = vector.shape_cast %153 : vector<16xf32> to vector<16x1xf32>
    %155 = arith.mulf %150, %150 : vector<16x32xf32>
    %cst_55 = arith.constant dense<0.000000e+00> : vector<16xf32>
    %156 = vector.multi_reduction <add>, %155, %cst_55 [1] : vector<16x32xf32> to vector<16xf32>
    %157 = vector.shape_cast %156 : vector<16xf32> to vector<16x1xf32>
    %cst_56 = arith.constant 3.125000e-02 : f32
    %158 = vector.broadcast %cst_56 : f32 to vector<16x1xf32>
    %159 = arith.mulf %154, %158 : vector<16x1xf32>
    %cst_57 = arith.constant 3.125000e-02 : f32
    %160 = vector.broadcast %cst_57 : f32 to vector<16x1xf32>
    %161 = arith.mulf %157, %160 : vector<16x1xf32>
    %162 = arith.mulf %159, %159 : vector<16x1xf32>
    %163 = arith.subf %161, %162 : vector<16x1xf32>
    %cst_58 = arith.constant 0.000000e+00 : f32
    %164 = vector.broadcast %cst_58 : f32 to vector<16x1xf32>
    %165 = arith.maximumf %163, %164 : vector<16x1xf32>
    %166 = vector.broadcast %159 : vector<16x1xf32> to vector<16x32xf32>
    %167 = arith.subf %150, %166 : vector<16x32xf32>
    %cst_59 = arith.constant 9.99999996E-13 : f32
    %168 = vector.broadcast %cst_59 : f32 to vector<16x1xf32>
    %169 = arith.addf %165, %168 : vector<16x1xf32>
    %170 = math.rsqrt %169 : vector<16x1xf32>
    %171 = vector.broadcast %170 : vector<16x1xf32> to vector<16x32xf32>
    %172 = arith.mulf %167, %171 : vector<16x32xf32>
    %173 = vector.broadcast %151 : vector<1x32xf32> to vector<16x32xf32>
    %174 = arith.mulf %172, %173 : vector<16x32xf32>
    %175 = vector.broadcast %152 : vector<1x32xf32> to vector<16x32xf32>
    %176 = arith.addf %174, %175 : vector<16x32xf32>
    %c400 = arith.constant 400 : index
    %c0_60 = arith.constant 0 : index
    %177 = vector.load %arg2[%c400, %c0_60] : memref<848x128xf32, #tpu.memory_space<vmem>>, vector<32x64xf32>
    %178 = arith.truncf %176 : vector<16x32xf32> to vector<16x32xbf16>
    %179 = arith.truncf %177 : vector<32x64xf32> to vector<32x64xbf16>
    %cst_61 = arith.constant dense<0.000000e+00> : vector<16x64xf32>
    %180 = tpu.matmul %178, %179, %cst_61 {dimension_numbers = #tpu.dot_dimension_numbers<[1], [0], [0], [1], [0, 0, 1, 1], [], []>} : vector<16x32xbf16>, vector<32x64xbf16>, vector<16x64xf32> -> vector<16x64xf32>
    %c157 = arith.constant 157 : index
    %c0_62 = arith.constant 0 : index
    %181 = vector.load %arg2[%c157, %c0_62] : memref<848x128xf32, #tpu.memory_space<vmem>>, vector<1x64xf32>
    %182 = vector.broadcast %181 : vector<1x64xf32> to vector<16x64xf32>
    %183 = arith.addf %180, %182 : vector<16x64xf32>
    %184 = arith.mulf %183, %183 : vector<16x64xf32>
    %185 = arith.mulf %183, %184 : vector<16x64xf32>
    %cst_63 = arith.constant 4.471500e-02 : f32
    %186 = vector.broadcast %cst_63 : f32 to vector<16x64xf32>
    %187 = arith.mulf %186, %185 : vector<16x64xf32>
    %188 = arith.addf %183, %187 : vector<16x64xf32>
    %cst_64 = arith.constant 0.797884583 : f32
    %189 = vector.broadcast %cst_64 : f32 to vector<16x64xf32>
    %190 = arith.mulf %189, %188 : vector<16x64xf32>
    %191 = math.tanh %190 : vector<16x64xf32>
    %cst_65 = arith.constant 1.000000e+00 : f32
    %192 = vector.broadcast %cst_65 : f32 to vector<16x64xf32>
    %193 = arith.addf %192, %191 : vector<16x64xf32>
    %cst_66 = arith.constant 5.000000e-01 : f32
    %194 = vector.broadcast %cst_66 : f32 to vector<16x64xf32>
    %195 = arith.mulf %194, %193 : vector<16x64xf32>
    %196 = arith.mulf %183, %195 : vector<16x64xf32>
    %c432 = arith.constant 432 : index
    %c0_67 = arith.constant 0 : index
    %197 = vector.load %arg2[%c432, %c0_67] : memref<848x128xf32, #tpu.memory_space<vmem>>, vector<64x32xf32>
    %198 = arith.truncf %196 : vector<16x64xf32> to vector<16x64xbf16>
    %199 = arith.truncf %197 : vector<64x32xf32> to vector<64x32xbf16>
    %cst_68 = arith.constant dense<0.000000e+00> : vector<16x32xf32>
    %200 = tpu.matmul %198, %199, %cst_68 {dimension_numbers = #tpu.dot_dimension_numbers<[1], [0], [0], [1], [0, 0, 1, 1], [], []>} : vector<16x64xbf16>, vector<64x32xbf16>, vector<16x32xf32> -> vector<16x32xf32>
    %c158 = arith.constant 158 : index
    %c0_69 = arith.constant 0 : index
    %201 = vector.load %arg2[%c158, %c0_69] : memref<848x128xf32, #tpu.memory_space<vmem>>, vector<1x32xf32>
    %202 = vector.broadcast %201 : vector<1x32xf32> to vector<16x32xf32>
    %203 = arith.addf %200, %202 : vector<16x32xf32>
    %204 = arith.addf %176, %203 : vector<16x32xf32>
    %c159 = arith.constant 159 : index
    %c0_70 = arith.constant 0 : index
    %205 = vector.load %arg2[%c159, %c0_70] : memref<848x128xf32, #tpu.memory_space<vmem>>, vector<1x32xf32>
    %c160 = arith.constant 160 : index
    %c0_71 = arith.constant 0 : index
    %206 = vector.load %arg2[%c160, %c0_71] : memref<848x128xf32, #tpu.memory_space<vmem>>, vector<1x32xf32>
    %cst_72 = arith.constant dense<0.000000e+00> : vector<16xf32>
    %207 = vector.multi_reduction <add>, %204, %cst_72 [1] : vector<16x32xf32> to vector<16xf32>
    %208 = vector.shape_cast %207 : vector<16xf32> to vector<16x1xf32>
    %209 = arith.mulf %204, %204 : vector<16x32xf32>
    %cst_73 = arith.constant dense<0.000000e+00> : vector<16xf32>
    %210 = vector.multi_reduction <add>, %209, %cst_73 [1] : vector<16x32xf32> to vector<16xf32>
    %211 = vector.shape_cast %210 : vector<16xf32> to vector<16x1xf32>
    %cst_74 = arith.constant 3.125000e-02 : f32
    %212 = vector.broadcast %cst_74 : f32 to vector<16x1xf32>
    %213 = arith.mulf %208, %212 : vector<16x1xf32>
    %cst_75 = arith.constant 3.125000e-02 : f32
    %214 = vector.broadcast %cst_75 : f32 to vector<16x1xf32>
    %215 = arith.mulf %211, %214 : vector<16x1xf32>
    %216 = arith.mulf %213, %213 : vector<16x1xf32>
    %217 = arith.subf %215, %216 : vector<16x1xf32>
    %cst_76 = arith.constant 0.000000e+00 : f32
    %218 = vector.broadcast %cst_76 : f32 to vector<16x1xf32>
    %219 = arith.maximumf %217, %218 : vector<16x1xf32>
    %220 = vector.broadcast %213 : vector<16x1xf32> to vector<16x32xf32>
    %221 = arith.subf %204, %220 : vector<16x32xf32>
    %cst_77 = arith.constant 9.99999996E-13 : f32
    %222 = vector.broadcast %cst_77 : f32 to vector<16x1xf32>
    %223 = arith.addf %219, %222 : vector<16x1xf32>
    %224 = math.rsqrt %223 : vector<16x1xf32>
    %225 = vector.broadcast %224 : vector<16x1xf32> to vector<16x32xf32>
    %226 = arith.mulf %221, %225 : vector<16x32xf32>
    %227 = vector.broadcast %205 : vector<1x32xf32> to vector<16x32xf32>
    %228 = arith.mulf %226, %227 : vector<16x32xf32>
    %229 = vector.broadcast %206 : vector<1x32xf32> to vector<16x32xf32>
    %230 = arith.addf %228, %229 : vector<16x32xf32>
    %cst_78 = arith.constant 0.000000e+00 : f32
    %231 = vector.broadcast %cst_78 : f32 to vector<16x32xf32>
    %c496 = arith.constant 496 : index
    %c0_79 = arith.constant 0 : index
    %232 = vector.load %arg2[%c496, %c0_79] : memref<848x128xf32, #tpu.memory_space<vmem>>, vector<32x16xf32>
    %c560 = arith.constant 560 : index
    %c0_80 = arith.constant 0 : index
    %233 = vector.load %arg2[%c560, %c0_80] : memref<848x128xf32, #tpu.memory_space<vmem>>, vector<32x16xf32>
    %c624 = arith.constant 624 : index
    %c0_81 = arith.constant 0 : index
    %234 = vector.load %arg2[%c624, %c0_81] : memref<848x128xf32, #tpu.memory_space<vmem>>, vector<32x16xf32>
    %c688 = arith.constant 688 : index
    %c0_82 = arith.constant 0 : index
    %235 = vector.load %arg2[%c688, %c0_82] : memref<848x128xf32, #tpu.memory_space<vmem>>, vector<16x32xf32>
    %236 = arith.truncf %230 : vector<16x32xf32> to vector<16x32xbf16>
    %237 = arith.truncf %232 : vector<32x16xf32> to vector<32x16xbf16>
    %cst_83 = arith.constant dense<0.000000e+00> : vector<16x16xf32>
    %238 = tpu.matmul %236, %237, %cst_83 {dimension_numbers = #tpu.dot_dimension_numbers<[1], [0], [0], [1], [0, 0, 1, 1], [], []>} : vector<16x32xbf16>, vector<32x16xbf16>, vector<16x16xf32> -> vector<16x16xf32>
    %c161 = arith.constant 161 : index
    %c0_84 = arith.constant 0 : index
    %239 = vector.load %arg2[%c161, %c0_84] : memref<848x128xf32, #tpu.memory_space<vmem>>, vector<1x16xf32>
    %240 = vector.broadcast %239 : vector<1x16xf32> to vector<16x16xf32>
    %241 = arith.addf %238, %240 : vector<16x16xf32>
    %242 = arith.truncf %230 : vector<16x32xf32> to vector<16x32xbf16>
    %243 = arith.truncf %233 : vector<32x16xf32> to vector<32x16xbf16>
    %cst_85 = arith.constant dense<0.000000e+00> : vector<16x16xf32>
    %244 = tpu.matmul %242, %243, %cst_85 {dimension_numbers = #tpu.dot_dimension_numbers<[1], [0], [0], [1], [0, 0, 1, 1], [], []>} : vector<16x32xbf16>, vector<32x16xbf16>, vector<16x16xf32> -> vector<16x16xf32>
    %c163 = arith.constant 163 : index
    %c0_86 = arith.constant 0 : index
    %245 = vector.load %arg2[%c163, %c0_86] : memref<848x128xf32, #tpu.memory_space<vmem>>, vector<1x16xf32>
    %246 = vector.broadcast %245 : vector<1x16xf32> to vector<16x16xf32>
    %247 = arith.addf %244, %246 : vector<16x16xf32>
    %248 = arith.truncf %230 : vector<16x32xf32> to vector<16x32xbf16>
    %249 = arith.truncf %234 : vector<32x16xf32> to vector<32x16xbf16>
    %cst_87 = arith.constant dense<0.000000e+00> : vector<16x16xf32>
    %250 = tpu.matmul %248, %249, %cst_87 {dimension_numbers = #tpu.dot_dimension_numbers<[1], [0], [0], [1], [0, 0, 1, 1], [], []>} : vector<16x32xbf16>, vector<32x16xbf16>, vector<16x16xf32> -> vector<16x16xf32>
    %c165 = arith.constant 165 : index
    %c0_88 = arith.constant 0 : index
    %251 = vector.load %arg2[%c165, %c0_88] : memref<848x128xf32, #tpu.memory_space<vmem>>, vector<1x16xf32>
    %252 = vector.broadcast %251 : vector<1x16xf32> to vector<16x16xf32>
    %253 = arith.addf %250, %252 : vector<16x16xf32>
    %254 = arith.truncf %241 : vector<16x16xf32> to vector<16x16xbf16>
    %255 = arith.truncf %247 : vector<16x16xf32> to vector<16x16xbf16>
    %cst_89 = arith.constant dense<0.000000e+00> : vector<16x16xf32>
    %256 = tpu.matmul %254, %255, %cst_89 {dimension_numbers = #tpu.dot_dimension_numbers<[1], [1], [0], [0], [0, 0, 1, 0], [], []>} : vector<16x16xbf16>, vector<16x16xbf16>, vector<16x16xf32> -> vector<16x16xf32>
    %257 = arith.addf %256, %59 : vector<16x16xf32>
    %cst_90 = arith.constant dense<0xFF800000> : vector<16xf32>
    %258 = vector.multi_reduction <maximumf>, %257, %cst_90 [1] : vector<16x16xf32> to vector<16xf32>
    %259 = vector.shape_cast %258 : vector<16xf32> to vector<16x1xf32>
    %260 = vector.broadcast %259 : vector<16x1xf32> to vector<16x16xf32>
    %261 = arith.subf %257, %260 : vector<16x16xf32>
    %262 = math.exp %261 : vector<16x16xf32>
    %cst_91 = arith.constant dense<0.000000e+00> : vector<16xf32>
    %263 = vector.multi_reduction <add>, %262, %cst_91 [1] : vector<16x16xf32> to vector<16xf32>
    %264 = vector.shape_cast %263 : vector<16xf32> to vector<16x1xf32>
    %265 = tpu.reciprocal %264 {approx = true} : vector<16x1xf32> -> vector<16x1xf32>
    %266 = vector.broadcast %265 : vector<16x1xf32> to vector<16x16xf32>
    %267 = arith.mulf %262, %266 : vector<16x16xf32>
    %268 = arith.truncf %267 : vector<16x16xf32> to vector<16x16xbf16>
    %269 = arith.truncf %253 : vector<16x16xf32> to vector<16x16xbf16>
    %cst_92 = arith.constant dense<0.000000e+00> : vector<16x16xf32>
    %270 = tpu.matmul %268, %269, %cst_92 {dimension_numbers = #tpu.dot_dimension_numbers<[1], [0], [0], [1], [0, 0, 1, 1], [], []>} : vector<16x16xbf16>, vector<16x16xbf16>, vector<16x16xf32> -> vector<16x16xf32>
    %271 = arith.truncf %270 : vector<16x16xf32> to vector<16x16xbf16>
    %272 = arith.truncf %235 : vector<16x32xf32> to vector<16x32xbf16>
    %cst_93 = arith.constant dense<0.000000e+00> : vector<16x32xf32>
    %273 = tpu.matmul %271, %272, %cst_93 {dimension_numbers = #tpu.dot_dimension_numbers<[1], [0], [0], [1], [0, 0, 1, 1], [], []>} : vector<16x16xbf16>, vector<16x32xbf16>, vector<16x32xf32> -> vector<16x32xf32>
    %274 = arith.addf %231, %273 : vector<16x32xf32>
    %c528 = arith.constant 528 : index
    %c0_94 = arith.constant 0 : index
    %275 = vector.load %arg2[%c528, %c0_94] : memref<848x128xf32, #tpu.memory_space<vmem>>, vector<32x16xf32>
    %c592 = arith.constant 592 : index
    %c0_95 = arith.constant 0 : index
    %276 = vector.load %arg2[%c592, %c0_95] : memref<848x128xf32, #tpu.memory_space<vmem>>, vector<32x16xf32>
    %c656 = arith.constant 656 : index
    %c0_96 = arith.constant 0 : index
    %277 = vector.load %arg2[%c656, %c0_96] : memref<848x128xf32, #tpu.memory_space<vmem>>, vector<32x16xf32>
    %c704 = arith.constant 704 : index
    %c0_97 = arith.constant 0 : index
    %278 = vector.load %arg2[%c704, %c0_97] : memref<848x128xf32, #tpu.memory_space<vmem>>, vector<16x32xf32>
    %279 = arith.truncf %230 : vector<16x32xf32> to vector<16x32xbf16>
    %280 = arith.truncf %275 : vector<32x16xf32> to vector<32x16xbf16>
    %cst_98 = arith.constant dense<0.000000e+00> : vector<16x16xf32>
    %281 = tpu.matmul %279, %280, %cst_98 {dimension_numbers = #tpu.dot_dimension_numbers<[1], [0], [0], [1], [0, 0, 1, 1], [], []>} : vector<16x32xbf16>, vector<32x16xbf16>, vector<16x16xf32> -> vector<16x16xf32>
    %c162 = arith.constant 162 : index
    %c0_99 = arith.constant 0 : index
    %282 = vector.load %arg2[%c162, %c0_99] : memref<848x128xf32, #tpu.memory_space<vmem>>, vector<1x16xf32>
    %283 = vector.broadcast %282 : vector<1x16xf32> to vector<16x16xf32>
    %284 = arith.addf %281, %283 : vector<16x16xf32>
    %285 = arith.truncf %230 : vector<16x32xf32> to vector<16x32xbf16>
    %286 = arith.truncf %276 : vector<32x16xf32> to vector<32x16xbf16>
    %cst_100 = arith.constant dense<0.000000e+00> : vector<16x16xf32>
    %287 = tpu.matmul %285, %286, %cst_100 {dimension_numbers = #tpu.dot_dimension_numbers<[1], [0], [0], [1], [0, 0, 1, 1], [], []>} : vector<16x32xbf16>, vector<32x16xbf16>, vector<16x16xf32> -> vector<16x16xf32>
    %c164 = arith.constant 164 : index
    %c0_101 = arith.constant 0 : index
    %288 = vector.load %arg2[%c164, %c0_101] : memref<848x128xf32, #tpu.memory_space<vmem>>, vector<1x16xf32>
    %289 = vector.broadcast %288 : vector<1x16xf32> to vector<16x16xf32>
    %290 = arith.addf %287, %289 : vector<16x16xf32>
    %291 = arith.truncf %230 : vector<16x32xf32> to vector<16x32xbf16>
    %292 = arith.truncf %277 : vector<32x16xf32> to vector<32x16xbf16>
    %cst_102 = arith.constant dense<0.000000e+00> : vector<16x16xf32>
    %293 = tpu.matmul %291, %292, %cst_102 {dimension_numbers = #tpu.dot_dimension_numbers<[1], [0], [0], [1], [0, 0, 1, 1], [], []>} : vector<16x32xbf16>, vector<32x16xbf16>, vector<16x16xf32> -> vector<16x16xf32>
    %c166 = arith.constant 166 : index
    %c0_103 = arith.constant 0 : index
    %294 = vector.load %arg2[%c166, %c0_103] : memref<848x128xf32, #tpu.memory_space<vmem>>, vector<1x16xf32>
    %295 = vector.broadcast %294 : vector<1x16xf32> to vector<16x16xf32>
    %296 = arith.addf %293, %295 : vector<16x16xf32>
    %297 = arith.truncf %284 : vector<16x16xf32> to vector<16x16xbf16>
    %298 = arith.truncf %290 : vector<16x16xf32> to vector<16x16xbf16>
    %cst_104 = arith.constant dense<0.000000e+00> : vector<16x16xf32>
    %299 = tpu.matmul %297, %298, %cst_104 {dimension_numbers = #tpu.dot_dimension_numbers<[1], [1], [0], [0], [0, 0, 1, 0], [], []>} : vector<16x16xbf16>, vector<16x16xbf16>, vector<16x16xf32> -> vector<16x16xf32>
    %300 = arith.addf %299, %59 : vector<16x16xf32>
    %cst_105 = arith.constant dense<0xFF800000> : vector<16xf32>
    %301 = vector.multi_reduction <maximumf>, %300, %cst_105 [1] : vector<16x16xf32> to vector<16xf32>
    %302 = vector.shape_cast %301 : vector<16xf32> to vector<16x1xf32>
    %303 = vector.broadcast %302 : vector<16x1xf32> to vector<16x16xf32>
    %304 = arith.subf %300, %303 : vector<16x16xf32>
    %305 = math.exp %304 : vector<16x16xf32>
    %cst_106 = arith.constant dense<0.000000e+00> : vector<16xf32>
    %306 = vector.multi_reduction <add>, %305, %cst_106 [1] : vector<16x16xf32> to vector<16xf32>
    %307 = vector.shape_cast %306 : vector<16xf32> to vector<16x1xf32>
    %308 = tpu.reciprocal %307 {approx = true} : vector<16x1xf32> -> vector<16x1xf32>
    %309 = vector.broadcast %308 : vector<16x1xf32> to vector<16x16xf32>
    %310 = arith.mulf %305, %309 : vector<16x16xf32>
    %311 = arith.truncf %310 : vector<16x16xf32> to vector<16x16xbf16>
    %312 = arith.truncf %296 : vector<16x16xf32> to vector<16x16xbf16>
    %cst_107 = arith.constant dense<0.000000e+00> : vector<16x16xf32>
    %313 = tpu.matmul %311, %312, %cst_107 {dimension_numbers = #tpu.dot_dimension_numbers<[1], [0], [0], [1], [0, 0, 1, 1], [], []>} : vector<16x16xbf16>, vector<16x16xbf16>, vector<16x16xf32> -> vector<16x16xf32>
    %314 = arith.truncf %313 : vector<16x16xf32> to vector<16x16xbf16>
    %315 = arith.truncf %278 : vector<16x32xf32> to vector<16x32xbf16>
    %cst_108 = arith.constant dense<0.000000e+00> : vector<16x32xf32>
    %316 = tpu.matmul %314, %315, %cst_108 {dimension_numbers = #tpu.dot_dimension_numbers<[1], [0], [0], [1], [0, 0, 1, 1], [], []>} : vector<16x16xbf16>, vector<16x32xbf16>, vector<16x32xf32> -> vector<16x32xf32>
    %317 = arith.addf %274, %316 : vector<16x32xf32>
    %c167 = arith.constant 167 : index
    %c0_109 = arith.constant 0 : index
    %318 = vector.load %arg2[%c167, %c0_109] : memref<848x128xf32, #tpu.memory_space<vmem>>, vector<1x32xf32>
    %319 = vector.broadcast %318 : vector<1x32xf32> to vector<16x32xf32>
    %320 = arith.addf %317, %319 : vector<16x32xf32>
    %321 = arith.addf %230, %320 : vector<16x32xf32>
    %c168 = arith.constant 168 : index
    %c0_110 = arith.constant 0 : index
    %322 = vector.load %arg2[%c168, %c0_110] : memref<848x128xf32, #tpu.memory_space<vmem>>, vector<1x32xf32>
    %c169 = arith.constant 169 : index
    %c0_111 = arith.constant 0 : index
    %323 = vector.load %arg2[%c169, %c0_111] : memref<848x128xf32, #tpu.memory_space<vmem>>, vector<1x32xf32>
    %cst_112 = arith.constant dense<0.000000e+00> : vector<16xf32>
    %324 = vector.multi_reduction <add>, %321, %cst_112 [1] : vector<16x32xf32> to vector<16xf32>
    %325 = vector.shape_cast %324 : vector<16xf32> to vector<16x1xf32>
    %326 = arith.mulf %321, %321 : vector<16x32xf32>
    %cst_113 = arith.constant dense<0.000000e+00> : vector<16xf32>
    %327 = vector.multi_reduction <add>, %326, %cst_113 [1] : vector<16x32xf32> to vector<16xf32>
    %328 = vector.shape_cast %327 : vector<16xf32> to vector<16x1xf32>
    %cst_114 = arith.constant 3.125000e-02 : f32
    %329 = vector.broadcast %cst_114 : f32 to vector<16x1xf32>
    %330 = arith.mulf %325, %329 : vector<16x1xf32>
    %cst_115 = arith.constant 3.125000e-02 : f32
    %331 = vector.broadcast %cst_115 : f32 to vector<16x1xf32>
    %332 = arith.mulf %328, %331 : vector<16x1xf32>
    %333 = arith.mulf %330, %330 : vector<16x1xf32>
    %334 = arith.subf %332, %333 : vector<16x1xf32>
    %cst_116 = arith.constant 0.000000e+00 : f32
    %335 = vector.broadcast %cst_116 : f32 to vector<16x1xf32>
    %336 = arith.maximumf %334, %335 : vector<16x1xf32>
    %337 = vector.broadcast %330 : vector<16x1xf32> to vector<16x32xf32>
    %338 = arith.subf %321, %337 : vector<16x32xf32>
    %cst_117 = arith.constant 9.99999996E-13 : f32
    %339 = vector.broadcast %cst_117 : f32 to vector<16x1xf32>
    %340 = arith.addf %336, %339 : vector<16x1xf32>
    %341 = math.rsqrt %340 : vector<16x1xf32>
    %342 = vector.broadcast %341 : vector<16x1xf32> to vector<16x32xf32>
    %343 = arith.mulf %338, %342 : vector<16x32xf32>
    %344 = vector.broadcast %322 : vector<1x32xf32> to vector<16x32xf32>
    %345 = arith.mulf %343, %344 : vector<16x32xf32>
    %346 = vector.broadcast %323 : vector<1x32xf32> to vector<16x32xf32>
    %347 = arith.addf %345, %346 : vector<16x32xf32>
    %c720 = arith.constant 720 : index
    %c0_118 = arith.constant 0 : index
    %348 = vector.load %arg2[%c720, %c0_118] : memref<848x128xf32, #tpu.memory_space<vmem>>, vector<32x64xf32>
    %349 = arith.truncf %347 : vector<16x32xf32> to vector<16x32xbf16>
    %350 = arith.truncf %348 : vector<32x64xf32> to vector<32x64xbf16>
    %cst_119 = arith.constant dense<0.000000e+00> : vector<16x64xf32>
    %351 = tpu.matmul %349, %350, %cst_119 {dimension_numbers = #tpu.dot_dimension_numbers<[1], [0], [0], [1], [0, 0, 1, 1], [], []>} : vector<16x32xbf16>, vector<32x64xbf16>, vector<16x64xf32> -> vector<16x64xf32>
    %c170 = arith.constant 170 : index
    %c0_120 = arith.constant 0 : index
    %352 = vector.load %arg2[%c170, %c0_120] : memref<848x128xf32, #tpu.memory_space<vmem>>, vector<1x64xf32>
    %353 = vector.broadcast %352 : vector<1x64xf32> to vector<16x64xf32>
    %354 = arith.addf %351, %353 : vector<16x64xf32>
    %355 = arith.mulf %354, %354 : vector<16x64xf32>
    %356 = arith.mulf %354, %355 : vector<16x64xf32>
    %cst_121 = arith.constant 4.471500e-02 : f32
    %357 = vector.broadcast %cst_121 : f32 to vector<16x64xf32>
    %358 = arith.mulf %357, %356 : vector<16x64xf32>
    %359 = arith.addf %354, %358 : vector<16x64xf32>
    %cst_122 = arith.constant 0.797884583 : f32
    %360 = vector.broadcast %cst_122 : f32 to vector<16x64xf32>
    %361 = arith.mulf %360, %359 : vector<16x64xf32>
    %362 = math.tanh %361 : vector<16x64xf32>
    %cst_123 = arith.constant 1.000000e+00 : f32
    %363 = vector.broadcast %cst_123 : f32 to vector<16x64xf32>
    %364 = arith.addf %363, %362 : vector<16x64xf32>
    %cst_124 = arith.constant 5.000000e-01 : f32
    %365 = vector.broadcast %cst_124 : f32 to vector<16x64xf32>
    %366 = arith.mulf %365, %364 : vector<16x64xf32>
    %367 = arith.mulf %354, %366 : vector<16x64xf32>
    %c752 = arith.constant 752 : index
    %c0_125 = arith.constant 0 : index
    %368 = vector.load %arg2[%c752, %c0_125] : memref<848x128xf32, #tpu.memory_space<vmem>>, vector<64x32xf32>
    %369 = arith.truncf %367 : vector<16x64xf32> to vector<16x64xbf16>
    %370 = arith.truncf %368 : vector<64x32xf32> to vector<64x32xbf16>
    %cst_126 = arith.constant dense<0.000000e+00> : vector<16x32xf32>
    %371 = tpu.matmul %369, %370, %cst_126 {dimension_numbers = #tpu.dot_dimension_numbers<[1], [0], [0], [1], [0, 0, 1, 1], [], []>} : vector<16x64xbf16>, vector<64x32xbf16>, vector<16x32xf32> -> vector<16x32xf32>
    %c171 = arith.constant 171 : index
    %c0_127 = arith.constant 0 : index
    %372 = vector.load %arg2[%c171, %c0_127] : memref<848x128xf32, #tpu.memory_space<vmem>>, vector<1x32xf32>
    %373 = vector.broadcast %372 : vector<1x32xf32> to vector<16x32xf32>
    %374 = arith.addf %371, %373 : vector<16x32xf32>
    %375 = arith.addf %347, %374 : vector<16x32xf32>
    %c172 = arith.constant 172 : index
    %c0_128 = arith.constant 0 : index
    %376 = vector.load %arg2[%c172, %c0_128] : memref<848x128xf32, #tpu.memory_space<vmem>>, vector<1x32xf32>
    %c173 = arith.constant 173 : index
    %c0_129 = arith.constant 0 : index
    %377 = vector.load %arg2[%c173, %c0_129] : memref<848x128xf32, #tpu.memory_space<vmem>>, vector<1x32xf32>
    %cst_130 = arith.constant dense<0.000000e+00> : vector<16xf32>
    %378 = vector.multi_reduction <add>, %375, %cst_130 [1] : vector<16x32xf32> to vector<16xf32>
    %379 = vector.shape_cast %378 : vector<16xf32> to vector<16x1xf32>
    %380 = arith.mulf %375, %375 : vector<16x32xf32>
    %cst_131 = arith.constant dense<0.000000e+00> : vector<16xf32>
    %381 = vector.multi_reduction <add>, %380, %cst_131 [1] : vector<16x32xf32> to vector<16xf32>
    %382 = vector.shape_cast %381 : vector<16xf32> to vector<16x1xf32>
    %cst_132 = arith.constant 3.125000e-02 : f32
    %383 = vector.broadcast %cst_132 : f32 to vector<16x1xf32>
    %384 = arith.mulf %379, %383 : vector<16x1xf32>
    %cst_133 = arith.constant 3.125000e-02 : f32
    %385 = vector.broadcast %cst_133 : f32 to vector<16x1xf32>
    %386 = arith.mulf %382, %385 : vector<16x1xf32>
    %387 = arith.mulf %384, %384 : vector<16x1xf32>
    %388 = arith.subf %386, %387 : vector<16x1xf32>
    %cst_134 = arith.constant 0.000000e+00 : f32
    %389 = vector.broadcast %cst_134 : f32 to vector<16x1xf32>
    %390 = arith.maximumf %388, %389 : vector<16x1xf32>
    %391 = vector.broadcast %384 : vector<16x1xf32> to vector<16x32xf32>
    %392 = arith.subf %375, %391 : vector<16x32xf32>
    %cst_135 = arith.constant 9.99999996E-13 : f32
    %393 = vector.broadcast %cst_135 : f32 to vector<16x1xf32>
    %394 = arith.addf %390, %393 : vector<16x1xf32>
    %395 = math.rsqrt %394 : vector<16x1xf32>
    %396 = vector.broadcast %395 : vector<16x1xf32> to vector<16x32xf32>
    %397 = arith.mulf %392, %396 : vector<16x32xf32>
    %398 = vector.broadcast %376 : vector<1x32xf32> to vector<16x32xf32>
    %399 = arith.mulf %397, %398 : vector<16x32xf32>
    %400 = vector.broadcast %377 : vector<1x32xf32> to vector<16x32xf32>
    %401 = arith.addf %399, %400 : vector<16x32xf32>
    %c816 = arith.constant 816 : index
    %c0_136 = arith.constant 0 : index
    %402 = vector.load %arg2[%c816, %c0_136] : memref<848x128xf32, #tpu.memory_space<vmem>>, vector<32x128xf32>
    %403 = arith.truncf %401 : vector<16x32xf32> to vector<16x32xbf16>
    %404 = arith.truncf %402 : vector<32x128xf32> to vector<32x128xbf16>
    %cst_137 = arith.constant dense<0.000000e+00> : vector<16x128xf32>
    %405 = tpu.matmul %403, %404, %cst_137 {dimension_numbers = #tpu.dot_dimension_numbers<[1], [0], [0], [1], [0, 0, 1, 1], [], []>} : vector<16x32xbf16>, vector<32x128xbf16>, vector<16x128xf32> -> vector<16x128xf32>
    %c147 = arith.constant 147 : index
    %c0_138 = arith.constant 0 : index
    %406 = vector.load %arg2[%c147, %c0_138] : memref<848x128xf32, #tpu.memory_space<vmem>>, vector<1x128xf32>
    %407 = vector.broadcast %406 : vector<1x128xf32> to vector<16x128xf32>
    %408 = arith.addf %405, %407 : vector<16x128xf32>
    %c0_139 = arith.constant 0 : index
    %c0_140 = arith.constant 0 : index
    %409 = vector.load %arg3[%c0_139, %c0_140] : memref<17x128xf32, #tpu.memory_space<vmem>>, vector<16x128xf32>
    tpu.vector_store %arg3[%c0_139, %c0_140], %408 {strides = array<i32>} : memref<17x128xf32, #tpu.memory_space<vmem>>, vector<16x128xf32>,
    %c0_141 = arith.constant 0 : index
    %c2 = arith.constant 2 : index
    %410 = vector.load %arg0[%c0_141, %c2] : memref<16x3xi32, #tpu.memory_space<vmem>>, vector<16x1xi32>
    %cst_142 = arith.constant dense<0xFF800000> : vector<16xf32>
    %411 = vector.multi_reduction <maximumf>, %408, %cst_142 [1] : vector<16x128xf32> to vector<16xf32>
    %412 = vector.shape_cast %411 : vector<16xf32> to vector<16x1xf32>
    %413 = vector.broadcast %412 : vector<16x1xf32> to vector<16x128xf32>
    %414 = arith.subf %408, %413 : vector<16x128xf32>
    %415 = math.exp %414 : vector<16x128xf32>
    %cst_143 = arith.constant dense<0.000000e+00> : vector<16xf32>
    %416 = vector.multi_reduction <add>, %415, %cst_143 [1] : vector<16x128xf32> to vector<16xf32>
    %417 = vector.shape_cast %416 : vector<16xf32> to vector<16x1xf32>
    %418 = math.log %417 : vector<16x1xf32>
    %419 = arith.addf %418, %412 : vector<16x1xf32>
    %420 = tpu.iota {dimensions = array<i32: 1>} : vector<16x128xi32>
    %421 = vector.broadcast %410 : vector<16x1xi32> to vector<16x128xi32>
    %422 = arith.cmpi eq, %420, %421 : vector<16x128xi32>
    %cst_144 = arith.constant 0.000000e+00 : f32
    %423 = vector.broadcast %cst_144 : f32 to vector<16x128xf32>
    %424 = arith.select %422, %408, %423 : vector<16x128xi1>, vector<16x128xf32>
    %cst_145 = arith.constant dense<0.000000e+00> : vector<16xf32>
    %425 = vector.multi_reduction <add>, %424, %cst_145 [1] : vector<16x128xf32> to vector<16xf32>
    %426 = vector.shape_cast %425 : vector<16xf32> to vector<16x1xf32>
    %c-100_i32 = arith.constant -100 : i32
    %427 = vector.broadcast %c-100_i32 : i32 to vector<16x1xi32>
    %428 = arith.cmpi ne, %410, %427 : vector<16x1xi32>
    %429 = arith.extui %428 : vector<16x1xi1> to vector<16x1xi32>
    %430 = arith.sitofp %429 : vector<16x1xi32> to vector<16x1xf32>
    %431 = arith.subf %419, %426 : vector<16x1xf32>
    %432 = arith.mulf %431, %430 : vector<16x1xf32>
    %433 = vector.shape_cast %430 : vector<16x1xf32> to vector<1x16x1xf32>
    %cst_146 = arith.constant dense<0.000000e+00> : vector<1xf32>
    %434 = vector.multi_reduction <add>, %433, %cst_146 [1, 2] : vector<1x16x1xf32> to vector<1xf32>
    %435 = vector.shape_cast %434 : vector<1xf32> to vector<1x1x1xf32>
    %436 = vector.extract %435[0, 0, 0] : f32 from vector<1x1x1xf32>
    %cst_147 = arith.constant 1.000000e+00 : f32
    %437 = arith.maximumf %436, %cst_147 : f32
    %438 = vector.shape_cast %432 : vector<16x1xf32> to vector<1x16x1xf32>
    %cst_148 = arith.constant dense<0.000000e+00> : vector<1xf32>
    %439 = vector.multi_reduction <add>, %438, %cst_148 [1, 2] : vector<1x16x1xf32> to vector<1xf32>
    %440 = vector.shape_cast %439 : vector<1xf32> to vector<1x1x1xf32>
    %441 = vector.extract %440[0, 0, 0] : f32 from vector<1x1x1xf32>
    %442 = arith.divf %441, %437 : f32
    %443 = vector.broadcast %442 : f32 to vector<1x128xf32>
    %c16 = arith.constant 16 : index
    %c0_149 = arith.constant 0 : index
    %444 = vector.load %arg3[%c16, %c0_149] : memref<17x128xf32, #tpu.memory_space<vmem>>, vector<1x128xf32>
    tpu.vector_store %arg3[%c16, %c0_149], %443 {strides = array<i32>} : memref<17x128xf32, #tpu.memory_space<vmem>>, vector<1x128xf32>,
    return
  }
}

</mosaic_0001>

<llo_original>
// kernel: bert_token_classifier_double.1
$region0: #{bert_token_classifier_double.1}
  #allocation0 [shape = 'u32[]', space=smem, size = 0x4, offset = 0x4, fixed_abs, tag = 'smem constant byte address 0x4 - core index']
  #allocation1 [shape = 'u32[144,128]{1,0:T(1,128)}', space=vmem, size = 0x12000, scoped, tag = 'internal scratch']
  %s0 = inlined_call_operand.vmem [shape: s32[16,3], index: 0, kind: input, shape index: {}]
  %s1 = inlined_call_operand.vmem [shape: f32[1,16], index: 1, kind: input, shape index: {}]
  %s2 = inlined_call_operand.hbm [shape: f32[848,128], index: 2, kind: input, shape index: {}]
  %s3 = inlined_call_operand.vmem [shape: f32[17,128], index: 3, kind: output, shape index: {}]
  %s4 = sld [smem:[#allocation0]]
  $region26: #{bert_token_classifier_double.1} parent=0
    _
  %s6 = ssub.s32 1, %s4
  %s7 = scalar_select 0, %s6, %s4
  $region1: #{bert_token_classifier_double.1} parent=0
    #allocation2 [shape = 'u8[434176]{0}', space=vmem, size = 0x6a000, scoped, tag = 'input window, operand 2, single buffered']
    #allocation3 [shape = 's32[1]{0}', space=sflag, size = 0x4, scoped, tag = 'scoped memory for bert_token_classifier_double.1']
    %8 = vsyncpa [#allocation3], 0
    // Predicated region
    $region2: #{bert_token_classifier_double.1} parent=1 // pred_check
      _
    $region3: #{bert_token_classifier_double.1} parent=1 // pred_check_branch
      %10 = sbr.rel (0) target = $region5
    $region4: #{bert_token_classifier_double.1} parent=1 // pred_region
      _
    $region5: #{bert_token_classifier_double.1} parent=1 // pred_fallthru
      _
    // Predicated region
    $region6: #{bert_token_classifier_double.1} parent=1 // pred_check
      _
    $region7: #{bert_token_classifier_double.1} parent=1 // pred_check_branch
      %12 = sbr.rel (0) target = $region9
    $region8: #{bert_token_classifier_double.1} parent=1 // pred_region
      _
    $region9: #{bert_token_classifier_double.1} parent=1 // pred_fallthru
      _
    // Predicated region
    $region10: #{bert_token_classifier_double.1} parent=1 // pred_check
      _
    $region11: #{bert_token_classifier_double.1} parent=1 // pred_check_branch
      %14 = sbr.rel (0) target = $region13
    $region12: #{bert_token_classifier_double.1} parent=1 // pred_region
      %s16 = ssub.s32 13568, 13568
      %17 = vsyncadd [#allocation3], %s16
      %s18 = sshll.u32 [#allocation2], 4
      %s19 = int_to_ptr.vmem [resolvable:$true] %s18
      %24 = dma.hbm_to_vmem [thread:$0]  %s2, 13568, %s19, [#allocation3], 128, 128, 8
    $region13: #{bert_token_classifier_double.1} parent=1 // pred_fallthru
      _
    // Predicated region
    $region14: #{bert_token_classifier_double.1} parent=1 // pred_check
      _
    $region15: #{bert_token_classifier_double.1} parent=1 // pred_check_branch
      %26 = sbr.rel (0) target = $region17
    $region16: #{bert_token_classifier_double.1} parent=1 // pred_region
      %27 = dma.done [#allocation3], 13568
    $region17: #{bert_token_classifier_double.1} parent=1 // pred_fallthru
      _
    %v29 = vld [vmem:[%s0] sm:$0xff]
    %v30 = vld [vmem:[%s0 + $0x8] sm:$0xff]
    %v31 = vld [vmem:[%s1] sm:$0x1]
    %v32 = vlaneseq
    %v33 = vand.u32 %v32, 127
    %34 = vset.pattern.permute.xlu0 0
    %35 = vperm.xlu0 %34, %v29
    %v36 = vpop.permute.xlu0 %35
    %37 = vset.pattern.permute.xlu0 0
    %38 = vperm.xlu0 %37, %v30
    %v39 = vpop.permute.xlu0 %38
    %vm40 = vcmp.eq.s32.totalorder %v33, %v36
    %vm41 = vcmp.eq.s32.totalorder %v33, %v39
    %v42 = vld [vmem:[#allocation2] sm:$0xff]
    %v43 = vld [vmem:[#allocation2 + $0x8] sm:$0xff]
    %v44 = vld [vmem:[#allocation2 + $0x10] sm:$0xff]
    %v45 = vld [vmem:[#allocation2 + $0x18] sm:$0xff]
    %v46 = vld [vmem:[#allocation2 + $0x20] sm:$0xff]
    %v47 = vld [vmem:[#allocation2 + $0x28] sm:$0xff]
    %v48 = vld [vmem:[#allocation2 + $0x30] sm:$0xff]
    %v49 = vld [vmem:[#allocation2 + $0x38] sm:$0xff]
    %v50 = vld [vmem:[#allocation2 + $0x40] sm:$0xff]
    %v51 = vld [vmem:[#allocation2 + $0x48] sm:$0xff]
    %v52 = vld [vmem:[#allocation2 + $0x50] sm:$0xff]
    %v53 = vld [vmem:[#allocation2 + $0x58] sm:$0xff]
    %v54 = vld [vmem:[#allocation2 + $0x60] sm:$0xff]
    %v55 = vld [vmem:[#allocation2 + $0x68] sm:$0xff]
    %v56 = vld [vmem:[#allocation2 + $0x70] sm:$0xff]
    %v57 = vld [vmem:[#allocation2 + $0x78] sm:$0xff]
    %v58 = vsel %vm40, 1, 0
    %v59 = vsel %vm41, 1, 0
    %v60 = vcvt.s32.f32 %v58
    %v61 = vcvt.s32.f32 %v59
    %v62 = vpack.c.bf16 %v61, %v60
    %v63 = vpack.c.bf16 %v43, %v42
    %v64 = vpack.c.bf16 %v45, %v44
    %v65 = vpack.c.bf16 %v47, %v46
    %v66 = vpack.c.bf16 %v49, %v48
    %v67 = vpack.c.bf16 %v51, %v50
    %v68 = vpack.c.bf16 %v53, %v52
    %v69 = vpack.c.bf16 %v55, %v54
    %v70 = vpack.c.bf16 %v57, %v56
    %v71 = vld [vmem:[#allocation2 + $0x80] sm:$0xff]
    %v72 = vld [vmem:[#allocation2 + $0x88] sm:$0xff]
    %73 = vmatprep.subr.bf16.mxu0 0
    %74 = vmatpush1.bf16.msra.mxu0 %v63
    %75 = vmatprep.subr.bf16.mxu0 0
    %76 = vmatpush1.bf16.msra.mxu0 %v64
    %77 = vmatprep.subr.bf16.mxu0 0
    %78 = vmatpush1.bf16.msra.mxu0 %v65
    %79 = vmatprep.subr.bf16.mxu0 0
    %80 = vmatpush1.bf16.msra.mxu0 %v66
    %81 = vmatprep.subr.bf16.mxu0 0
    %82 = vmatpush1.bf16.msra.mxu0 %v67
    %83 = vmatprep.subr.bf16.mxu0 0
    %84 = vmatpush1.bf16.msra.mxu0 %v68
    %85 = vmatprep.subr.bf16.mxu0 0
    %86 = vmatpush1.bf16.msra.mxu0 %v69
    %87 = vmatprep.subr.bf16.mxu0 0
    %88 = vmatpush1.bf16.msra.mxu0 %v70
    %89 = vmatprep.subr.bf16.mxu0 0
    %90 = vmatpush1.bf16.msra.mxu0 0
    %91 = vmatprep.subr.bf16.mxu0 0
    %92 = vmatpush1.bf16.msra.mxu0 0
    %93 = vmatprep.subr.bf16.mxu0 0
    %94 = vmatpush1.bf16.msra.mxu0 0
    %95 = vmatprep.subr.bf16.mxu0 0
    %96 = vmatpush1.bf16.msra.mxu0 0
    %97 = vmatprep.subr.bf16.mxu0 0
    %98 = vmatpush1.bf16.msra.mxu0 0
    %99 = vmatprep.subr.bf16.mxu0 0
    %100 = vmatpush1.bf16.msra.mxu0 0
    %101 = vmatprep.subr.bf16.mxu0 0
    %102 = vmatpush1.bf16.msra.mxu0 0
    %103 = vmatprep.subr.bf16.mxu0 0
    %104 = vmatpush1.bf16.msra.mxu0 0
    %105 = vmatprep.mubr.bf16.mxu0 0
    %106 = vmatmul.mubr.bf16.gmra.mrb[0].mxu0 %v62
    %v107 = vpop.f32.mrb[0].mxu0
    %v108 = vadd.f32 %v71, %v107
    %v109 = vpop.f32.mrb[0].mxu0
    %v110 = vpop.f32.mrb[0].mxu0
    %v111 = vadd.f32 %v72, %v110
    %v112 = vpop.f32.mrb[0].mxu0
    %113 = vdwg.mxu0
    %v114 = vcvt.s32.f32 %v29
    %v115 = vcvt.s32.f32 %v30
    %v116 = vld [vmem:[#allocation2 + $0x92] sm:$0x1]
    %118 = vset.pattern.permute.xlu0 1
    %119 = vperm.xlu0 %118, %v114
    %v120 = vpop.permute.xlu0 %119
    %123 = vset.pattern.permute.xlu0 1
    %124 = vperm.xlu0 %123, %v115
    %v125 = vpop.permute.xlu0 %124
    %v127 = vlaneseq
    %v128 = vshrl.u32 %v127, 7
    %v129 = vsub.s32 0, %v128
    %v130 = vrot.slane %v116, %v129
    %v131 = vmul.f32 %v120, %v130
    %v132 = vmul.f32 %v125, %v130
    %v133 = vadd.f32 %v108, %v131
    %v134 = vadd.f32 %v111, %v132
    %v135 = vld [vmem:[#allocation2 + $0x90] sm:$0x1]
    %v136 = vld [vmem:[#allocation2 + $0x91] sm:$0x1]
    %vm137 = vcmask 261120
    %v138 = vsel %vm137, %v133, 0.0
    %139 = vadd.xlane.f32.xlu0 %v138
    %v140 = vpop.xlane.xlu0 %139
    %v141 = vsel %vm137, %v134, 0.0
    %142 = vadd.xlane.f32.xlu0 %v141
    %v143 = vpop.xlane.xlu0 %142
    %v144 = vmul.f32 %v133, %v133
    %v145 = vmul.f32 %v134, %v134
    %v146 = vsel %vm137, %v144, 0.0
    %147 = vadd.xlane.f32.xlu0 %v146
    %v148 = vpop.xlane.xlu0 %147
    %v149 = vsel %vm137, %v145, 0.0
    %150 = vadd.xlane.f32.xlu0 %v149
    %v151 = vpop.xlane.xlu0 %150
    %v152 = vmul.f32 %v140, 0.03125
    %v153 = vmul.f32 %v143, 0.03125
    %v154 = vmul.f32 %v148, 0.03125
    %v155 = vmul.f32 %v151, 0.03125
    %v156 = vmul.f32 %v152, %v152
    %v157 = vmul.f32 %v153, %v153
    %v158 = vsub.f32 %v154, %v156
    %v159 = vsub.f32 %v155, %v157
    %v160 = vmax.f32 %v158, 0.0
    %v161 = vmax.f32 %v159, 0.0
    %v162 = vsub.f32 %v133, %v152
    %v163 = vsub.f32 %v134, %v153
    %v164 = vadd.f32 %v160, 1e-12
    %v165 = vadd.f32 %v161, 1e-12
    %v166 = vrsqrt.pop %v164
    %v167 = vrsqrt.pop %v165
    %v168 = vmul.f32 %v162, %v166
    %v169 = vmul.f32 %v163, %v167
    %v170 = vlaneseq
    %v171 = vshrl.u32 %v170, 7
    %v172 = vsub.s32 0, %v171
    %v173 = vrot.slane %v135, %v172
    %v174 = vmul.f32 %v168, %v173
    %v175 = vmul.f32 %v169, %v173
    %v176 = vlaneseq
    %v177 = vshrl.u32 %v176, 7
    %v178 = vsub.s32 0, %v177
    %v179 = vrot.slane %v136, %v178
    %v180 = vadd.f32 %v174, %v179
    %v181 = vadd.f32 %v175, %v179
    %v182 = vlaneseq
    %v183 = vshrl.u32 %v182, 7
    %v184 = vadd.s32 %v183, 8
    %v185 = vand.u32 %v183, 4294967288
    %v186 = vand.u32 %v184, 4294967288
    %v187 = vand.u32 %v33, 4294967288
    %vm188 = vcmp.eq.s32.totalorder %v185, %v187
    %vm189 = vcmp.eq.s32.totalorder %v186, %v187
    %vm190 = vcmp.gt.f32.partialorder %v31, 0.5
    %v191 = vsel %vm190, 1, 0
    %v192 = vlaneseq
    %v193 = vshrl.u32 %v192, 7
    %v194 = vsub.s32 0, %v193
    %v195 = vrot.slane %v191, %v194
    %vm196 = vcmp.eq.s32.totalorder %v195, 1
    %vm197 = vmand %vm188, %vm196
    %vm198 = vmand %vm189, %vm196
    %v199 = vsel %vm197, 0.0, -1e+09
    %v200 = vsel %vm198, 0.0, -1e+09
    %v201 = vld [vmem:[#allocation2 + $0xb0] sm:$0xff]
    %v202 = vld [vmem:[#allocation2 + $0xb8] sm:$0xff]
    %v203 = vld [vmem:[#allocation2 + $0xc0] sm:$0xff]
    %v204 = vld [vmem:[#allocation2 + $0xc8] sm:$0xff]
    %v205 = vld [vmem:[#allocation2 + $0xf0] sm:$0xff]
    %v206 = vld [vmem:[#allocation2 + $0xf8] sm:$0xff]
    %v207 = vld [vmem:[#allocation2 + $0x100] sm:$0xff]
    %v208 = vld [vmem:[#allocation2 + $0x108] sm:$0xff]
    %v209 = vld [vmem:[#allocation2 + $0x130] sm:$0xff]
    %v210 = vld [vmem:[#allocation2 + $0x138] sm:$0xff]
    %v211 = vld [vmem:[#allocation2 + $0x140] sm:$0xff]
    %v212 = vld [vmem:[#allocation2 + $0x148] sm:$0xff]
    %v213 = vld [vmem:[#allocation2 + $0x170] sm:$0xff]
    %v214 = vld [vmem:[#allocation2 + $0x178] sm:$0xff]
    %v215 = vpack.c.bf16 %v181, %v180
    %v216 = vpack.c.bf16 %v202, %v201
    %v217 = vpack.c.bf16 %v204, %v203
    %v218 = vld [vmem:[#allocation2 + $0x94] sm:$0x1]
    %v219 = vlaneseq
    %v220 = vshrl.u32 %v219, 7
    %v221 = vsub.s32 0, %v220
    %v222 = vrot.slane %v218, %v221
    %v224 = vsel %vm137, %v215, 0
    %226 = vmatprep.subr.bf16.mxu0 0
    %227 = vmatpush1.bf16.msra.mxu0 %v216
    %228 = vmatprep.subr.bf16.mxu0 0
    %229 = vmatpush1.bf16.msra.mxu0 %v217
    %230 = vmatprep.subr.bf16.mxu0 0
    %231 = vmatpush1.bf16.msra.mxu0 0
    %232 = vmatprep.subr.bf16.mxu0 0
    %233 = vmatpush1.bf16.msra.mxu0 0
    %234 = vmatprep.subr.bf16.mxu0 0
    %235 = vmatpush1.bf16.msra.mxu0 0
    %236 = vmatprep.subr.bf16.mxu0 0
    %237 = vmatpush1.bf16.msra.mxu0 0
    %238 = vmatprep.subr.bf16.mxu0 0
    %239 = vmatpush1.bf16.msra.mxu0 0
    %240 = vmatprep.subr.bf16.mxu0 0
    %241 = vmatpush1.bf16.msra.mxu0 0
    %242 = vmatprep.subr.bf16.mxu0 0
    %243 = vmatpush1.bf16.msra.mxu0 0
    %244 = vmatprep.subr.bf16.mxu0 0
    %245 = vmatpush1.bf16.msra.mxu0 0
    %246 = vmatprep.subr.bf16.mxu0 0
    %247 = vmatpush1.bf16.msra.mxu0 0
    %248 = vmatprep.subr.bf16.mxu0 0
    %249 = vmatpush1.bf16.msra.mxu0 0
    %250 = vmatprep.subr.bf16.mxu0 0
    %251 = vmatpush1.bf16.msra.mxu0 0
    %252 = vmatprep.subr.bf16.mxu0 0
    %253 = vmatpush1.bf16.msra.mxu0 0
    %254 = vmatprep.subr.bf16.mxu0 0
    %255 = vmatpush1.bf16.msra.mxu0 0
    %256 = vmatprep.subr.bf16.mxu0 0
    %257 = vmatpush1.bf16.msra.mxu0 0
    %258 = vmatprep.mubr.bf16.mxu0 0
    %259 = vmatmul.mubr.bf16.gmra.mrb[0].mxu0 %v224
    %v260 = vpop.f32.mrb[0].mxu0
    %v261 = vadd.f32 %v222, %v260
    %v262 = vpop.f32.mrb[0].mxu0
    %v263 = vpop.f32.mrb[0].mxu0
    %v264 = vadd.f32 %v222, %v263
    %v265 = vpop.f32.mrb[0].mxu0
    %266 = vdwg.mxu0
    %v267 = vpack.c.bf16 %v206, %v205
    %v268 = vpack.c.bf16 %v208, %v207
    %v269 = vld [vmem:[#allocation2 + $0x96] sm:$0x1]
    %v270 = vlaneseq
    %v271 = vshrl.u32 %v270, 7
    %v272 = vsub.s32 0, %v271
    %v273 = vrot.slane %v269, %v272
    %274 = vmatprep.subr.bf16.mxu0 0
    %275 = vmatpush1.bf16.msra.mxu0 %v267
    %276 = vmatprep.subr.bf16.mxu0 0
    %277 = vmatpush1.bf16.msra.mxu0 %v268
    %278 = vmatprep.subr.bf16.mxu0 0
    %279 = vmatpush1.bf16.msra.mxu0 0
    %280 = vmatprep.subr.bf16.mxu0 0
    %281 = vmatpush1.bf16.msra.mxu0 0
    %282 = vmatprep.subr.bf16.mxu0 0
    %283 = vmatpush1.bf16.msra.mxu0 0
    %284 = vmatprep.subr.bf16.mxu0 0
    %285 = vmatpush1.bf16.msra.mxu0 0
    %286 = vmatprep.subr.bf16.mxu0 0
    %287 = vmatpush1.bf16.msra.mxu0 0
    %288 = vmatprep.subr.bf16.mxu0 0
    %289 = vmatpush1.bf16.msra.mxu0 0
    %290 = vmatprep.subr.bf16.mxu0 0
    %291 = vmatpush1.bf16.msra.mxu0 0
    %292 = vmatprep.subr.bf16.mxu0 0
    %293 = vmatpush1.bf16.msra.mxu0 0
    %294 = vmatprep.subr.bf16.mxu0 0
    %295 = vmatpush1.bf16.msra.mxu0 0
    %296 = vmatprep.subr.bf16.mxu0 0
    %297 = vmatpush1.bf16.msra.mxu0 0
    %298 = vmatprep.subr.bf16.mxu0 0
    %299 = vmatpush1.bf16.msra.mxu0 0
    %300 = vmatprep.subr.bf16.mxu0 0
    %301 = vmatpush1.bf16.msra.mxu0 0
    %302 = vmatprep.subr.bf16.mxu0 0
    %303 = vmatpush1.bf16.msra.mxu0 0
    %304 = vmatprep.subr.bf16.mxu0 0
    %305 = vmatpush1.bf16.msra.mxu0 0
    %306 = vmatprep.mubr.bf16.mxu0 0
    %307 = vmatmul.mubr.bf16.gmra.mrb[0].mxu0 %v224
    %v308 = vpop.f32.mrb[0].mxu0
    %v309 = vadd.f32 %v273, %v308
    %v310 = vpop.f32.mrb[0].mxu0
    %v311 = vpop.f32.mrb[0].mxu0
    %v312 = vadd.f32 %v273, %v311
    %v313 = vpop.f32.mrb[0].mxu0
    %314 = vdwg.mxu0
    %v315 = vpack.c.bf16 %v210, %v209
    %v316 = vpack.c.bf16 %v212, %v211
    %v317 = vld [vmem:[#allocation2 + $0x98] sm:$0x1]
    %v318 = vlaneseq
    %v319 = vshrl.u32 %v318, 7
    %v320 = vsub.s32 0, %v319
    %v321 = vrot.slane %v317, %v320
    %322 = vmatprep.subr.bf16.mxu0 0
    %323 = vmatpush1.bf16.msra.mxu0 %v315
    %324 = vmatprep.subr.bf16.mxu0 0
    %325 = vmatpush1.bf16.msra.mxu0 %v316
    %326 = vmatprep.subr.bf16.mxu0 0
    %327 = vmatpush1.bf16.msra.mxu0 0
    %328 = vmatprep.subr.bf16.mxu0 0
    %329 = vmatpush1.bf16.msra.mxu0 0
    %330 = vmatprep.subr.bf16.mxu0 0
    %331 = vmatpush1.bf16.msra.mxu0 0
    %332 = vmatprep.subr.bf16.mxu0 0
    %333 = vmatpush1.bf16.msra.mxu0 0
    %334 = vmatprep.subr.bf16.mxu0 0
    %335 = vmatpush1.bf16.msra.mxu0 0
    %336 = vmatprep.subr.bf16.mxu0 0
    %337 = vmatpush1.bf16.msra.mxu0 0
    %338 = vmatprep.subr.bf16.mxu0 0
    %339 = vmatpush1.bf16.msra.mxu0 0
    %340 = vmatprep.subr.bf16.mxu0 0
    %341 = vmatpush1.bf16.msra.mxu0 0
    %342 = vmatprep.subr.bf16.mxu0 0
    %343 = vmatpush1.bf16.msra.mxu0 0
    %344 = vmatprep.subr.bf16.mxu0 0
    %345 = vmatpush1.bf16.msra.mxu0 0
    %346 = vmatprep.subr.bf16.mxu0 0
    %347 = vmatpush1.bf16.msra.mxu0 0
    %348 = vmatprep.subr.bf16.mxu0 0
    %349 = vmatpush1.bf16.msra.mxu0 0
    %350 = vmatprep.subr.bf16.mxu0 0
    %351 = vmatpush1.bf16.msra.mxu0 0
    %352 = vmatprep.subr.bf16.mxu0 0
    %353 = vmatpush1.bf16.msra.mxu0 0
    %354 = vmatprep.mubr.bf16.mxu0 0
    %355 = vmatmul.mubr.bf16.gmra.mrb[0].mxu0 %v224
    %v356 = vpop.f32.mrb[0].mxu0
    %v357 = vadd.f32 %v321, %v356
    %v358 = vpop.f32.mrb[0].mxu0
    %v359 = vpop.f32.mrb[0].mxu0
    %v360 = vadd.f32 %v321, %v359
    %v361 = vpop.f32.mrb[0].mxu0
    %362 = vdwg.mxu0
    %v363 = vpack.c.bf16 %v264, %v261
    %v364 = vpack.c.bf16 %v312, %v309
    %vm365 = vcmask 130048
    %v367 = vsel %vm365, %v363, 0
    %v370 = vsel %vm365, %v364, 0
    %372 = vmatprep.subr.bf16.mxu0 0
    %373 = vmatpush1.bf16.xpose.msra.mxu0 %v370
    %374 = vmatprep.subr.bf16.mxu0 0
    %375 = vmatpush1.bf16.xpose.msra.mxu0 0
    %376 = vmatprep.subr.bf16.mxu0 0
    %377 = vmatpush1.bf16.xpose.msra.mxu0 0
    %378 = vmatprep.subr.bf16.mxu0 0
    %379 = vmatpush1.bf16.xpose.msra.mxu0 0
    %380 = vmatprep.subr.bf16.mxu0 0
    %381 = vmatpush1.bf16.xpose.msra.mxu0 0
    %382 = vmatprep.subr.bf16.mxu0 0
    %383 = vmatpush1.bf16.xpose.msra.mxu0 0
    %384 = vmatprep.subr.bf16.mxu0 0
    %385 = vmatpush1.bf16.xpose.msra.mxu0 0
    %386 = vmatprep.subr.bf16.mxu0 0
    %387 = vmatpush1.bf16.xpose.msra.mxu0 0
    %388 = vmatprep.subr.bf16.mxu0 0
    %389 = vmatpush1.bf16.xpose.msra.mxu0 0
    %390 = vmatprep.subr.bf16.mxu0 0
    %391 = vmatpush1.bf16.xpose.msra.mxu0 0
    %392 = vmatprep.subr.bf16.mxu0 0
    %393 = vmatpush1.bf16.xpose.msra.mxu0 0
    %394 = vmatprep.subr.bf16.mxu0 0
    %395 = vmatpush1.bf16.xpose.msra.mxu0 0
    %396 = vmatprep.subr.bf16.mxu0 0
    %397 = vmatpush1.bf16.xpose.msra.mxu0 0
    %398 = vmatprep.subr.bf16.mxu0 0
    %399 = vmatpush1.bf16.xpose.msra.mxu0 0
    %400 = vmatprep.subr.bf16.mxu0 0
    %401 = vmatpush1.bf16.xpose.msra.mxu0 0
    %402 = vmatprep.subr.bf16.mxu0 0
    %403 = vmatpush1.bf16.xpose.msra.mxu0 0
    %404 = vmatprep.mubr.bf16.mxu0 0
    %405 = vmatmul.mubr.bf16.gmra.mrb[0].mxu0 %v367
    %v406 = vpop.f32.mrb[0].mxu0
    %v407 = vadd.f32 %v199, %v406
    %v408 = vpop.f32.mrb[0].mxu0
    %v409 = vpop.f32.mrb[0].mxu0
    %v410 = vadd.f32 %v200, %v409
    %v411 = vpop.f32.mrb[0].mxu0
    %412 = vdwg.mxu0
    %v413 = vsel %vm365, %v407, -inf
    %414 = vmax.xlane.f32.xlu0 %v413
    %v415 = vpop.xlane.xlu0 %414
    %v416 = vsel %vm365, %v410, -inf
    %417 = vmax.xlane.f32.xlu0 %v416
    %v418 = vpop.xlane.xlu0 %417
    %v419 = vsub.f32 %v407, %v415
    %v420 = vsub.f32 %v410, %v418
    %v421 = vmul.f32 %v419, 1.442695
    %v422 = vpow.pop %v421
    %v423 = vmul.f32 %v420, 1.442695
    %v424 = vpow.pop %v423
    %v425 = vsel %vm365, %v422, 0.0
    %426 = vadd.xlane.f32.xlu0 %v425
    %v427 = vpop.xlane.xlu0 %426
    %v428 = vsel %vm365, %v424, 0.0
    %429 = vadd.xlane.f32.xlu0 %v428
    %v430 = vpop.xlane.xlu0 %429
    %v431 = vrcp.pop %v427
    %v432 = vrcp.pop %v430
    %v433 = vmul.f32 %v422, %v431
    %v434 = vmul.f32 %v424, %v432
    %v435 = vpack.c.bf16 %v434, %v433
    %v436 = vpack.c.bf16 %v360, %v357
    %v438 = vsel %vm365, %v435, 0
    %440 = vmatprep.subr.bf16.mxu0 0
    %441 = vmatpush1.bf16.msra.mxu0 %v436
    %442 = vmatprep.subr.bf16.mxu0 0
    %443 = vmatpush1.bf16.msra.mxu0 0
    %444 = vmatprep.subr.bf16.mxu0 0
    %445 = vmatpush1.bf16.msra.mxu0 0
    %446 = vmatprep.subr.bf16.mxu0 0
    %447 = vmatpush1.bf16.msra.mxu0 0
    %448 = vmatprep.subr.bf16.mxu0 0
    %449 = vmatpush1.bf16.msra.mxu0 0
    %450 = vmatprep.subr.bf16.mxu0 0
    %451 = vmatpush1.bf16.msra.mxu0 0
    %452 = vmatprep.subr.bf16.mxu0 0
    %453 = vmatpush1.bf16.msra.mxu0 0
    %454 = vmatprep.subr.bf16.mxu0 0
    %455 = vmatpush1.bf16.msra.mxu0 0
    %456 = vmatprep.subr.bf16.mxu0 0
    %457 = vmatpush1.bf16.msra.mxu0 0
    %458 = vmatprep.subr.bf16.mxu0 0
    %459 = vmatpush1.bf16.msra.mxu0 0
    %460 = vmatprep.subr.bf16.mxu0 0
    %461 = vmatpush1.bf16.msra.mxu0 0
    %462 = vmatprep.subr.bf16.mxu0 0
    %463 = vmatpush1.bf16.msra.mxu0 0
    %464 = vmatprep.subr.bf16.mxu0 0
    %465 = vmatpush1.bf16.msra.mxu0 0
    %466 = vmatprep.subr.bf16.mxu0 0
    %467 = vmatpush1.bf16.msra.mxu0 0
    %468 = vmatprep.subr.bf16.mxu0 0
    %469 = vmatpush1.bf16.msra.mxu0 0
    %470 = vmatprep.subr.bf16.mxu0 0
    %471 = vmatpush1.bf16.msra.mxu0 0
    %472 = vmatprep.mubr.bf16.mxu0 0
    %473 = vmatmul.mubr.bf16.gmra.mrb[0].mxu0 %v438
    %v474 = vpop.f32.mrb[0].mxu0
    %v475 = vadd.f32 0.0, %v474
    %v476 = vpop.f32.mrb[0].mxu0
    %v477 = vpop.f32.mrb[0].mxu0
    %v478 = vadd.f32 0.0, %v477
    %v479 = vpop.f32.mrb[0].mxu0
    %480 = vdwg.mxu0
    %v481 = vpack.c.bf16 %v478, %v475
    %v482 = vpack.c.bf16 %v214, %v213
    %v483 = vld [vmem:[#allocation2 + $0xd0] sm:$0xff]
    %v484 = vld [vmem:[#allocation2 + $0xd8] sm:$0xff]
    %v485 = vld [vmem:[#allocation2 + $0xe0] sm:$0xff]
    %v486 = vld [vmem:[#allocation2 + $0xe8] sm:$0xff]
    %v487 = vld [vmem:[#allocation2 + $0x110] sm:$0xff]
    %v488 = vld [vmem:[#allocation2 + $0x118] sm:$0xff]
    %v489 = vld [vmem:[#allocation2 + $0x120] sm:$0xff]
    %v490 = vld [vmem:[#allocation2 + $0x128] sm:$0xff]
    %v491 = vld [vmem:[#allocation2 + $0x150] sm:$0xff]
    %v492 = vld [vmem:[#allocation2 + $0x158] sm:$0xff]
    %v493 = vld [vmem:[#allocation2 + $0x160] sm:$0xff]
    %v494 = vld [vmem:[#allocation2 + $0x168] sm:$0xff]
    %v495 = vld [vmem:[#allocation2 + $0x180] sm:$0xff]
    %v496 = vld [vmem:[#allocation2 + $0x188] sm:$0xff]
    %v497 = vpack.c.bf16 %v484, %v483
    %v498 = vpack.c.bf16 %v486, %v485
    %v499 = vld [vmem:[#allocation2 + $0x95] sm:$0x1]
    %v500 = vlaneseq
    %v501 = vshrl.u32 %v500, 7
    %v502 = vsub.s32 0, %v501
    %v503 = vrot.slane %v499, %v502
    %504 = vmatprep.subr.bf16.mxu0 0
    %505 = vmatpush1.bf16.msra.mxu0 %v497
    %506 = vmatprep.subr.bf16.mxu0 0
    %507 = vmatpush1.bf16.msra.mxu0 %v498
    %508 = vmatprep.subr.bf16.mxu0 0
    %509 = vmatpush1.bf16.msra.mxu0 0
    %510 = vmatprep.subr.bf16.mxu0 0
    %511 = vmatpush1.bf16.msra.mxu0 0
    %512 = vmatprep.subr.bf16.mxu0 0
    %513 = vmatpush1.bf16.msra.mxu0 0
    %514 = vmatprep.subr.bf16.mxu0 0
    %515 = vmatpush1.bf16.msra.mxu0 0
    %516 = vmatprep.subr.bf16.mxu0 0
    %517 = vmatpush1.bf16.msra.mxu0 0
    %518 = vmatprep.subr.bf16.mxu0 0
    %519 = vmatpush1.bf16.msra.mxu0 0
    %520 = vmatprep.subr.bf16.mxu0 0
    %521 = vmatpush1.bf16.msra.mxu0 0
    %522 = vmatprep.subr.bf16.mxu0 0
    %523 = vmatpush1.bf16.msra.mxu0 0
    %524 = vmatprep.subr.bf16.mxu0 0
    %525 = vmatpush1.bf16.msra.mxu0 0
    %526 = vmatprep.subr.bf16.mxu0 0
    %527 = vmatpush1.bf16.msra.mxu0 0
    %528 = vmatprep.subr.bf16.mxu0 0
    %529 = vmatpush1.bf16.msra.mxu0 0
    %530 = vmatprep.subr.bf16.mxu0 0
    %531 = vmatpush1.bf16.msra.mxu0 0
    %532 = vmatprep.subr.bf16.mxu0 0
    %533 = vmatpush1.bf16.msra.mxu0 0
    %534 = vmatprep.subr.bf16.mxu0 0
    %535 = vmatpush1.bf16.msra.mxu0 0
    %536 = vmatprep.mubr.bf16.mxu0 0
    %537 = vmatmul.mubr.bf16.gmra.mrb[0].mxu0 %v224
    %v538 = vpop.f32.mrb[0].mxu0
    %v539 = vadd.f32 %v503, %v538
    %v540 = vpop.f32.mrb[0].mxu0
    %v541 = vpop.f32.mrb[0].mxu0
    %v542 = vadd.f32 %v503, %v541
    %v543 = vpop.f32.mrb[0].mxu0
    %544 = vdwg.mxu0
    %v545 = vpack.c.bf16 %v488, %v487
    %v546 = vpack.c.bf16 %v490, %v489
    %v547 = vld [vmem:[#allocation2 + $0x97] sm:$0x1]
    %v548 = vlaneseq
    %v549 = vshrl.u32 %v548, 7
    %v550 = vsub.s32 0, %v549
    %v551 = vrot.slane %v547, %v550
    %552 = vmatprep.subr.bf16.mxu0 0
    %553 = vmatpush1.bf16.msra.mxu0 %v545
    %554 = vmatprep.subr.bf16.mxu0 0
    %555 = vmatpush1.bf16.msra.mxu0 %v546
    %556 = vmatprep.subr.bf16.mxu0 0
    %557 = vmatpush1.bf16.msra.mxu0 0
    %558 = vmatprep.subr.bf16.mxu0 0
    %559 = vmatpush1.bf16.msra.mxu0 0
    %560 = vmatprep.subr.bf16.mxu0 0
    %561 = vmatpush1.bf16.msra.mxu0 0
    %562 = vmatprep.subr.bf16.mxu0 0
    %563 = vmatpush1.bf16.msra.mxu0 0
    %564 = vmatprep.subr.bf16.mxu0 0
    %565 = vmatpush1.bf16.msra.mxu0 0
    %566 = vmatprep.subr.bf16.mxu0 0
    %567 = vmatpush1.bf16.msra.mxu0 0
    %568 = vmatprep.subr.bf16.mxu0 0
    %569 = vmatpush1.bf16.msra.mxu0 0
    %570 = vmatprep.subr.bf16.mxu0 0
    %571 = vmatpush1.bf16.msra.mxu0 0
    %572 = vmatprep.subr.bf16.mxu0 0
    %573 = vmatpush1.bf16.msra.mxu0 0
    %574 = vmatprep.subr.bf16.mxu0 0
    %575 = vmatpush1.bf16.msra.mxu0 0
    %576 = vmatprep.subr.bf16.mxu0 0
    %577 = vmatpush1.bf16.msra.mxu0 0
    %578 = vmatprep.subr.bf16.mxu0 0
    %579 = vmatpush1.bf16.msra.mxu0 0
    %580 = vmatprep.subr.bf16.mxu0 0
    %581 = vmatpush1.bf16.msra.mxu0 0
    %582 = vmatprep.subr.bf16.mxu0 0
    %583 = vmatpush1.bf16.msra.mxu0 0
    %584 = vmatprep.mubr.bf16.mxu0 0
    %585 = vmatmul.mubr.bf16.gmra.mrb[0].mxu0 %v224
    %v586 = vpop.f32.mrb[0].mxu0
    %v587 = vadd.f32 %v551, %v586
    %v588 = vpop.f32.mrb[0].mxu0
    %v589 = vpop.f32.mrb[0].mxu0
    %v590 = vadd.f32 %v551, %v589
    %v591 = vpop.f32.mrb[0].mxu0
    %592 = vdwg.mxu0
    %v593 = vpack.c.bf16 %v492, %v491
    %v594 = vpack.c.bf16 %v494, %v493
    %v595 = vld [vmem:[#allocation2 + $0x99] sm:$0x1]
    %v596 = vlaneseq
    %v597 = vshrl.u32 %v596, 7
    %v598 = vsub.s32 0, %v597
    %v599 = vrot.slane %v595, %v598
    %600 = vmatprep.subr.bf16.mxu0 0
    %601 = vmatpush1.bf16.msra.mxu0 %v593
    %602 = vmatprep.subr.bf16.mxu0 0
    %603 = vmatpush1.bf16.msra.mxu0 %v594
    %604 = vmatprep.subr.bf16.mxu0 0
    %605 = vmatpush1.bf16.msra.mxu0 0
    %606 = vmatprep.subr.bf16.mxu0 0
    %607 = vmatpush1.bf16.msra.mxu0 0
    %608 = vmatprep.subr.bf16.mxu0 0
    %609 = vmatpush1.bf16.msra.mxu0 0
    %610 = vmatprep.subr.bf16.mxu0 0
    %611 = vmatpush1.bf16.msra.mxu0 0
    %612 = vmatprep.subr.bf16.mxu0 0
    %613 = vmatpush1.bf16.msra.mxu0 0
    %614 = vmatprep.subr.bf16.mxu0 0
    %615 = vmatpush1.bf16.msra.mxu0 0
    %616 = vmatprep.subr.bf16.mxu0 0
    %617 = vmatpush1.bf16.msra.mxu0 0
    %618 = vmatprep.subr.bf16.mxu0 0
    %619 = vmatpush1.bf16.msra.mxu0 0
    %620 = vmatprep.subr.bf16.mxu0 0
    %621 = vmatpush1.bf16.msra.mxu0 0
    %622 = vmatprep.subr.bf16.mxu0 0
    %623 = vmatpush1.bf16.msra.mxu0 0
    %624 = vmatprep.subr.bf16.mxu0 0
    %625 = vmatpush1.bf16.msra.mxu0 0
    %626 = vmatprep.subr.bf16.mxu0 0
    %627 = vmatpush1.bf16.msra.mxu0 0
    %628 = vmatprep.subr.bf16.mxu0 0
    %629 = vmatpush1.bf16.msra.mxu0 0
    %630 = vmatprep.subr.bf16.mxu0 0
    %631 = vmatpush1.bf16.msra.mxu0 0
    %632 = vmatprep.mubr.bf16.mxu0 0
    %633 = vmatmul.mubr.bf16.gmra.mrb[0].mxu0 %v224
    %v634 = vpop.f32.mrb[0].mxu0
    %v635 = vadd.f32 %v599, %v634
    %v636 = vpop.f32.mrb[0].mxu0
    %v637 = vpop.f32.mrb[0].mxu0
    %v638 = vadd.f32 %v599, %v637
    %v639 = vpop.f32.mrb[0].mxu0
    %640 = vdwg.mxu0
    %v641 = vpack.c.bf16 %v542, %v539
    %v642 = vpack.c.bf16 %v590, %v587
    %v644 = vsel %vm365, %v641, 0
    %v647 = vsel %vm365, %v642, 0
    %649 = vmatprep.subr.bf16.mxu0 0
    %650 = vmatpush1.bf16.xpose.msra.mxu0 %v647
    %651 = vmatprep.subr.bf16.mxu0 0
    %652 = vmatpush1.bf16.xpose.msra.mxu0 0
    %653 = vmatprep.subr.bf16.mxu0 0
    %654 = vmatpush1.bf16.xpose.msra.mxu0 0
    %655 = vmatprep.subr.bf16.mxu0 0
    %656 = vmatpush1.bf16.xpose.msra.mxu0 0
    %657 = vmatprep.subr.bf16.mxu0 0
    %658 = vmatpush1.bf16.xpose.msra.mxu0 0
    %659 = vmatprep.subr.bf16.mxu0 0
    %660 = vmatpush1.bf16.xpose.msra.mxu0 0
    %661 = vmatprep.subr.bf16.mxu0 0
    %662 = vmatpush1.bf16.xpose.msra.mxu0 0
    %663 = vmatprep.subr.bf16.mxu0 0
    %664 = vmatpush1.bf16.xpose.msra.mxu0 0
    %665 = vmatprep.subr.bf16.mxu0 0
    %666 = vmatpush1.bf16.xpose.msra.mxu0 0
    %667 = vmatprep.subr.bf16.mxu0 0
    %668 = vmatpush1.bf16.xpose.msra.mxu0 0
    %669 = vmatprep.subr.bf16.mxu0 0
    %670 = vmatpush1.bf16.xpose.msra.mxu0 0
    %671 = vmatprep.subr.bf16.mxu0 0
    %672 = vmatpush1.bf16.xpose.msra.mxu0 0
    %673 = vmatprep.subr.bf16.mxu0 0
    %674 = vmatpush1.bf16.xpose.msra.mxu0 0
    %675 = vmatprep.subr.bf16.mxu0 0
    %676 = vmatpush1.bf16.xpose.msra.mxu0 0
    %677 = vmatprep.subr.bf16.mxu0 0
    %678 = vmatpush1.bf16.xpose.msra.mxu0 0
    %679 = vmatprep.subr.bf16.mxu0 0
    %680 = vmatpush1.bf16.xpose.msra.mxu0 0
    %681 = vmatprep.mubr.bf16.mxu0 0
    %682 = vmatmul.mubr.bf16.gmra.mrb[0].mxu0 %v644
    %v683 = vpop.f32.mrb[0].mxu0
    %v684 = vadd.f32 %v199, %v683
    %v685 = vpop.f32.mrb[0].mxu0
    %v686 = vpop.f32.mrb[0].mxu0
    %v687 = vadd.f32 %v200, %v686
    %v688 = vpop.f32.mrb[0].mxu0
    %689 = vdwg.mxu0
    %v690 = vsel %vm365, %v684, -inf
    %691 = vmax.xlane.f32.xlu0 %v690
    %v692 = vpop.xlane.xlu0 %691
    %v693 = vsel %vm365, %v687, -inf
    %694 = vmax.xlane.f32.xlu0 %v693
    %v695 = vpop.xlane.xlu0 %694
    %v696 = vsub.f32 %v684, %v692
    %v697 = vsub.f32 %v687, %v695
    %v698 = vmul.f32 %v696, 1.442695
    %v699 = vpow.pop %v698
    %v700 = vmul.f32 %v697, 1.442695
    %v701 = vpow.pop %v700
    %v702 = vsel %vm365, %v699, 0.0
    %703 = vadd.xlane.f32.xlu0 %v702
    %v704 = vpop.xlane.xlu0 %703
    %v705 = vsel %vm365, %v701, 0.0
    %706 = vadd.xlane.f32.xlu0 %v705
    %v707 = vpop.xlane.xlu0 %706
    %v708 = vrcp.pop %v704
    %v709 = vrcp.pop %v707
    %v710 = vmul.f32 %v699, %v708
    %v711 = vmul.f32 %v701, %v709
    %v712 = vpack.c.bf16 %v711, %v710
    %v713 = vpack.c.bf16 %v638, %v635
    %v715 = vsel %vm365, %v712, 0
    %717 = vmatprep.subr.bf16.mxu0 0
    %718 = vmatpush1.bf16.msra.mxu0 %v713
    %719 = vmatprep.subr.bf16.mxu0 0
    %720 = vmatpush1.bf16.msra.mxu0 0
    %721 = vmatprep.subr.bf16.mxu0 0
    %722 = vmatpush1.bf16.msra.mxu0 0
    %723 = vmatprep.subr.bf16.mxu0 0
    %724 = vmatpush1.bf16.msra.mxu0 0
    %725 = vmatprep.subr.bf16.mxu0 0
    %726 = vmatpush1.bf16.msra.mxu0 0
    %727 = vmatprep.subr.bf16.mxu0 0
    %728 = vmatpush1.bf16.msra.mxu0 0
    %729 = vmatprep.subr.bf16.mxu0 0
    %730 = vmatpush1.bf16.msra.mxu0 0
    %731 = vmatprep.subr.bf16.mxu0 0
    %732 = vmatpush1.bf16.msra.mxu0 0
    %733 = vmatprep.subr.bf16.mxu0 0
    %734 = vmatpush1.bf16.msra.mxu0 0
    %735 = vmatprep.subr.bf16.mxu0 0
    %736 = vmatpush1.bf16.msra.mxu0 0
    %737 = vmatprep.subr.bf16.mxu0 0
    %738 = vmatpush1.bf16.msra.mxu0 0
    %739 = vmatprep.subr.bf16.mxu0 0
    %740 = vmatpush1.bf16.msra.mxu0 0
    %741 = vmatprep.subr.bf16.mxu0 0
    %742 = vmatpush1.bf16.msra.mxu0 0
    %743 = vmatprep.subr.bf16.mxu0 0
    %744 = vmatpush1.bf16.msra.mxu0 0
    %745 = vmatprep.subr.bf16.mxu0 0
    %746 = vmatpush1.bf16.msra.mxu0 0
    %747 = vmatprep.subr.bf16.mxu0 0
    %748 = vmatpush1.bf16.msra.mxu0 0
    %749 = vmatprep.mubr.bf16.mxu0 0
    %750 = vmatmul.mubr.bf16.gmra.mrb[0].mxu0 %v715
    %v751 = vpop.f32.mrb[0].mxu0
    %v752 = vadd.f32 0.0, %v751
    %v753 = vpop.f32.mrb[0].mxu0
    %v754 = vpop.f32.mrb[0].mxu0
    %v755 = vadd.f32 0.0, %v754
    %v756 = vpop.f32.mrb[0].mxu0
    %757 = vdwg.mxu0
    %v758 = vpack.c.bf16 %v755, %v752
    %v759 = vpack.c.bf16 %v496, %v495
    %v761 = vsel %vm365, %v758, 0
    %763 = vmatprep.subr.bf16.mxu0 0
    %764 = vmatpush1.bf16.msra.mxu0 %v759
    %765 = vmatprep.subr.bf16.mxu0 0
    %766 = vmatpush1.bf16.msra.mxu0 0
    %767 = vmatprep.subr.bf16.mxu0 0
    %768 = vmatpush1.bf16.msra.mxu0 0
    %769 = vmatprep.subr.bf16.mxu0 0
    %770 = vmatpush1.bf16.msra.mxu0 0
    %771 = vmatprep.subr.bf16.mxu0 0
    %772 = vmatpush1.bf16.msra.mxu0 0
    %773 = vmatprep.subr.bf16.mxu0 0
    %774 = vmatpush1.bf16.msra.mxu0 0
    %775 = vmatprep.subr.bf16.mxu0 0
    %776 = vmatpush1.bf16.msra.mxu0 0
    %777 = vmatprep.subr.bf16.mxu0 0
    %778 = vmatpush1.bf16.msra.mxu0 0
    %779 = vmatprep.subr.bf16.mxu0 0
    %780 = vmatpush1.bf16.msra.mxu0 0
    %781 = vmatprep.subr.bf16.mxu0 0
    %782 = vmatpush1.bf16.msra.mxu0 0
    %783 = vmatprep.subr.bf16.mxu0 0
    %784 = vmatpush1.bf16.msra.mxu0 0
    %785 = vmatprep.subr.bf16.mxu0 0
    %786 = vmatpush1.bf16.msra.mxu0 0
    %787 = vmatprep.subr.bf16.mxu0 0
    %788 = vmatpush1.bf16.msra.mxu0 0
    %789 = vmatprep.subr.bf16.mxu0 0
    %790 = vmatpush1.bf16.msra.mxu0 0
    %791 = vmatprep.subr.bf16.mxu0 0
    %792 = vmatpush1.bf16.msra.mxu0 0
    %793 = vmatprep.subr.bf16.mxu0 0
    %794 = vmatpush1.bf16.msra.mxu0 0
    %795 = vmatprep.mubr.bf16.mxu0 0
    %796 = vmatmul.mubr.bf16.gmra.mrb[0].mxu0 %v761
    %v797 = vpop.f32.mrb[0].mxu0
    %v798 = vadd.f32 0.0, %v797
    %v799 = vpop.f32.mrb[0].mxu0
    %v800 = vpop.f32.mrb[0].mxu0
    %v801 = vadd.f32 0.0, %v800
    %v802 = vpop.f32.mrb[0].mxu0
    %803 = vdwg.mxu0
    %v805 = vsel %vm365, %v481, 0
    %807 = vmatprep.subr.bf16.mxu0 0
    %808 = vmatpush1.bf16.msra.mxu0 %v482
    %809 = vmatprep.subr.bf16.mxu0 0
    %810 = vmatpush1.bf16.msra.mxu0 0
    %811 = vmatprep.subr.bf16.mxu0 0
    %812 = vmatpush1.bf16.msra.mxu0 0
    %813 = vmatprep.subr.bf16.mxu0 0
    %814 = vmatpush1.bf16.msra.mxu0 0
    %815 = vmatprep.subr.bf16.mxu0 0
    %816 = vmatpush1.bf16.msra.mxu0 0
    %817 = vmatprep.subr.bf16.mxu0 0
    %818 = vmatpush1.bf16.msra.mxu0 0
    %819 = vmatprep.subr.bf16.mxu0 0
    %820 = vmatpush1.bf16.msra.mxu0 0
    %821 = vmatprep.subr.bf16.mxu0 0
    %822 = vmatpush1.bf16.msra.mxu0 0
    %823 = vmatprep.subr.bf16.mxu0 0
    %824 = vmatpush1.bf16.msra.mxu0 0
    %825 = vmatprep.subr.bf16.mxu0 0
    %826 = vmatpush1.bf16.msra.mxu0 0
    %827 = vmatprep.subr.bf16.mxu0 0
    %828 = vmatpush1.bf16.msra.mxu0 0
    %829 = vmatprep.subr.bf16.mxu0 0
    %830 = vmatpush1.bf16.msra.mxu0 0
    %831 = vmatprep.subr.bf16.mxu0 0
    %832 = vmatpush1.bf16.msra.mxu0 0
    %833 = vmatprep.subr.bf16.mxu0 0
    %834 = vmatpush1.bf16.msra.mxu0 0
    %835 = vmatprep.subr.bf16.mxu0 0
    %836 = vmatpush1.bf16.msra.mxu0 0
    %837 = vmatprep.subr.bf16.mxu0 0
    %838 = vmatpush1.bf16.msra.mxu0 0
    %839 = vmatprep.mubr.bf16.mxu0 0
    %840 = vmatmul.mubr.bf16.gmra.mrb[0].mxu0 %v805
    %v841 = vpop.f32.mrb[0].mxu0
    %v842 = vadd.f32 %v798, %v841
    %v843 = vpop.f32.mrb[0].mxu0
    %v844 = vpop.f32.mrb[0].mxu0
    %v845 = vadd.f32 %v801, %v844
    %v846 = vpop.f32.mrb[0].mxu0
    %847 = vdwg.mxu0
    %v848 = vld [vmem:[#allocation2 + $0x9a] sm:$0x1]
    %v849 = vlaneseq
    %v850 = vshrl.u32 %v849, 7
    %v851 = vsub.s32 0, %v850
    %v852 = vrot.slane %v848, %v851
    %v853 = vadd.f32 %v842, %v852
    %v854 = vadd.f32 %v845, %v852
    %v855 = vadd.f32 %v180, %v853
    %v856 = vadd.f32 %v181, %v854
    %v857 = vld [vmem:[#allocation2 + $0x9b] sm:$0x1]
    %v858 = vld [vmem:[#allocation2 + $0x9c] sm:$0x1]
    %v859 = vsel %vm137, %v855, 0.0
    %860 = vadd.xlane.f32.xlu0 %v859
    %v861 = vpop.xlane.xlu0 %860
    %v862 = vsel %vm137, %v856, 0.0
    %863 = vadd.xlane.f32.xlu0 %v862
    %v864 = vpop.xlane.xlu0 %863
    %v865 = vmul.f32 %v855, %v855
    %v866 = vmul.f32 %v856, %v856
    %v867 = vsel %vm137, %v865, 0.0
    %868 = vadd.xlane.f32.xlu0 %v867
    %v869 = vpop.xlane.xlu0 %868
    %v870 = vsel %vm137, %v866, 0.0
    %871 = vadd.xlane.f32.xlu0 %v870
    %v872 = vpop.xlane.xlu0 %871
    %v873 = vmul.f32 %v861, 0.03125
    %v874 = vmul.f32 %v864, 0.03125
    %v875 = vmul.f32 %v869, 0.03125
    %v876 = vmul.f32 %v872, 0.03125
    %v877 = vmul.f32 %v873, %v873
    %v878 = vmul.f32 %v874, %v874
    %v879 = vsub.f32 %v875, %v877
    %v880 = vsub.f32 %v876, %v878
    %v881 = vmax.f32 %v879, 0.0
    %v882 = vmax.f32 %v880, 0.0
    %v883 = vsub.f32 %v855, %v873
    %v884 = vsub.f32 %v856, %v874
    %v885 = vadd.f32 %v881, 1e-12
    %v886 = vadd.f32 %v882, 1e-12
    %v887 = vrsqrt.pop %v885
    %v888 = vrsqrt.pop %v886
    %v889 = vmul.f32 %v883, %v887
    %v890 = vmul.f32 %v884, %v888
    %v891 = vlaneseq
    %v892 = vshrl.u32 %v891, 7
    %v893 = vsub.s32 0, %v892
    %v894 = vrot.slane %v857, %v893
    %v895 = vmul.f32 %v889, %v894
    %v896 = vmul.f32 %v890, %v894
    %v897 = vlaneseq
    %v898 = vshrl.u32 %v897, 7
    %v899 = vsub.s32 0, %v898
    %v900 = vrot.slane %v858, %v899
    %v901 = vadd.f32 %v895, %v900
    %v902 = vadd.f32 %v896, %v900
    %v903 = vld [vmem:[#allocation2 + $0x190] sm:$0xff]
    %v904 = vld [vmem:[#allocation2 + $0x198] sm:$0xff]
    %v905 = vld [vmem:[#allocation2 + $0x1a0] sm:$0xff]
    %v906 = vld [vmem:[#allocation2 + $0x1a8] sm:$0xff]
    %v907 = vpack.c.bf16 %v902, %v901
    %v908 = vpack.c.bf16 %v904, %v903
    %v909 = vpack.c.bf16 %v906, %v905
    %v910 = vld [vmem:[#allocation2 + $0x9d] sm:$0x1]
    %v911 = vlaneseq
    %v912 = vshrl.u32 %v911, 7
    %v913 = vsub.s32 0, %v912
    %v914 = vrot.slane %v910, %v913
    %v916 = vsel %vm137, %v907, 0
    %918 = vmatprep.subr.bf16.mxu0 0
    %919 = vmatpush1.bf16.msra.mxu0 %v908
    %920 = vmatprep.subr.bf16.mxu0 0
    %921 = vmatpush1.bf16.msra.mxu0 %v909
    %922 = vmatprep.subr.bf16.mxu0 0
    %923 = vmatpush1.bf16.msra.mxu0 0
    %924 = vmatprep.subr.bf16.mxu0 0
    %925 = vmatpush1.bf16.msra.mxu0 0
    %926 = vmatprep.subr.bf16.mxu0 0
    %927 = vmatpush1.bf16.msra.mxu0 0
    %928 = vmatprep.subr.bf16.mxu0 0
    %929 = vmatpush1.bf16.msra.mxu0 0
    %930 = vmatprep.subr.bf16.mxu0 0
    %931 = vmatpush1.bf16.msra.mxu0 0
    %932 = vmatprep.subr.bf16.mxu0 0
    %933 = vmatpush1.bf16.msra.mxu0 0
    %934 = vmatprep.subr.bf16.mxu0 0
    %935 = vmatpush1.bf16.msra.mxu0 0
    %936 = vmatprep.subr.bf16.mxu0 0
    %937 = vmatpush1.bf16.msra.mxu0 0
    %938 = vmatprep.subr.bf16.mxu0 0
    %939 = vmatpush1.bf16.msra.mxu0 0
    %940 = vmatprep.subr.bf16.mxu0 0
    %941 = vmatpush1.bf16.msra.mxu0 0
    %942 = vmatprep.subr.bf16.mxu0 0
    %943 = vmatpush1.bf16.msra.mxu0 0
    %944 = vmatprep.subr.bf16.mxu0 0
    %945 = vmatpush1.bf16.msra.mxu0 0
    %946 = vmatprep.subr.bf16.mxu0 0
    %947 = vmatpush1.bf16.msra.mxu0 0
    %948 = vmatprep.subr.bf16.mxu0 0
    %949 = vmatpush1.bf16.msra.mxu0 0
    %950 = vmatprep.mubr.bf16.mxu0 0
    %951 = vmatmul.mubr.bf16.gmra.mrb[0].mxu0 %v916
    %v952 = vpop.f32.mrb[0].mxu0
    %v953 = vadd.f32 %v914, %v952
    %v954 = vpop.f32.mrb[0].mxu0
    %v955 = vpop.f32.mrb[0].mxu0
    %v956 = vadd.f32 %v914, %v955
    %v957 = vpop.f32.mrb[0].mxu0
    %958 = vdwg.mxu0
    %v959 = vmul.f32 %v953, %v953
    %v960 = vmul.f32 %v956, %v956
    %v961 = vmul.f32 %v953, %v959
    %v962 = vmul.f32 %v956, %v960
    %v963 = vmul.f32 %v961, 0.044715
    %v964 = vmul.f32 %v962, 0.044715
    %v965 = vadd.f32 %v953, %v963
    %v966 = vadd.f32 %v956, %v964
    %v967 = vmul.f32 %v965, 0.7978846
    %v968 = vmul.f32 %v966, 0.7978846
    %v969 = vtanh.pop %v967
    %v970 = vtanh.pop %v968
    %v971 = vadd.f32 %v969, 1.0
    %v972 = vadd.f32 %v970, 1.0
    %v973 = vmul.f32 %v971, 0.5
    %v974 = vmul.f32 %v972, 0.5
    %v975 = vmul.f32 %v953, %v973
    %v976 = vmul.f32 %v956, %v974
    %v977 = vld [vmem:[#allocation2 + $0x1b0] sm:$0xff]
    %v978 = vld [vmem:[#allocation2 + $0x1b8] sm:$0xff]
    %v979 = vld [vmem:[#allocation2 + $0x1c0] sm:$0xff]
    %v980 = vld [vmem:[#allocation2 + $0x1c8] sm:$0xff]
    %v981 = vld [vmem:[#allocation2 + $0x1d0] sm:$0xff]
    %v982 = vld [vmem:[#allocation2 + $0x1d8] sm:$0xff]
    %v983 = vld [vmem:[#allocation2 + $0x1e0] sm:$0xff]
    %v984 = vld [vmem:[#allocation2 + $0x1e8] sm:$0xff]
    %v985 = vpack.c.bf16 %v976, %v975
    %v986 = vpack.c.bf16 %v978, %v977
    %v987 = vpack.c.bf16 %v980, %v979
    %v988 = vpack.c.bf16 %v982, %v981
    %v989 = vpack.c.bf16 %v984, %v983
    %v990 = vld [vmem:[#allocation2 + $0x9e] sm:$0x1]
    %v991 = vlaneseq
    %v992 = vshrl.u32 %v991, 7
    %v993 = vsub.s32 0, %v992
    %v994 = vrot.slane %v990, %v993
    %vm995 = vcmask 523264
    %v997 = vsel %vm995, %v985, 0
    %999 = vmatprep.subr.bf16.mxu0 0
    %1000 = vmatpush1.bf16.msra.mxu0 %v986
    %1001 = vmatprep.subr.bf16.mxu0 0
    %1002 = vmatpush1.bf16.msra.mxu0 %v987
    %1003 = vmatprep.subr.bf16.mxu0 0
    %1004 = vmatpush1.bf16.msra.mxu0 %v988
    %1005 = vmatprep.subr.bf16.mxu0 0
    %1006 = vmatpush1.bf16.msra.mxu0 %v989
    %1007 = vmatprep.subr.bf16.mxu0 0
    %1008 = vmatpush1.bf16.msra.mxu0 0
    %1009 = vmatprep.subr.bf16.mxu0 0
    %1010 = vmatpush1.bf16.msra.mxu0 0
    %1011 = vmatprep.subr.bf16.mxu0 0
    %1012 = vmatpush1.bf16.msra.mxu0 0
    %1013 = vmatprep.subr.bf16.mxu0 0
    %1014 = vmatpush1.bf16.msra.mxu0 0
    %1015 = vmatprep.subr.bf16.mxu0 0
    %1016 = vmatpush1.bf16.msra.mxu0 0
    %1017 = vmatprep.subr.bf16.mxu0 0
    %1018 = vmatpush1.bf16.msra.mxu0 0
    %1019 = vmatprep.subr.bf16.mxu0 0
    %1020 = vmatpush1.bf16.msra.mxu0 0
    %1021 = vmatprep.subr.bf16.mxu0 0
    %1022 = vmatpush1.bf16.msra.mxu0 0
    %1023 = vmatprep.subr.bf16.mxu0 0
    %1024 = vmatpush1.bf16.msra.mxu0 0
    %1025 = vmatprep.subr.bf16.mxu0 0
    %1026 = vmatpush1.bf16.msra.mxu0 0
    %1027 = vmatprep.subr.bf16.mxu0 0
    %1028 = vmatpush1.bf16.msra.mxu0 0
    %1029 = vmatprep.subr.bf16.mxu0 0
    %1030 = vmatpush1.bf16.msra.mxu0 0
    %1031 = vmatprep.mubr.bf16.mxu0 0
    %1032 = vmatmul.mubr.bf16.gmra.mrb[0].mxu0 %v997
    %v1033 = vpop.f32.mrb[0].mxu0
    %v1034 = vadd.f32 %v994, %v1033
    %v1035 = vpop.f32.mrb[0].mxu0
    %v1036 = vpop.f32.mrb[0].mxu0
    %v1037 = vadd.f32 %v994, %v1036
    %v1038 = vpop.f32.mrb[0].mxu0
    %1039 = vdwg.mxu0
    %v1040 = vadd.f32 %v901, %v1034
    %v1041 = vadd.f32 %v902, %v1037
    %v1042 = vld [vmem:[#allocation2 + $0x9f] sm:$0x1]
    %v1043 = vld [vmem:[#allocation2 + $0xa0] sm:$0x1]
    %v1044 = vsel %vm137, %v1040, 0.0
    %1045 = vadd.xlane.f32.xlu0 %v1044
    %v1046 = vpop.xlane.xlu0 %1045
    %v1047 = vsel %vm137, %v1041, 0.0
    %1048 = vadd.xlane.f32.xlu0 %v1047
    %v1049 = vpop.xlane.xlu0 %1048
    %v1050 = vmul.f32 %v1040, %v1040
    %v1051 = vmul.f32 %v1041, %v1041
    %v1052 = vsel %vm137, %v1050, 0.0
    %1053 = vadd.xlane.f32.xlu0 %v1052
    %v1054 = vpop.xlane.xlu0 %1053
    %v1055 = vsel %vm137, %v1051, 0.0
    %1056 = vadd.xlane.f32.xlu0 %v1055
    %v1057 = vpop.xlane.xlu0 %1056
    %v1058 = vmul.f32 %v1046, 0.03125
    %v1059 = vmul.f32 %v1049, 0.03125
    %v1060 = vmul.f32 %v1054, 0.03125
    %v1061 = vmul.f32 %v1057, 0.03125
    %v1062 = vmul.f32 %v1058, %v1058
    %v1063 = vmul.f32 %v1059, %v1059
    %v1064 = vsub.f32 %v1060, %v1062
    %v1065 = vsub.f32 %v1061, %v1063
    %v1066 = vmax.f32 %v1064, 0.0
    %v1067 = vmax.f32 %v1065, 0.0
    %v1068 = vsub.f32 %v1040, %v1058
    %v1069 = vsub.f32 %v1041, %v1059
    %v1070 = vadd.f32 %v1066, 1e-12
    %v1071 = vadd.f32 %v1067, 1e-12
    %v1072 = vrsqrt.pop %v1070
    %v1073 = vrsqrt.pop %v1071
    %v1074 = vmul.f32 %v1068, %v1072
    %v1075 = vmul.f32 %v1069, %v1073
    %v1076 = vlaneseq
    %v1077 = vshrl.u32 %v1076, 7
    %v1078 = vsub.s32 0, %v1077
    %v1079 = vrot.slane %v1042, %v1078
    %v1080 = vmul.f32 %v1074, %v1079
    %v1081 = vmul.f32 %v1075, %v1079
    %v1082 = vlaneseq
    %v1083 = vshrl.u32 %v1082, 7
    %v1084 = vsub.s32 0, %v1083
    %v1085 = vrot.slane %v1043, %v1084
    %v1086 = vadd.f32 %v1080, %v1085
    %v1087 = vadd.f32 %v1081, %v1085
    %v1088 = vld [vmem:[#allocation2 + $0x1f0] sm:$0xff]
    %v1089 = vld [vmem:[#allocation2 + $0x1f8] sm:$0xff]
    %v1090 = vld [vmem:[#allocation2 + $0x200] sm:$0xff]
    %v1091 = vld [vmem:[#allocation2 + $0x208] sm:$0xff]
    %v1092 = vld [vmem:[#allocation2 + $0x230] sm:$0xff]
    %v1093 = vld [vmem:[#allocation2 + $0x238] sm:$0xff]
    %v1094 = vld [vmem:[#allocation2 + $0x240] sm:$0xff]
    %v1095 = vld [vmem:[#allocation2 + $0x248] sm:$0xff]
    %v1096 = vld [vmem:[#allocation2 + $0x270] sm:$0xff]
    %v1097 = vld [vmem:[#allocation2 + $0x278] sm:$0xff]
    %v1098 = vld [vmem:[#allocation2 + $0x280] sm:$0xff]
    %v1099 = vld [vmem:[#allocation2 + $0x288] sm:$0xff]
    %v1100 = vld [vmem:[#allocation2 + $0x2b0] sm:$0xff]
    %v1101 = vld [vmem:[#allocation2 + $0x2b8] sm:$0xff]
    %v1102 = vpack.c.bf16 %v1087, %v1086
    %v1103 = vpack.c.bf16 %v1089, %v1088
    %v1104 = vpack.c.bf16 %v1091, %v1090
    %v1105 = vld [vmem:[#allocation2 + $0xa1] sm:$0x1]
    %v1106 = vlaneseq
    %v1107 = vshrl.u32 %v1106, 7
    %v1108 = vsub.s32 0, %v1107
    %v1109 = vrot.slane %v1105, %v1108
    %v1111 = vsel %vm137, %v1102, 0
    %1113 = vmatprep.subr.bf16.mxu0 0
    %1114 = vmatpush1.bf16.msra.mxu0 %v1103
    %1115 = vmatprep.subr.bf16.mxu0 0
    %1116 = vmatpush1.bf16.msra.mxu0 %v1104
    %1117 = vmatprep.subr.bf16.mxu0 0
    %1118 = vmatpush1.bf16.msra.mxu0 0
    %1119 = vmatprep.subr.bf16.mxu0 0
    %1120 = vmatpush1.bf16.msra.mxu0 0
    %1121 = vmatprep.subr.bf16.mxu0 0
    %1122 = vmatpush1.bf16.msra.mxu0 0
    %1123 = vmatprep.subr.bf16.mxu0 0
    %1124 = vmatpush1.bf16.msra.mxu0 0
    %1125 = vmatprep.subr.bf16.mxu0 0
    %1126 = vmatpush1.bf16.msra.mxu0 0
    %1127 = vmatprep.subr.bf16.mxu0 0
    %1128 = vmatpush1.bf16.msra.mxu0 0
    %1129 = vmatprep.subr.bf16.mxu0 0
    %1130 = vmatpush1.bf16.msra.mxu0 0
    %1131 = vmatprep.subr.bf16.mxu0 0
    %1132 = vmatpush1.bf16.msra.mxu0 0
    %1133 = vmatprep.subr.bf16.mxu0 0
    %1134 = vmatpush1.bf16.msra.mxu0 0
    %1135 = vmatprep.subr.bf16.mxu0 0
    %1136 = vmatpush1.bf16.msra.mxu0 0
    %1137 = vmatprep.subr.bf16.mxu0 0
    %1138 = vmatpush1.bf16.msra.mxu0 0
    %1139 = vmatprep.subr.bf16.mxu0 0
    %1140 = vmatpush1.bf16.msra.mxu0 0
    %1141 = vmatprep.subr.bf16.mxu0 0
    %1142 = vmatpush1.bf16.msra.mxu0 0
    %1143 = vmatprep.subr.bf16.mxu0 0
    %1144 = vmatpush1.bf16.msra.mxu0 0
    %1145 = vmatprep.mubr.bf16.mxu0 0
    %1146 = vmatmul.mubr.bf16.gmra.mrb[0].mxu0 %v1111
    %v1147 = vpop.f32.mrb[0].mxu0
    %v1148 = vadd.f32 %v1109, %v1147
    %v1149 = vpop.f32.mrb[0].mxu0
    %v1150 = vpop.f32.mrb[0].mxu0
    %v1151 = vadd.f32 %v1109, %v1150
    %v1152 = vpop.f32.mrb[0].mxu0
    %1153 = vdwg.mxu0
    %v1154 = vpack.c.bf16 %v1093, %v1092
    %v1155 = vpack.c.bf16 %v1095, %v1094
    %v1156 = vld [vmem:[#allocation2 + $0xa3] sm:$0x1]
    %v1157 = vlaneseq
    %v1158 = vshrl.u32 %v1157, 7
    %v1159 = vsub.s32 0, %v1158
    %v1160 = vrot.slane %v1156, %v1159
    %1161 = vmatprep.subr.bf16.mxu0 0
    %1162 = vmatpush1.bf16.msra.mxu0 %v1154
    %1163 = vmatprep.subr.bf16.mxu0 0
    %1164 = vmatpush1.bf16.msra.mxu0 %v1155
    %1165 = vmatprep.subr.bf16.mxu0 0
    %1166 = vmatpush1.bf16.msra.mxu0 0
    %1167 = vmatprep.subr.bf16.mxu0 0
    %1168 = vmatpush1.bf16.msra.mxu0 0
    %1169 = vmatprep.subr.bf16.mxu0 0
    %1170 = vmatpush1.bf16.msra.mxu0 0
    %1171 = vmatprep.subr.bf16.mxu0 0
    %1172 = vmatpush1.bf16.msra.mxu0 0
    %1173 = vmatprep.subr.bf16.mxu0 0
    %1174 = vmatpush1.bf16.msra.mxu0 0
    %1175 = vmatprep.subr.bf16.mxu0 0
    %1176 = vmatpush1.bf16.msra.mxu0 0
    %1177 = vmatprep.subr.bf16.mxu0 0
    %1178 = vmatpush1.bf16.msra.mxu0 0
    %1179 = vmatprep.subr.bf16.mxu0 0
    %1180 = vmatpush1.bf16.msra.mxu0 0
    %1181 = vmatprep.subr.bf16.mxu0 0
    %1182 = vmatpush1.bf16.msra.mxu0 0
    %1183 = vmatprep.subr.bf16.mxu0 0
    %1184 = vmatpush1.bf16.msra.mxu0 0
    %1185 = vmatprep.subr.bf16.mxu0 0
    %1186 = vmatpush1.bf16.msra.mxu0 0
    %1187 = vmatprep.subr.bf16.mxu0 0
    %1188 = vmatpush1.bf16.msra.mxu0 0
    %1189 = vmatprep.subr.bf16.mxu0 0
    %1190 = vmatpush1.bf16.msra.mxu0 0
    %1191 = vmatprep.subr.bf16.mxu0 0
    %1192 = vmatpush1.bf16.msra.mxu0 0
    %1193 = vmatprep.mubr.bf16.mxu0 0
    %1194 = vmatmul.mubr.bf16.gmra.mrb[0].mxu0 %v1111
    %v1195 = vpop.f32.mrb[0].mxu0
    %v1196 = vadd.f32 %v1160, %v1195
    %v1197 = vpop.f32.mrb[0].mxu0
    %v1198 = vpop.f32.mrb[0].mxu0
    %v1199 = vadd.f32 %v1160, %v1198
    %v1200 = vpop.f32.mrb[0].mxu0
    %1201 = vdwg.mxu0
    %v1202 = vpack.c.bf16 %v1097, %v1096
    %v1203 = vpack.c.bf16 %v1099, %v1098
    %v1204 = vld [vmem:[#allocation2 + $0xa5] sm:$0x1]
    %v1205 = vlaneseq
    %v1206 = vshrl.u32 %v1205, 7
    %v1207 = vsub.s32 0, %v1206
    %v1208 = vrot.slane %v1204, %v1207
    %1209 = vmatprep.subr.bf16.mxu0 0
    %1210 = vmatpush1.bf16.msra.mxu0 %v1202
    %1211 = vmatprep.subr.bf16.mxu0 0
    %1212 = vmatpush1.bf16.msra.mxu0 %v1203
    %1213 = vmatprep.subr.bf16.mxu0 0
    %1214 = vmatpush1.bf16.msra.mxu0 0
    %1215 = vmatprep.subr.bf16.mxu0 0
    %1216 = vmatpush1.bf16.msra.mxu0 0
    %1217 = vmatprep.subr.bf16.mxu0 0
    %1218 = vmatpush1.bf16.msra.mxu0 0
    %1219 = vmatprep.subr.bf16.mxu0 0
    %1220 = vmatpush1.bf16.msra.mxu0 0
    %1221 = vmatprep.subr.bf16.mxu0 0
    %1222 = vmatpush1.bf16.msra.mxu0 0
    %1223 = vmatprep.subr.bf16.mxu0 0
    %1224 = vmatpush1.bf16.msra.mxu0 0
    %1225 = vmatprep.subr.bf16.mxu0 0
    %1226 = vmatpush1.bf16.msra.mxu0 0
    %1227 = vmatprep.subr.bf16.mxu0 0
    %1228 = vmatpush1.bf16.msra.mxu0 0
    %1229 = vmatprep.subr.bf16.mxu0 0
    %1230 = vmatpush1.bf16.msra.mxu0 0
    %1231 = vmatprep.subr.bf16.mxu0 0
    %1232 = vmatpush1.bf16.msra.mxu0 0
    %1233 = vmatprep.subr.bf16.mxu0 0
    %1234 = vmatpush1.bf16.msra.mxu0 0
    %1235 = vmatprep.subr.bf16.mxu0 0
    %1236 = vmatpush1.bf16.msra.mxu0 0
    %1237 = vmatprep.subr.bf16.mxu0 0
    %1238 = vmatpush1.bf16.msra.mxu0 0
    %1239 = vmatprep.subr.bf16.mxu0 0
    %1240 = vmatpush1.bf16.msra.mxu0 0
    %1241 = vmatprep.mubr.bf16.mxu0 0
    %1242 = vmatmul.mubr.bf16.gmra.mrb[0].mxu0 %v1111
    %v1243 = vpop.f32.mrb[0].mxu0
    %v1244 = vadd.f32 %v1208, %v1243
    %v1245 = vpop.f32.mrb[0].mxu0
    %v1246 = vpop.f32.mrb[0].mxu0
    %v1247 = vadd.f32 %v1208, %v1246
    %v1248 = vpop.f32.mrb[0].mxu0
    %1249 = vdwg.mxu0
    %v1250 = vpack.c.bf16 %v1151, %v1148
    %v1251 = vpack.c.bf16 %v1199, %v1196
    %v1253 = vsel %vm365, %v1250, 0
    %v1256 = vsel %vm365, %v1251, 0
    %1258 = vmatprep.subr.bf16.mxu0 0
    %1259 = vmatpush1.bf16.xpose.msra.mxu0 %v1256
    %1260 = vmatprep.subr.bf16.mxu0 0
    %1261 = vmatpush1.bf16.xpose.msra.mxu0 0
    %1262 = vmatprep.subr.bf16.mxu0 0
    %1263 = vmatpush1.bf16.xpose.msra.mxu0 0
    %1264 = vmatprep.subr.bf16.mxu0 0
    %1265 = vmatpush1.bf16.xpose.msra.mxu0 0
    %1266 = vmatprep.subr.bf16.mxu0 0
    %1267 = vmatpush1.bf16.xpose.msra.mxu0 0
    %1268 = vmatprep.subr.bf16.mxu0 0
    %1269 = vmatpush1.bf16.xpose.msra.mxu0 0
    %1270 = vmatprep.subr.bf16.mxu0 0
    %1271 = vmatpush1.bf16.xpose.msra.mxu0 0
    %1272 = vmatprep.subr.bf16.mxu0 0
    %1273 = vmatpush1.bf16.xpose.msra.mxu0 0
    %1274 = vmatprep.subr.bf16.mxu0 0
    %1275 = vmatpush1.bf16.xpose.msra.mxu0 0
    %1276 = vmatprep.subr.bf16.mxu0 0
    %1277 = vmatpush1.bf16.xpose.msra.mxu0 0
    %1278 = vmatprep.subr.bf16.mxu0 0
    %1279 = vmatpush1.bf16.xpose.msra.mxu0 0
    %1280 = vmatprep.subr.bf16.mxu0 0
    %1281 = vmatpush1.bf16.xpose.msra.mxu0 0
    %1282 = vmatprep.subr.bf16.mxu0 0
    %1283 = vmatpush1.bf16.xpose.msra.mxu0 0
    %1284 = vmatprep.subr.bf16.mxu0 0
    %1285 = vmatpush1.bf16.xpose.msra.mxu0 0
    %1286 = vmatprep.subr.bf16.mxu0 0
    %1287 = vmatpush1.bf16.xpose.msra.mxu0 0
    %1288 = vmatprep.subr.bf16.mxu0 0
    %1289 = vmatpush1.bf16.xpose.msra.mxu0 0
    %1290 = vmatprep.mubr.bf16.mxu0 0
    %1291 = vmatmul.mubr.bf16.gmra.mrb[0].mxu0 %v1253
    %v1292 = vpop.f32.mrb[0].mxu0
    %v1293 = vadd.f32 %v199, %v1292
    %v1294 = vpop.f32.mrb[0].mxu0
    %v1295 = vpop.f32.mrb[0].mxu0
    %v1296 = vadd.f32 %v200, %v1295
    %v1297 = vpop.f32.mrb[0].mxu0
    %1298 = vdwg.mxu0
    %v1299 = vsel %vm365, %v1293, -inf
    %1300 = vmax.xlane.f32.xlu0 %v1299
    %v1301 = vpop.xlane.xlu0 %1300
    %v1302 = vsel %vm365, %v1296, -inf
    %1303 = vmax.xlane.f32.xlu0 %v1302
    %v1304 = vpop.xlane.xlu0 %1303
    %v1305 = vsub.f32 %v1293, %v1301
    %v1306 = vsub.f32 %v1296, %v1304
    %v1307 = vmul.f32 %v1305, 1.442695
    %v1308 = vpow.pop %v1307
    %v1309 = vmul.f32 %v1306, 1.442695
    %v1310 = vpow.pop %v1309
    %v1311 = vsel %vm365, %v1308, 0.0
    %1312 = vadd.xlane.f32.xlu0 %v1311
    %v1313 = vpop.xlane.xlu0 %1312
    %v1314 = vsel %vm365, %v1310, 0.0
    %1315 = vadd.xlane.f32.xlu0 %v1314
    %v1316 = vpop.xlane.xlu0 %1315
    %v1317 = vrcp.pop %v1313
    %v1318 = vrcp.pop %v1316
    %v1319 = vmul.f32 %v1308, %v1317
    %v1320 = vmul.f32 %v1310, %v1318
    %v1321 = vpack.c.bf16 %v1320, %v1319
    %v1322 = vpack.c.bf16 %v1247, %v1244
    %v1324 = vsel %vm365, %v1321, 0
    %1326 = vmatprep.subr.bf16.mxu0 0
    %1327 = vmatpush1.bf16.msra.mxu0 %v1322
    %1328 = vmatprep.subr.bf16.mxu0 0
    %1329 = vmatpush1.bf16.msra.mxu0 0
    %1330 = vmatprep.subr.bf16.mxu0 0
    %1331 = vmatpush1.bf16.msra.mxu0 0
    %1332 = vmatprep.subr.bf16.mxu0 0
    %1333 = vmatpush1.bf16.msra.mxu0 0
    %1334 = vmatprep.subr.bf16.mxu0 0
    %1335 = vmatpush1.bf16.msra.mxu0 0
    %1336 = vmatprep.subr.bf16.mxu0 0
    %1337 = vmatpush1.bf16.msra.mxu0 0
    %1338 = vmatprep.subr.bf16.mxu0 0
    %1339 = vmatpush1.bf16.msra.mxu0 0
    %1340 = vmatprep.subr.bf16.mxu0 0
    %1341 = vmatpush1.bf16.msra.mxu0 0
    %1342 = vmatprep.subr.bf16.mxu0 0
    %1343 = vmatpush1.bf16.msra.mxu0 0
    %1344 = vmatprep.subr.bf16.mxu0 0
    %1345 = vmatpush1.bf16.msra.mxu0 0
    %1346 = vmatprep.subr.bf16.mxu0 0
    %1347 = vmatpush1.bf16.msra.mxu0 0
    %1348 = vmatprep.subr.bf16.mxu0 0
    %1349 = vmatpush1.bf16.msra.mxu0 0
    %1350 = vmatprep.subr.bf16.mxu0 0
    %1351 = vmatpush1.bf16.msra.mxu0 0
    %1352 = vmatprep.subr.bf16.mxu0 0
    %1353 = vmatpush1.bf16.msra.mxu0 0
    %1354 = vmatprep.subr.bf16.mxu0 0
    %1355 = vmatpush1.bf16.msra.mxu0 0
    %1356 = vmatprep.subr.bf16.mxu0 0
    %1357 = vmatpush1.bf16.msra.mxu0 0
    %1358 = vmatprep.mubr.bf16.mxu0 0
    %1359 = vmatmul.mubr.bf16.gmra.mrb[0].mxu0 %v1324
    %v1360 = vpop.f32.mrb[0].mxu0
    %v1361 = vadd.f32 0.0, %v1360
    %v1362 = vpop.f32.mrb[0].mxu0
    %v1363 = vpop.f32.mrb[0].mxu0
    %v1364 = vadd.f32 0.0, %v1363
    %v1365 = vpop.f32.mrb[0].mxu0
    %1366 = vdwg.mxu0
    %v1367 = vpack.c.bf16 %v1364, %v1361
    %v1368 = vpack.c.bf16 %v1101, %v1100
    %v1369 = vld [vmem:[#allocation2 + $0x210] sm:$0xff]
    %v1370 = vld [vmem:[#allocation2 + $0x218] sm:$0xff]
    %v1371 = vld [vmem:[#allocation2 + $0x220] sm:$0xff]
    %v1372 = vld [vmem:[#allocation2 + $0x228] sm:$0xff]
    %v1373 = vld [vmem:[#allocation2 + $0x250] sm:$0xff]
    %v1374 = vld [vmem:[#allocation2 + $0x258] sm:$0xff]
    %v1375 = vld [vmem:[#allocation2 + $0x260] sm:$0xff]
    %v1376 = vld [vmem:[#allocation2 + $0x268] sm:$0xff]
    %v1377 = vld [vmem:[#allocation2 + $0x290] sm:$0xff]
    %v1378 = vld [vmem:[#allocation2 + $0x298] sm:$0xff]
    %v1379 = vld [vmem:[#allocation2 + $0x2a0] sm:$0xff]
    %v1380 = vld [vmem:[#allocation2 + $0x2a8] sm:$0xff]
    %v1381 = vld [vmem:[#allocation2 + $0x2c0] sm:$0xff]
    %v1382 = vld [vmem:[#allocation2 + $0x2c8] sm:$0xff]
    %v1383 = vpack.c.bf16 %v1370, %v1369
    %v1384 = vpack.c.bf16 %v1372, %v1371
    %v1385 = vld [vmem:[#allocation2 + $0xa2] sm:$0x1]
    %v1386 = vlaneseq
    %v1387 = vshrl.u32 %v1386, 7
    %v1388 = vsub.s32 0, %v1387
    %v1389 = vrot.slane %v1385, %v1388
    %1390 = vmatprep.subr.bf16.mxu0 0
    %1391 = vmatpush1.bf16.msra.mxu0 %v1383
    %1392 = vmatprep.subr.bf16.mxu0 0
    %1393 = vmatpush1.bf16.msra.mxu0 %v1384
    %1394 = vmatprep.subr.bf16.mxu0 0
    %1395 = vmatpush1.bf16.msra.mxu0 0
    %1396 = vmatprep.subr.bf16.mxu0 0
    %1397 = vmatpush1.bf16.msra.mxu0 0
    %1398 = vmatprep.subr.bf16.mxu0 0
    %1399 = vmatpush1.bf16.msra.mxu0 0
    %1400 = vmatprep.subr.bf16.mxu0 0
    %1401 = vmatpush1.bf16.msra.mxu0 0
    %1402 = vmatprep.subr.bf16.mxu0 0
    %1403 = vmatpush1.bf16.msra.mxu0 0
    %1404 = vmatprep.subr.bf16.mxu0 0
    %1405 = vmatpush1.bf16.msra.mxu0 0
    %1406 = vmatprep.subr.bf16.mxu0 0
    %1407 = vmatpush1.bf16.msra.mxu0 0
    %1408 = vmatprep.subr.bf16.mxu0 0
    %1409 = vmatpush1.bf16.msra.mxu0 0
    %1410 = vmatprep.subr.bf16.mxu0 0
    %1411 = vmatpush1.bf16.msra.mxu0 0
    %1412 = vmatprep.subr.bf16.mxu0 0
    %1413 = vmatpush1.bf16.msra.mxu0 0
    %1414 = vmatprep.subr.bf16.mxu0 0
    %1415 = vmatpush1.bf16.msra.mxu0 0
    %1416 = vmatprep.subr.bf16.mxu0 0
    %1417 = vmatpush1.bf16.msra.mxu0 0
    %1418 = vmatprep.subr.bf16.mxu0 0
    %1419 = vmatpush1.bf16.msra.mxu0 0
    %1420 = vmatprep.subr.bf16.mxu0 0
    %1421 = vmatpush1.bf16.msra.mxu0 0
    %1422 = vmatprep.mubr.bf16.mxu0 0
    %1423 = vmatmul.mubr.bf16.gmra.mrb[0].mxu0 %v1111
    %v1424 = vpop.f32.mrb[0].mxu0
    %v1425 = vadd.f32 %v1389, %v1424
    %v1426 = vpop.f32.mrb[0].mxu0
    %v1427 = vpop.f32.mrb[0].mxu0
    %v1428 = vadd.f32 %v1389, %v1427
    %v1429 = vpop.f32.mrb[0].mxu0
    %1430 = vdwg.mxu0
    %v1431 = vpack.c.bf16 %v1374, %v1373
    %v1432 = vpack.c.bf16 %v1376, %v1375
    %v1433 = vld [vmem:[#allocation2 + $0xa4] sm:$0x1]
    %v1434 = vlaneseq
    %v1435 = vshrl.u32 %v1434, 7
    %v1436 = vsub.s32 0, %v1435
    %v1437 = vrot.slane %v1433, %v1436
    %1438 = vmatprep.subr.bf16.mxu0 0
    %1439 = vmatpush1.bf16.msra.mxu0 %v1431
    %1440 = vmatprep.subr.bf16.mxu0 0
    %1441 = vmatpush1.bf16.msra.mxu0 %v1432
    %1442 = vmatprep.subr.bf16.mxu0 0
    %1443 = vmatpush1.bf16.msra.mxu0 0
    %1444 = vmatprep.subr.bf16.mxu0 0
    %1445 = vmatpush1.bf16.msra.mxu0 0
    %1446 = vmatprep.subr.bf16.mxu0 0
    %1447 = vmatpush1.bf16.msra.mxu0 0
    %1448 = vmatprep.subr.bf16.mxu0 0
    %1449 = vmatpush1.bf16.msra.mxu0 0
    %1450 = vmatprep.subr.bf16.mxu0 0
    %1451 = vmatpush1.bf16.msra.mxu0 0
    %1452 = vmatprep.subr.bf16.mxu0 0
    %1453 = vmatpush1.bf16.msra.mxu0 0
    %1454 = vmatprep.subr.bf16.mxu0 0
    %1455 = vmatpush1.bf16.msra.mxu0 0
    %1456 = vmatprep.subr.bf16.mxu0 0
    %1457 = vmatpush1.bf16.msra.mxu0 0
    %1458 = vmatprep.subr.bf16.mxu0 0
    %1459 = vmatpush1.bf16.msra.mxu0 0
    %1460 = vmatprep.subr.bf16.mxu0 0
    %1461 = vmatpush1.bf16.msra.mxu0 0
    %1462 = vmatprep.subr.bf16.mxu0 0
    %1463 = vmatpush1.bf16.msra.mxu0 0
    %1464 = vmatprep.subr.bf16.mxu0 0
    %1465 = vmatpush1.bf16.msra.mxu0 0
    %1466 = vmatprep.subr.bf16.mxu0 0
    %1467 = vmatpush1.bf16.msra.mxu0 0
    %1468 = vmatprep.subr.bf16.mxu0 0
    %1469 = vmatpush1.bf16.msra.mxu0 0
    %1470 = vmatprep.mubr.bf16.mxu0 0
    %1471 = vmatmul.mubr.bf16.gmra.mrb[0].mxu0 %v1111
    %v1472 = vpop.f32.mrb[0].mxu0
    %v1473 = vadd.f32 %v1437, %v1472
    %v1474 = vpop.f32.mrb[0].mxu0
    %v1475 = vpop.f32.mrb[0].mxu0
    %v1476 = vadd.f32 %v1437, %v1475
    %v1477 = vpop.f32.mrb[0].mxu0
    %1478 = vdwg.mxu0
    %v1479 = vpack.c.bf16 %v1378, %v1377
    %v1480 = vpack.c.bf16 %v1380, %v1379
    %v1481 = vld [vmem:[#allocation2 + $0xa6] sm:$0x1]
    %v1482 = vlaneseq
    %v1483 = vshrl.u32 %v1482, 7
    %v1484 = vsub.s32 0, %v1483
    %v1485 = vrot.slane %v1481, %v1484
    %1486 = vmatprep.subr.bf16.mxu0 0
    %1487 = vmatpush1.bf16.msra.mxu0 %v1479
    %1488 = vmatprep.subr.bf16.mxu0 0
    %1489 = vmatpush1.bf16.msra.mxu0 %v1480
    %1490 = vmatprep.subr.bf16.mxu0 0
    %1491 = vmatpush1.bf16.msra.mxu0 0
    %1492 = vmatprep.subr.bf16.mxu0 0
    %1493 = vmatpush1.bf16.msra.mxu0 0
    %1494 = vmatprep.subr.bf16.mxu0 0
    %1495 = vmatpush1.bf16.msra.mxu0 0
    %1496 = vmatprep.subr.bf16.mxu0 0
    %1497 = vmatpush1.bf16.msra.mxu0 0
    %1498 = vmatprep.subr.bf16.mxu0 0
    %1499 = vmatpush1.bf16.msra.mxu0 0
    %1500 = vmatprep.subr.bf16.mxu0 0
    %1501 = vmatpush1.bf16.msra.mxu0 0
    %1502 = vmatprep.subr.bf16.mxu0 0
    %1503 = vmatpush1.bf16.msra.mxu0 0
    %1504 = vmatprep.subr.bf16.mxu0 0
    %1505 = vmatpush1.bf16.msra.mxu0 0
    %1506 = vmatprep.subr.bf16.mxu0 0
    %1507 = vmatpush1.bf16.msra.mxu0 0
    %1508 = vmatprep.subr.bf16.mxu0 0
    %1509 = vmatpush1.bf16.msra.mxu0 0
    %1510 = vmatprep.subr.bf16.mxu0 0
    %1511 = vmatpush1.bf16.msra.mxu0 0
    %1512 = vmatprep.subr.bf16.mxu0 0
    %1513 = vmatpush1.bf16.msra.mxu0 0
    %1514 = vmatprep.subr.bf16.mxu0 0
    %1515 = vmatpush1.bf16.msra.mxu0 0
    %1516 = vmatprep.subr.bf16.mxu0 0
    %1517 = vmatpush1.bf16.msra.mxu0 0
    %1518 = vmatprep.mubr.bf16.mxu0 0
    %1519 = vmatmul.mubr.bf16.gmra.mrb[0].mxu0 %v1111
    %v1520 = vpop.f32.mrb[0].mxu0
    %v1521 = vadd.f32 %v1485, %v1520
    %v1522 = vpop.f32.mrb[0].mxu0
    %v1523 = vpop.f32.mrb[0].mxu0
    %v1524 = vadd.f32 %v1485, %v1523
    %v1525 = vpop.f32.mrb[0].mxu0
    %1526 = vdwg.mxu0
    %v1527 = vpack.c.bf16 %v1428, %v1425
    %v1528 = vpack.c.bf16 %v1476, %v1473
    %v1530 = vsel %vm365, %v1527, 0
    %v1533 = vsel %vm365, %v1528, 0
    %1535 = vmatprep.subr.bf16.mxu0 0
    %1536 = vmatpush1.bf16.xpose.msra.mxu0 %v1533
    %1537 = vmatprep.subr.bf16.mxu0 0
    %1538 = vmatpush1.bf16.xpose.msra.mxu0 0
    %1539 = vmatprep.subr.bf16.mxu0 0
    %1540 = vmatpush1.bf16.xpose.msra.mxu0 0
    %1541 = vmatprep.subr.bf16.mxu0 0
    %1542 = vmatpush1.bf16.xpose.msra.mxu0 0
    %1543 = vmatprep.subr.bf16.mxu0 0
    %1544 = vmatpush1.bf16.xpose.msra.mxu0 0
    %1545 = vmatprep.subr.bf16.mxu0 0
    %1546 = vmatpush1.bf16.xpose.msra.mxu0 0
    %1547 = vmatprep.subr.bf16.mxu0 0
    %1548 = vmatpush1.bf16.xpose.msra.mxu0 0
    %1549 = vmatprep.subr.bf16.mxu0 0
    %1550 = vmatpush1.bf16.xpose.msra.mxu0 0
    %1551 = vmatprep.subr.bf16.mxu0 0
    %1552 = vmatpush1.bf16.xpose.msra.mxu0 0
    %1553 = vmatprep.subr.bf16.mxu0 0
    %1554 = vmatpush1.bf16.xpose.msra.mxu0 0
    %1555 = vmatprep.subr.bf16.mxu0 0
    %1556 = vmatpush1.bf16.xpose.msra.mxu0 0
    %1557 = vmatprep.subr.bf16.mxu0 0
    %1558 = vmatpush1.bf16.xpose.msra.mxu0 0
    %1559 = vmatprep.subr.bf16.mxu0 0
    %1560 = vmatpush1.bf16.xpose.msra.mxu0 0
    %1561 = vmatprep.subr.bf16.mxu0 0
    %1562 = vmatpush1.bf16.xpose.msra.mxu0 0
    %1563 = vmatprep.subr.bf16.mxu0 0
    %1564 = vmatpush1.bf16.xpose.msra.mxu0 0
    %1565 = vmatprep.subr.bf16.mxu0 0
    %1566 = vmatpush1.bf16.xpose.msra.mxu0 0
    %1567 = vmatprep.mubr.bf16.mxu0 0
    %1568 = vmatmul.mubr.bf16.gmra.mrb[0].mxu0 %v1530
    %v1569 = vpop.f32.mrb[0].mxu0
    %v1570 = vadd.f32 %v199, %v1569
    %v1571 = vpop.f32.mrb[0].mxu0
    %v1572 = vpop.f32.mrb[0].mxu0
    %v1573 = vadd.f32 %v200, %v1572
    %v1574 = vpop.f32.mrb[0].mxu0
    %1575 = vdwg.mxu0
    %v1576 = vsel %vm365, %v1570, -inf
    %1577 = vmax.xlane.f32.xlu0 %v1576
    %v1578 = vpop.xlane.xlu0 %1577
    %v1579 = vsel %vm365, %v1573, -inf
    %1580 = vmax.xlane.f32.xlu0 %v1579
    %v1581 = vpop.xlane.xlu0 %1580
    %v1582 = vsub.f32 %v1570, %v1578
    %v1583 = vsub.f32 %v1573, %v1581
    %v1584 = vmul.f32 %v1582, 1.442695
    %v1585 = vpow.pop %v1584
    %v1586 = vmul.f32 %v1583, 1.442695
    %v1587 = vpow.pop %v1586
    %v1588 = vsel %vm365, %v1585, 0.0
    %1589 = vadd.xlane.f32.xlu0 %v1588
    %v1590 = vpop.xlane.xlu0 %1589
    %v1591 = vsel %vm365, %v1587, 0.0
    %1592 = vadd.xlane.f32.xlu0 %v1591
    %v1593 = vpop.xlane.xlu0 %1592
    %v1594 = vrcp.pop %v1590
    %v1595 = vrcp.pop %v1593
    %v1596 = vmul.f32 %v1585, %v1594
    %v1597 = vmul.f32 %v1587, %v1595
    %v1598 = vpack.c.bf16 %v1597, %v1596
    %v1599 = vpack.c.bf16 %v1524, %v1521
    %v1601 = vsel %vm365, %v1598, 0
    %1603 = vmatprep.subr.bf16.mxu0 0
    %1604 = vmatpush1.bf16.msra.mxu0 %v1599
    %1605 = vmatprep.subr.bf16.mxu0 0
    %1606 = vmatpush1.bf16.msra.mxu0 0
    %1607 = vmatprep.subr.bf16.mxu0 0
    %1608 = vmatpush1.bf16.msra.mxu0 0
    %1609 = vmatprep.subr.bf16.mxu0 0
    %1610 = vmatpush1.bf16.msra.mxu0 0
    %1611 = vmatprep.subr.bf16.mxu0 0
    %1612 = vmatpush1.bf16.msra.mxu0 0
    %1613 = vmatprep.subr.bf16.mxu0 0
    %1614 = vmatpush1.bf16.msra.mxu0 0
    %1615 = vmatprep.subr.bf16.mxu0 0
    %1616 = vmatpush1.bf16.msra.mxu0 0
    %1617 = vmatprep.subr.bf16.mxu0 0
    %1618 = vmatpush1.bf16.msra.mxu0 0
    %1619 = vmatprep.subr.bf16.mxu0 0
    %1620 = vmatpush1.bf16.msra.mxu0 0
    %1621 = vmatprep.subr.bf16.mxu0 0
    %1622 = vmatpush1.bf16.msra.mxu0 0
    %1623 = vmatprep.subr.bf16.mxu0 0
    %1624 = vmatpush1.bf16.msra.mxu0 0
    %1625 = vmatprep.subr.bf16.mxu0 0
    %1626 = vmatpush1.bf16.msra.mxu0 0
    %1627 = vmatprep.subr.bf16.mxu0 0
    %1628 = vmatpush1.bf16.msra.mxu0 0
    %1629 = vmatprep.subr.bf16.mxu0 0
    %1630 = vmatpush1.bf16.msra.mxu0 0
    %1631 = vmatprep.subr.bf16.mxu0 0
    %1632 = vmatpush1.bf16.msra.mxu0 0
    %1633 = vmatprep.subr.bf16.mxu0 0
    %1634 = vmatpush1.bf16.msra.mxu0 0
    %1635 = vmatprep.mubr.bf16.mxu0 0
    %1636 = vmatmul.mubr.bf16.gmra.mrb[0].mxu0 %v1601
    %v1637 = vpop.f32.mrb[0].mxu0
    %v1638 = vadd.f32 0.0, %v1637
    %v1639 = vpop.f32.mrb[0].mxu0
    %v1640 = vpop.f32.mrb[0].mxu0
    %v1641 = vadd.f32 0.0, %v1640
    %v1642 = vpop.f32.mrb[0].mxu0
    %1643 = vdwg.mxu0
    %v1644 = vpack.c.bf16 %v1641, %v1638
    %v1645 = vpack.c.bf16 %v1382, %v1381
    %v1647 = vsel %vm365, %v1644, 0
    %1649 = vmatprep.subr.bf16.mxu0 0
    %1650 = vmatpush1.bf16.msra.mxu0 %v1645
    %1651 = vmatprep.subr.bf16.mxu0 0
    %1652 = vmatpush1.bf16.msra.mxu0 0
    %1653 = vmatprep.subr.bf16.mxu0 0
    %1654 = vmatpush1.bf16.msra.mxu0 0
    %1655 = vmatprep.subr.bf16.mxu0 0
    %1656 = vmatpush1.bf16.msra.mxu0 0
    %1657 = vmatprep.subr.bf16.mxu0 0
    %1658 = vmatpush1.bf16.msra.mxu0 0
    %1659 = vmatprep.subr.bf16.mxu0 0
    %1660 = vmatpush1.bf16.msra.mxu0 0
    %1661 = vmatprep.subr.bf16.mxu0 0
    %1662 = vmatpush1.bf16.msra.mxu0 0
    %1663 = vmatprep.subr.bf16.mxu0 0
    %1664 = vmatpush1.bf16.msra.mxu0 0
    %1665 = vmatprep.subr.bf16.mxu0 0
    %1666 = vmatpush1.bf16.msra.mxu0 0
    %1667 = vmatprep.subr.bf16.mxu0 0
    %1668 = vmatpush1.bf16.msra.mxu0 0
    %1669 = vmatprep.subr.bf16.mxu0 0
    %1670 = vmatpush1.bf16.msra.mxu0 0
    %1671 = vmatprep.subr.bf16.mxu0 0
    %1672 = vmatpush1.bf16.msra.mxu0 0
    %1673 = vmatprep.subr.bf16.mxu0 0
    %1674 = vmatpush1.bf16.msra.mxu0 0
    %1675 = vmatprep.subr.bf16.mxu0 0
    %1676 = vmatpush1.bf16.msra.mxu0 0
    %1677 = vmatprep.subr.bf16.mxu0 0
    %1678 = vmatpush1.bf16.msra.mxu0 0
    %1679 = vmatprep.subr.bf16.mxu0 0
    %1680 = vmatpush1.bf16.msra.mxu0 0
    %1681 = vmatprep.mubr.bf16.mxu0 0
    %1682 = vmatmul.mubr.bf16.gmra.mrb[0].mxu0 %v1647
    %v1683 = vpop.f32.mrb[0].mxu0
    %v1684 = vadd.f32 0.0, %v1683
    %v1685 = vpop.f32.mrb[0].mxu0
    %v1686 = vpop.f32.mrb[0].mxu0
    %v1687 = vadd.f32 0.0, %v1686
    %v1688 = vpop.f32.mrb[0].mxu0
    %1689 = vdwg.mxu0
    %v1691 = vsel %vm365, %v1367, 0
    %1693 = vmatprep.subr.bf16.mxu0 0
    %1694 = vmatpush1.bf16.msra.mxu0 %v1368
    %1695 = vmatprep.subr.bf16.mxu0 0
    %1696 = vmatpush1.bf16.msra.mxu0 0
    %1697 = vmatprep.subr.bf16.mxu0 0
    %1698 = vmatpush1.bf16.msra.mxu0 0
    %1699 = vmatprep.subr.bf16.mxu0 0
    %1700 = vmatpush1.bf16.msra.mxu0 0
    %1701 = vmatprep.subr.bf16.mxu0 0
    %1702 = vmatpush1.bf16.msra.mxu0 0
    %1703 = vmatprep.subr.bf16.mxu0 0
    %1704 = vmatpush1.bf16.msra.mxu0 0
    %1705 = vmatprep.subr.bf16.mxu0 0
    %1706 = vmatpush1.bf16.msra.mxu0 0
    %1707 = vmatprep.subr.bf16.mxu0 0
    %1708 = vmatpush1.bf16.msra.mxu0 0
    %1709 = vmatprep.subr.bf16.mxu0 0
    %1710 = vmatpush1.bf16.msra.mxu0 0
    %1711 = vmatprep.subr.bf16.mxu0 0
    %1712 = vmatpush1.bf16.msra.mxu0 0
    %1713 = vmatprep.subr.bf16.mxu0 0
    %1714 = vmatpush1.bf16.msra.mxu0 0
    %1715 = vmatprep.subr.bf16.mxu0 0
    %1716 = vmatpush1.bf16.msra.mxu0 0
    %1717 = vmatprep.subr.bf16.mxu0 0
    %1718 = vmatpush1.bf16.msra.mxu0 0
    %1719 = vmatprep.subr.bf16.mxu0 0
    %1720 = vmatpush1.bf16.msra.mxu0 0
    %1721 = vmatprep.subr.bf16.mxu0 0
    %1722 = vmatpush1.bf16.msra.mxu0 0
    %1723 = vmatprep.subr.bf16.mxu0 0
    %1724 = vmatpush1.bf16.msra.mxu0 0
    %1725 = vmatprep.mubr.bf16.mxu0 0
    %1726 = vmatmul.mubr.bf16.gmra.mrb[0].mxu0 %v1691
    %v1727 = vpop.f32.mrb[0].mxu0
    %v1728 = vadd.f32 %v1684, %v1727
    %v1729 = vpop.f32.mrb[0].mxu0
    %v1730 = vpop.f32.mrb[0].mxu0
    %v1731 = vadd.f32 %v1687, %v1730
    %v1732 = vpop.f32.mrb[0].mxu0
    %1733 = vdwg.mxu0
    %v1734 = vld [vmem:[#allocation2 + $0xa7] sm:$0x1]
    %v1735 = vlaneseq
    %v1736 = vshrl.u32 %v1735, 7
    %v1737 = vsub.s32 0, %v1736
    %v1738 = vrot.slane %v1734, %v1737
    %v1739 = vadd.f32 %v1728, %v1738
    %v1740 = vadd.f32 %v1731, %v1738
    %v1741 = vadd.f32 %v1086, %v1739
    %v1742 = vadd.f32 %v1087, %v1740
    %v1743 = vld [vmem:[#allocation2 + $0xa8] sm:$0x1]
    %v1744 = vld [vmem:[#allocation2 + $0xa9] sm:$0x1]
    %v1745 = vsel %vm137, %v1741, 0.0
    %1746 = vadd.xlane.f32.xlu0 %v1745
    %v1747 = vpop.xlane.xlu0 %1746
    %v1748 = vsel %vm137, %v1742, 0.0
    %1749 = vadd.xlane.f32.xlu0 %v1748
    %v1750 = vpop.xlane.xlu0 %1749
    %v1751 = vmul.f32 %v1741, %v1741
    %v1752 = vmul.f32 %v1742, %v1742
    %v1753 = vsel %vm137, %v1751, 0.0
    %1754 = vadd.xlane.f32.xlu0 %v1753
    %v1755 = vpop.xlane.xlu0 %1754
    %v1756 = vsel %vm137, %v1752, 0.0
    %1757 = vadd.xlane.f32.xlu0 %v1756
    %v1758 = vpop.xlane.xlu0 %1757
    %v1759 = vmul.f32 %v1747, 0.03125
    %v1760 = vmul.f32 %v1750, 0.03125
    %v1761 = vmul.f32 %v1755, 0.03125
    %v1762 = vmul.f32 %v1758, 0.03125
    %v1763 = vmul.f32 %v1759, %v1759
    %v1764 = vmul.f32 %v1760, %v1760
    %v1765 = vsub.f32 %v1761, %v1763
    %v1766 = vsub.f32 %v1762, %v1764
    %v1767 = vmax.f32 %v1765, 0.0
    %v1768 = vmax.f32 %v1766, 0.0
    %v1769 = vsub.f32 %v1741, %v1759
    %v1770 = vsub.f32 %v1742, %v1760
    %v1771 = vadd.f32 %v1767, 1e-12
    %v1772 = vadd.f32 %v1768, 1e-12
    %v1773 = vrsqrt.pop %v1771
    %v1774 = vrsqrt.pop %v1772
    %v1775 = vmul.f32 %v1769, %v1773
    %v1776 = vmul.f32 %v1770, %v1774
    %v1777 = vlaneseq
    %v1778 = vshrl.u32 %v1777, 7
    %v1779 = vsub.s32 0, %v1778
    %v1780 = vrot.slane %v1743, %v1779
    %v1781 = vmul.f32 %v1775, %v1780
    %v1782 = vmul.f32 %v1776, %v1780
    %v1783 = vlaneseq
    %v1784 = vshrl.u32 %v1783, 7
    %v1785 = vsub.s32 0, %v1784
    %v1786 = vrot.slane %v1744, %v1785
    %v1787 = vadd.f32 %v1781, %v1786
    %v1788 = vadd.f32 %v1782, %v1786
    %v1789 = vld [vmem:[#allocation2 + $0x2d0] sm:$0xff]
    %v1790 = vld [vmem:[#allocation2 + $0x2d8] sm:$0xff]
    %v1791 = vld [vmem:[#allocation2 + $0x2e0] sm:$0xff]
    %v1792 = vld [vmem:[#allocation2 + $0x2e8] sm:$0xff]
    %v1793 = vpack.c.bf16 %v1788, %v1787
    %v1794 = vpack.c.bf16 %v1790, %v1789
    %v1795 = vpack.c.bf16 %v1792, %v1791
    %v1796 = vld [vmem:[#allocation2 + $0xaa] sm:$0x1]
    %v1797 = vlaneseq
    %v1798 = vshrl.u32 %v1797, 7
    %v1799 = vsub.s32 0, %v1798
    %v1800 = vrot.slane %v1796, %v1799
    %v1802 = vsel %vm137, %v1793, 0
    %1804 = vmatprep.subr.bf16.mxu0 0
    %1805 = vmatpush1.bf16.msra.mxu0 %v1794
    %1806 = vmatprep.subr.bf16.mxu0 0
    %1807 = vmatpush1.bf16.msra.mxu0 %v1795
    %1808 = vmatprep.subr.bf16.mxu0 0
    %1809 = vmatpush1.bf16.msra.mxu0 0
    %1810 = vmatprep.subr.bf16.mxu0 0
    %1811 = vmatpush1.bf16.msra.mxu0 0
    %1812 = vmatprep.subr.bf16.mxu0 0
    %1813 = vmatpush1.bf16.msra.mxu0 0
    %1814 = vmatprep.subr.bf16.mxu0 0
    %1815 = vmatpush1.bf16.msra.mxu0 0
    %1816 = vmatprep.subr.bf16.mxu0 0
    %1817 = vmatpush1.bf16.msra.mxu0 0
    %1818 = vmatprep.subr.bf16.mxu0 0
    %1819 = vmatpush1.bf16.msra.mxu0 0
    %1820 = vmatprep.subr.bf16.mxu0 0
    %1821 = vmatpush1.bf16.msra.mxu0 0
    %1822 = vmatprep.subr.bf16.mxu0 0
    %1823 = vmatpush1.bf16.msra.mxu0 0
    %1824 = vmatprep.subr.bf16.mxu0 0
    %1825 = vmatpush1.bf16.msra.mxu0 0
    %1826 = vmatprep.subr.bf16.mxu0 0
    %1827 = vmatpush1.bf16.msra.mxu0 0
    %1828 = vmatprep.subr.bf16.mxu0 0
    %1829 = vmatpush1.bf16.msra.mxu0 0
    %1830 = vmatprep.subr.bf16.mxu0 0
    %1831 = vmatpush1.bf16.msra.mxu0 0
    %1832 = vmatprep.subr.bf16.mxu0 0
    %1833 = vmatpush1.bf16.msra.mxu0 0
    %1834 = vmatprep.subr.bf16.mxu0 0
    %1835 = vmatpush1.bf16.msra.mxu0 0
    %1836 = vmatprep.mubr.bf16.mxu0 0
    %1837 = vmatmul.mubr.bf16.gmra.mrb[0].mxu0 %v1802
    %v1838 = vpop.f32.mrb[0].mxu0
    %v1839 = vadd.f32 %v1800, %v1838
    %v1840 = vpop.f32.mrb[0].mxu0
    %v1841 = vpop.f32.mrb[0].mxu0
    %v1842 = vadd.f32 %v1800, %v1841
    %v1843 = vpop.f32.mrb[0].mxu0
    %1844 = vdwg.mxu0
    %v1845 = vmul.f32 %v1839, %v1839
    %v1846 = vmul.f32 %v1842, %v1842
    %v1847 = vmul.f32 %v1839, %v1845
    %v1848 = vmul.f32 %v1842, %v1846
    %v1849 = vmul.f32 %v1847, 0.044715
    %v1850 = vmul.f32 %v1848, 0.044715
    %v1851 = vadd.f32 %v1839, %v1849
    %v1852 = vadd.f32 %v1842, %v1850
    %v1853 = vmul.f32 %v1851, 0.7978846
    %v1854 = vmul.f32 %v1852, 0.7978846
    %v1855 = vtanh.pop %v1853
    %v1856 = vtanh.pop %v1854
    %v1857 = vadd.f32 %v1855, 1.0
    %v1858 = vadd.f32 %v1856, 1.0
    %v1859 = vmul.f32 %v1857, 0.5
    %v1860 = vmul.f32 %v1858, 0.5
    %v1861 = vmul.f32 %v1839, %v1859
    %v1862 = vmul.f32 %v1842, %v1860
    %v1863 = vld [vmem:[#allocation2 + $0x2f0] sm:$0xff]
    %v1864 = vld [vmem:[#allocation2 + $0x2f8] sm:$0xff]
    %v1865 = vld [vmem:[#allocation2 + $0x300] sm:$0xff]
    %v1866 = vld [vmem:[#allocation2 + $0x308] sm:$0xff]
    %v1867 = vld [vmem:[#allocation2 + $0x310] sm:$0xff]
    %v1868 = vld [vmem:[#allocation2 + $0x318] sm:$0xff]
    %v1869 = vld [vmem:[#allocation2 + $0x320] sm:$0xff]
    %v1870 = vld [vmem:[#allocation2 + $0x328] sm:$0xff]
    %v1871 = vpack.c.bf16 %v1862, %v1861
    %v1872 = vpack.c.bf16 %v1864, %v1863
    %v1873 = vpack.c.bf16 %v1866, %v1865
    %v1874 = vpack.c.bf16 %v1868, %v1867
    %v1875 = vpack.c.bf16 %v1870, %v1869
    %v1876 = vld [vmem:[#allocation2 + $0xab] sm:$0x1]
    %v1877 = vlaneseq
    %v1878 = vshrl.u32 %v1877, 7
    %v1879 = vsub.s32 0, %v1878
    %v1880 = vrot.slane %v1876, %v1879
    %v1882 = vsel %vm995, %v1871, 0
    %1884 = vmatprep.subr.bf16.mxu0 0
    %1885 = vmatpush1.bf16.msra.mxu0 %v1872
    %1886 = vmatprep.subr.bf16.mxu0 0
    %1887 = vmatpush1.bf16.msra.mxu0 %v1873
    %1888 = vmatprep.subr.bf16.mxu0 0
    %1889 = vmatpush1.bf16.msra.mxu0 %v1874
    %1890 = vmatprep.subr.bf16.mxu0 0
    %1891 = vmatpush1.bf16.msra.mxu0 %v1875
    %1892 = vmatprep.subr.bf16.mxu0 0
    %1893 = vmatpush1.bf16.msra.mxu0 0
    %1894 = vmatprep.subr.bf16.mxu0 0
    %1895 = vmatpush1.bf16.msra.mxu0 0
    %1896 = vmatprep.subr.bf16.mxu0 0
    %1897 = vmatpush1.bf16.msra.mxu0 0
    %1898 = vmatprep.subr.bf16.mxu0 0
    %1899 = vmatpush1.bf16.msra.mxu0 0
    %1900 = vmatprep.subr.bf16.mxu0 0
    %1901 = vmatpush1.bf16.msra.mxu0 0
    %1902 = vmatprep.subr.bf16.mxu0 0
    %1903 = vmatpush1.bf16.msra.mxu0 0
    %1904 = vmatprep.subr.bf16.mxu0 0
    %1905 = vmatpush1.bf16.msra.mxu0 0
    %1906 = vmatprep.subr.bf16.mxu0 0
    %1907 = vmatpush1.bf16.msra.mxu0 0
    %1908 = vmatprep.subr.bf16.mxu0 0
    %1909 = vmatpush1.bf16.msra.mxu0 0
    %1910 = vmatprep.subr.bf16.mxu0 0
    %1911 = vmatpush1.bf16.msra.mxu0 0
    %1912 = vmatprep.subr.bf16.mxu0 0
    %1913 = vmatpush1.bf16.msra.mxu0 0
    %1914 = vmatprep.subr.bf16.mxu0 0
    %1915 = vmatpush1.bf16.msra.mxu0 0
    %1916 = vmatprep.mubr.bf16.mxu0 0
    %1917 = vmatmul.mubr.bf16.gmra.mrb[0].mxu0 %v1882
    %v1918 = vpop.f32.mrb[0].mxu0
    %v1919 = vadd.f32 %v1880, %v1918
    %v1920 = vpop.f32.mrb[0].mxu0
    %v1921 = vpop.f32.mrb[0].mxu0
    %v1922 = vadd.f32 %v1880, %v1921
    %v1923 = vpop.f32.mrb[0].mxu0
    %1924 = vdwg.mxu0
    %v1925 = vadd.f32 %v1787, %v1919
    %v1926 = vadd.f32 %v1788, %v1922
    %v1927 = vld [vmem:[#allocation2 + $0xac] sm:$0x1]
    %v1928 = vld [vmem:[#allocation2 + $0xad] sm:$0x1]
    %v1929 = vsel %vm137, %v1925, 0.0
    %1930 = vadd.xlane.f32.xlu0 %v1929
    %v1931 = vpop.xlane.xlu0 %1930
    %v1932 = vsel %vm137, %v1926, 0.0
    %1933 = vadd.xlane.f32.xlu0 %v1932
    %v1934 = vpop.xlane.xlu0 %1933
    %v1935 = vmul.f32 %v1925, %v1925
    %v1936 = vmul.f32 %v1926, %v1926
    %v1937 = vsel %vm137, %v1935, 0.0
    %1938 = vadd.xlane.f32.xlu0 %v1937
    %v1939 = vpop.xlane.xlu0 %1938
    %v1940 = vsel %vm137, %v1936, 0.0
    %1941 = vadd.xlane.f32.xlu0 %v1940
    %v1942 = vpop.xlane.xlu0 %1941
    %v1943 = vmul.f32 %v1931, 0.03125
    %v1944 = vmul.f32 %v1934, 0.03125
    %v1945 = vmul.f32 %v1939, 0.03125
    %v1946 = vmul.f32 %v1942, 0.03125
    %v1947 = vmul.f32 %v1943, %v1943
    %v1948 = vmul.f32 %v1944, %v1944
    %v1949 = vsub.f32 %v1945, %v1947
    %v1950 = vsub.f32 %v1946, %v1948
    %v1951 = vmax.f32 %v1949, 0.0
    %v1952 = vmax.f32 %v1950, 0.0
    %v1953 = vsub.f32 %v1925, %v1943
    %v1954 = vsub.f32 %v1926, %v1944
    %v1955 = vadd.f32 %v1951, 1e-12
    %v1956 = vadd.f32 %v1952, 1e-12
    %v1957 = vrsqrt.pop %v1955
    %v1958 = vrsqrt.pop %v1956
    %v1959 = vmul.f32 %v1953, %v1957
    %v1960 = vmul.f32 %v1954, %v1958
    %v1961 = vlaneseq
    %v1962 = vshrl.u32 %v1961, 7
    %v1963 = vsub.s32 0, %v1962
    %v1964 = vrot.slane %v1927, %v1963
    %v1965 = vmul.f32 %v1959, %v1964
    %v1966 = vmul.f32 %v1960, %v1964
    %v1967 = vlaneseq
    %v1968 = vshrl.u32 %v1967, 7
    %v1969 = vsub.s32 0, %v1968
    %v1970 = vrot.slane %v1928, %v1969
    %v1971 = vadd.f32 %v1965, %v1970
    %v1972 = vadd.f32 %v1966, %v1970
    %v1973 = vld [vmem:[#allocation2 + $0x330] sm:$0xff]
    %v1974 = vld [vmem:[#allocation2 + $0x338] sm:$0xff]
    %v1975 = vld [vmem:[#allocation2 + $0x340] sm:$0xff]
    %v1976 = vld [vmem:[#allocation2 + $0x348] sm:$0xff]
    %v1977 = vpack.c.bf16 %v1972, %v1971
    %v1978 = vpack.c.bf16 %v1974, %v1973
    %v1979 = vpack.c.bf16 %v1976, %v1975
    %v1980 = vld [vmem:[#allocation2 + $0x93] sm:$0x1]
    %v1981 = vlaneseq
    %v1982 = vshrl.u32 %v1981, 7
    %v1983 = vsub.s32 0, %v1982
    %v1984 = vrot.slane %v1980, %v1983
    %v1986 = vsel %vm137, %v1977, 0
    %1988 = vmatprep.subr.bf16.mxu0 0
    %1989 = vmatpush1.bf16.msra.mxu0 %v1978
    %1990 = vmatprep.subr.bf16.mxu0 0
    %1991 = vmatpush1.bf16.msra.mxu0 %v1979
    %1992 = vmatprep.subr.bf16.mxu0 0
    %1993 = vmatpush1.bf16.msra.mxu0 0
    %1994 = vmatprep.subr.bf16.mxu0 0
    %1995 = vmatpush1.bf16.msra.mxu0 0
    %1996 = vmatprep.subr.bf16.mxu0 0
    %1997 = vmatpush1.bf16.msra.mxu0 0
    %1998 = vmatprep.subr.bf16.mxu0 0
    %1999 = vmatpush1.bf16.msra.mxu0 0
    %2000 = vmatprep.subr.bf16.mxu0 0
    %2001 = vmatpush1.bf16.msra.mxu0 0
    %2002 = vmatprep.subr.bf16.mxu0 0
    %2003 = vmatpush1.bf16.msra.mxu0 0
    %2004 = vmatprep.subr.bf16.mxu0 0
    %2005 = vmatpush1.bf16.msra.mxu0 0
    %2006 = vmatprep.subr.bf16.mxu0 0
    %2007 = vmatpush1.bf16.msra.mxu0 0
    %2008 = vmatprep.subr.bf16.mxu0 0
    %2009 = vmatpush1.bf16.msra.mxu0 0
    %2010 = vmatprep.subr.bf16.mxu0 0
    %2011 = vmatpush1.bf16.msra.mxu0 0
    %2012 = vmatprep.subr.bf16.mxu0 0
    %2013 = vmatpush1.bf16.msra.mxu0 0
    %2014 = vmatprep.subr.bf16.mxu0 0
    %2015 = vmatpush1.bf16.msra.mxu0 0
    %2016 = vmatprep.subr.bf16.mxu0 0
    %2017 = vmatpush1.bf16.msra.mxu0 0
    %2018 = vmatprep.subr.bf16.mxu0 0
    %2019 = vmatpush1.bf16.msra.mxu0 0
    %2020 = vmatprep.mubr.bf16.mxu0 0
    %2021 = vmatmul.mubr.bf16.gmra.mrb[0].mxu0 %v1986
    %v2022 = vpop.f32.mrb[0].mxu0
    %v2023 = vadd.f32 %v1984, %v2022
    %v2024 = vpop.f32.mrb[0].mxu0
    %v2025 = vpop.f32.mrb[0].mxu0
    %v2026 = vadd.f32 %v1984, %v2025
    %v2027 = vpop.f32.mrb[0].mxu0
    %2028 = vdwg.mxu0
    %2029 = vst [vmem:[%s3] sm:$0xff] %v2023
    %2030 = vst [vmem:[%s3 + $0x8] sm:$0xff] %v2026
    %v2031 = vld [vmem:[%s0] sm:$0xff]
    %v2032 = vld [vmem:[%s0 + $0x8] sm:$0xff]
    %2033 = vmax.xlane.f32.xlu0 %v2023
    %v2034 = vpop.xlane.xlu0 %2033
    %2035 = vmax.xlane.f32.xlu0 %v2026
    %v2036 = vpop.xlane.xlu0 %2035
    %v2037 = vsub.f32 %v2023, %v2034
    %v2038 = vsub.f32 %v2026, %v2036
    %v2039 = vmul.f32 %v2037, 1.442695
    %v2040 = vpow.pop %v2039
    %v2041 = vmul.f32 %v2038, 1.442695
    %v2042 = vpow.pop %v2041
    %2043 = vadd.xlane.f32.xlu0 %v2040
    %v2044 = vpop.xlane.xlu0 %2043
    %2045 = vadd.xlane.f32.xlu0 %v2042
    %v2046 = vpop.xlane.xlu0 %2045
    %v2047 = vlog2.pop %v2044
    %v2048 = vmul.f32 %v2047, 0.6931472
    %v2049 = vlog2.pop %v2046
    %v2050 = vmul.f32 %v2049, 0.6931472
    %v2051 = vadd.f32 %v2048, %v2034
    %v2052 = vadd.f32 %v2050, %v2036
    %2053 = vset.pattern.permute.xlu0 2
    %2054 = vperm.xlu0 %2053, %v2031
    %v2055 = vpop.permute.xlu0 %2054
    %2056 = vset.pattern.permute.xlu0 2
    %2057 = vperm.xlu0 %2056, %v2032
    %v2058 = vpop.permute.xlu0 %2057
    %vm2059 = vcmp.eq.s32.totalorder %v33, %v2055
    %vm2060 = vcmp.eq.s32.totalorder %v33, %v2058
    %v2061 = vsel %vm2059, %v2023, 0.0
    %v2062 = vsel %vm2060, %v2026, 0.0
    %2063 = vadd.xlane.f32.xlu0 %v2061
    %v2064 = vpop.xlane.xlu0 %2063
    %2065 = vadd.xlane.f32.xlu0 %v2062
    %v2066 = vpop.xlane.xlu0 %2065
    %vm2067 = vcmp.ne.s32.totalorder %v2031, 4294967196
    %vm2068 = vcmp.ne.s32.totalorder %v2032, 4294967196
    %v2069 = vsel %vm2067, 1, 0
    %v2070 = vsel %vm2068, 1, 0
    %v2071 = vcvt.s32.f32 %v2069
    %v2072 = vcvt.s32.f32 %v2070
    %v2073 = vsub.f32 %v2051, %v2064
    %v2074 = vsub.f32 %v2052, %v2066
    %v2075 = vmul.f32 %v2073, %v2071
    %v2076 = vmul.f32 %v2074, %v2072
    %2079 = vrot.lane.b32.xlu0 %v2071, 126
    %v2080 = vpop.permute.xlu0 %2079
    %2081 = vrot.lane.b32.xlu0 %v2072, 126
    %v2082 = vpop.permute.xlu0 %2081
    %vm2085 = vcmask 7168
    %v2086 = vsel %vm2085, %v2080, 0.0
    %v2087 = vsel %vm2085, %v2082, 0.0
    %v2088 = vadd.f32 %v2086, %v2087
    %2089 = vadd.xlane.f32.xlu0 %v2088
    %v2090 = vpop.xlane.xlu0 %2089
    %v2091 = vrot.slane %v2090, 4
    %v2092 = vadd.f32 %v2090, %v2091
    %v2093 = vrot.slane %v2092, 2
    %v2094 = vadd.f32 %v2092, %v2093
    %v2095 = vrot.slane %v2094, 1
    %v2096 = vadd.f32 %v2094, %v2095
    %s2097 = vtos %v2096
    %s2098 = smax.f32 %s2097, 1.0
    %2101 = vrot.lane.b32.xlu0 %v2075, 126
    %v2102 = vpop.permute.xlu0 %2101
    %2103 = vrot.lane.b32.xlu0 %v2076, 126
    %v2104 = vpop.permute.xlu0 %2103
    %v2107 = vsel %vm2085, %v2102, 0.0
    %v2108 = vsel %vm2085, %v2104, 0.0
    %v2109 = vadd.f32 %v2107, %v2108
    %2110 = vadd.xlane.f32.xlu0 %v2109
    %v2111 = vpop.xlane.xlu0 %2110
    %v2112 = vrot.slane %v2111, 4
    %v2113 = vadd.f32 %v2111, %v2112
    %v2114 = vrot.slane %v2113, 2
    %v2115 = vadd.f32 %v2113, %v2114
    %v2116 = vrot.slane %v2115, 1
    %v2117 = vadd.f32 %v2115, %v2116
    %s2118 = vtos %v2117
    %v2119 = vstv %s2098
    %v2120 = vrcp.pop %v2119
    %s2121 = vtos %v2120
    %s2122 = smul.f32 %s2118, %s2121
    %v2123 = vstv %s2122
    %2124 = vst [vmem:[%s3 + $0x10] sm:$0x1] %v2123
    // Predicated region
    $region18: #{bert_token_classifier_double.1} parent=1 // pred_check
      _
    $region19: #{bert_token_classifier_double.1} parent=1 // pred_check_branch
      %2126 = sbr.rel (0) target = $region21
    $region20: #{bert_token_classifier_double.1} parent=1 // pred_region
      _
    $region21: #{bert_token_classifier_double.1} parent=1 // pred_fallthru
      _
    // Predicated region
    $region22: #{bert_token_classifier_double.1} parent=1 // pred_check
      _
    $region23: #{bert_token_classifier_double.1} parent=1 // pred_check_branch
      %2128 = sbr.rel (0) target = $region25
    $region24: #{bert_token_classifier_double.1} parent=1 // pred_region
      _
    $region25: #{bert_token_classifier_double.1} parent=1 // pred_fallthru
      _
    %2129 = vsyncpa [#allocation3], 1

</llo_original>
